<compile_context>
chip_gen: v7x
topology: tpu7x:2x2x1
jax: 0.10.0
libtpu: 0.0.40
codegen_flags: <defaults>
</compile_context>

<pallas_src>
import functools

import jax
import jax.numpy as jnp
from jax.experimental import pallas as pl
from jax.experimental.pallas import tpu as pltpu

FEAT_DIM = 1792       # EfficientNet-B4 feature dim
C_STEM = 48           # B4 stem channels
C_PAD = 128           # stem channels padded to a full lane width
K_RAW = 3 * 3 * 3     # im2col K for the 3x3 stem conv on RGB
K_PAD = 32            # K padded for denser vregs / aligned DMA
TILE_F = 896          # feature-column tile (multiple of 128, divides 1792)
MAX_TILE_HW = 512     # HW row-tile cap (keeps v7x VMEM + pipeline happy)


# -----------------------------------------------------------------------------
# Kernel 1: fused backbone
#   stem conv (im2col matmul) + swish  ->  1x1 head conv + swish
#   -> global-average-pool accumulated in a VMEM scratch.
# Grid: (B, n_feat_tiles, n_hw_tiles); last axis is the pooling reduction.
# -----------------------------------------------------------------------------
def backbone_kernel(p_ref, ws_ref, bs_ref, wh_ref, bh_ref, o_ref, acc_ref,
                    *, tile_hw, hw_actual):
    t = pl.program_id(2)

    @pl.when(t == 0)
    def _():
        acc_ref[...] = jnp.zeros_like(acc_ref)

    # --- stem conv: (TILE_HW, Kp) bf16 @ (Kp, C_PAD) bf16 -> f32 ---
    patches = p_ref[0]                                           # (TILE_HW, Kp)
    y1 = jnp.dot(patches, ws_ref[...], preferred_element_type=jnp.float32)
    y1 = y1 + bs_ref[...]
    y1 = y1 * jax.nn.sigmoid(y1)                                 # swish, f32

    # --- 1x1 conv head: (TILE_HW, C_PAD) bf16 @ (C_PAD, TILE_F) bf16 -> f32 ---
    y2 = jnp.dot(y1.astype(jnp.bfloat16), wh_ref[...],
                 preferred_element_type=jnp.float32)
    y2 = y2 + bh_ref[...]
    y2 = y2 * jax.nn.sigmoid(y2)                                 # swish, f32

    # --- pooled partial sum on the MXU; mask padded HW rows via the ones vec ---
    row = jax.lax.broadcasted_iota(jnp.int32, (1, tile_hw), 1) + t * tile_hw
    ones_masked = jnp.where(row < hw_actual, 1.0, 0.0).astype(jnp.float32)
    acc_ref[...] += jnp.dot(ones_masked, y2,
                            preferred_element_type=jnp.float32)  # (1, TILE_F)

    @pl.when(t == pl.num_programs(2) - 1)
    def _():
        o_ref[...] = (acc_ref[...] * (1.0 / float(hw_actual))).reshape(
            1, 1, acc_ref.shape[-1])


# -----------------------------------------------------------------------------
# Kernel 2: fused classifier MLP (inference mode: Dropout == identity)
#   logits = relu(relu(f @ W1 + b1) @ W2 + b2) @ W3 + b3   (W3/b3 lane-padded)
# -----------------------------------------------------------------------------
def classifier_kernel(f_ref, w1_ref, b1_ref, w2_ref, b2_ref, w3_ref, b3_ref,
                      o_ref):
    h1 = jnp.dot(f_ref[...], w1_ref[...], preferred_element_type=jnp.float32)
    h1 = jnp.maximum(h1 + b1_ref[...], 0.0)
    h2 = jnp.dot(h1, w2_ref[...], preferred_element_type=jnp.float32)
    h2 = jnp.maximum(h2 + b2_ref[...], 0.0)
    o_ref[...] = (
        jnp.dot(h2, w3_ref[...], preferred_element_type=jnp.float32)
        + b3_ref[...]
    )


# -----------------------------------------------------------------------------
# Glue
# -----------------------------------------------------------------------------
def _choose_tile_hw(hw):
    if hw <= MAX_TILE_HW:
        return -(-hw // 8) * 8          # round up to a sublane multiple
    return MAX_TILE_HW


def im2col_3x3_s2(x_nchw, tile_hw):
    """Channels-last im2col for the 3x3/s2/p1 stem conv.

    Returns (B, HW_pad, K_PAD) bf16 patches (zero-padded in K and HW) plus the
    true number of output pixels hw = OH*OW.  Flat K index = c*9 + (ki*3+kj),
    matching a PyTorch weight (Cout, Cin, KH, KW).reshape(Cout, Cin*KH*KW).
    """
    B, C, H, W = x_nchw.shape
    pad, kh, kw, stride = 1, 3, 3, 2
    oh = (H + 2 * pad - kh) // stride + 1
    ow = (W + 2 * pad - kw) // stride + 1
    x = jnp.transpose(x_nchw, (0, 2, 3, 1))                      # NHWC once
    xp = jnp.pad(x, ((0, 0), (pad, pad), (pad, pad), (0, 0)))
    taps = []
    for i in range(kh):
        for j in range(kw):
            taps.append(xp[:, i:i + stride * oh:stride,
                           j:j + stride * ow:stride, :])
    p = jnp.stack(taps, axis=-1)                                 # (B,OH,OW,C,9)
    hw = oh * ow
    p = p.reshape(B, hw, C * kh * kw)
    hw_pad = -(-hw // tile_hw) * tile_hw
    p = jnp.pad(p, ((0, 0), (0, hw_pad - hw), (0, K_PAD - C * kh * kw)))
    return p.astype(jnp.bfloat16), hw


def _vmem_full_spec():
    return pl.BlockSpec(memory_space=pltpu.MemorySpace.VMEM)


@functools.partial(jax.jit, static_argnames=("num_classes",))
def efficientnet_feature_extractor_forward(x_nchw, params, num_classes):
    B = x_nchw.shape[0]
    oh = (x_nchw.shape[2] + 2 - 3) // 2 + 1
    ow = (x_nchw.shape[3] + 2 - 3) // 2 + 1
    hw = oh * ow
    tile_hw = _choose_tile_hw(hw)

    # ---- fused backbone: stem conv + head conv + swish + global avg pool ----
    patches, hw = im2col_3x3_s2(x_nchw, tile_hw)                 # (B, HWp, Kp)
    hw_pad = patches.shape[1]
    nt = hw_pad // tile_hw
    nf = FEAT_DIM // TILE_F

    kernel = functools.partial(backbone_kernel, tile_hw=tile_hw, hw_actual=hw)
    feats = pl.pallas_call(
        kernel,
        out_shape=jax.ShapeDtypeStruct((B, 1, FEAT_DIM), jnp.float32),
        grid=(B, nf, nt),
        in_specs=[
            pl.BlockSpec((1, tile_hw, K_PAD), lambda b, f, t: (b, t, 0)),
            pl.BlockSpec((K_PAD, C_PAD), lambda b, f, t: (0, 0)),
            pl.BlockSpec((1, C_PAD), lambda b, f, t: (0, 0)),
            pl.BlockSpec((C_PAD, TILE_F), lambda b, f, t: (0, f)),
            pl.BlockSpec((1, TILE_F), lambda b, f, t: (0, f)),
        ],
        out_specs=pl.BlockSpec((1, 1, TILE_F), lambda b, f, t: (b, 0, f)),
        scratch_shapes=[pltpu.VMEM((1, TILE_F), jnp.float32)],
        compiler_params=pltpu.CompilerParams(
            dimension_semantics=("parallel", "parallel", "arbitrary")),
    )(patches, params["w_stem"], params["b_stem"],
      params["w_head"], params["b_head"])
    features = feats.reshape(B, FEAT_DIM)                        # (B, 1792)

    # ---- fused classifier MLP (lane-padded logits, sliced below) ----
    nc_pad = params["w3"].shape[1]
    logits_pad = pl.pallas_call(
        classifier_kernel,
        out_shape=jax.ShapeDtypeStruct((B, nc_pad), jnp.float32),
        in_specs=[_vmem_full_spec()] * 7,
        out_specs=_vmem_full_spec(),
    )(features, params["w1"], params["b1"], params["w2"], params["b2"],
      params["w3"], params["b3"])
    logits = logits_pad[:, :num_classes]

    return logits, features


def init_params(key, num_classes):
    ks = jax.random.split(key, 5)

    def dense_init(k, fan_in, fan_out):
        scale = 1.0 / jnp.sqrt(fan_in)
        kw, kb = jax.random.split(k)
        w = jax.random.uniform(kw, (fan_in, fan_out), jnp.float32, -scale, scale)
        b = jax.random.uniform(kb, (1, fan_out), jnp.float32, -scale, scale)
        return w, b

    # stem 3x3 conv (3 -> 48), lane-padded to (K_PAD, C_PAD); pads are zero.
    w_stem, b_stem = dense_init(ks[0], K_RAW, C_STEM)
    w_stem = jnp.pad(w_stem, ((0, K_PAD - K_RAW), (0, C_PAD - C_STEM)))
    b_stem = jnp.pad(b_stem, ((0, 0), (0, C_PAD - C_STEM)))

    # 1x1 conv head (48 -> 1792); padded stem channels map through zero rows.
    w_head, b_head = dense_init(ks[1], C_STEM, FEAT_DIM)
    w_head = jnp.pad(w_head, ((0, C_PAD - C_STEM), (0, 0)))

    # classifier MLP; final layer lane-padded to 128 output columns.
    w1, b1 = dense_init(ks[2], FEAT_DIM, 512)
    w2, b2 = dense_init(ks[3], 512, 256)
    w3, b3 = dense_init(ks[4], 256, num_classes)
    nc_pad = max(128, -(-num_classes // 128) * 128)
    w3 = jnp.pad(w3, ((0, 0), (0, nc_pad - num_classes)))
    b3 = jnp.pad(b3, ((0, 0), (0, nc_pad - num_classes)))

    return dict(
        w_stem=w_stem.astype(jnp.bfloat16), b_stem=b_stem,
        w_head=w_head.astype(jnp.bfloat16), b_head=b_head,
        w1=w1, b1=b1, w2=w2, b2=b2, w3=w3, b3=b3)


if __name__ == "__main__":
    NUM_CLASSES = 10
    key = jax.random.PRNGKey(0)
    k_x, _ = jax.random.split(key)

    # Small input consistent with the module: (batch, 3, H, W), NCHW.
    x = jax.random.normal(k_x, (2, 3, 16, 16), dtype=jnp.float32)
    params = init_params(jax.random.PRNGKey(42), NUM_CLASSES)

    logits, features = efficientnet_feature_extractor_forward(
        x, params, num_classes=NUM_CLASSES)
    jax.block_until_ready((logits, features))

    assert logits.shape == (2, NUM_CLASSES)
    assert features.shape == (2, FEAT_DIM)
    assert bool(jnp.all(jnp.isfinite(logits)))
    assert bool(jnp.all(jnp.isfinite(features)))
    print("KERNEL_OK")
</pallas_src>

<mosaic_0001>
module attributes {stable_mosaic.version = 11 : i64} {
  func.func @backbone_kernel(%arg0: i32, %arg1: i32, %arg2: i32, %arg3: memref<1x64x32xbf16, #tpu.memory_space<vmem>>, %arg4: memref<32x128xbf16, #tpu.memory_space<vmem>>, %arg5: memref<1x128xf32, #tpu.memory_space<vmem>>, %arg6: memref<128x896xbf16, #tpu.memory_space<vmem>>, %arg7: memref<1x896xf32, #tpu.memory_space<vmem>>, %arg8: memref<1x1x896xf32, #tpu.memory_space<vmem>>, %arg9: memref<1x896xf32, #tpu.memory_space<vmem>>) attributes {dimension_semantics = [#tpu.dimension_semantics<parallel>, #tpu.dimension_semantics<parallel>, #tpu.dimension_semantics<arbitrary>], iteration_bounds = array<i64: 2, 2, 1>, scalar_prefetch = 0 : i64, scratch_operands = 1 : i64, tpu.core_type = #tpu.core_type<tc>, window_params = [{transform_indices = @transform_0, window_bounds = array<i64: 1, 64, 32>}, {pipeline_mode = #tpu.pipeline_mode<synchronous>, transform_indices = @transform_1, window_bounds = array<i64: 32, 128>}, {pipeline_mode = #tpu.pipeline_mode<synchronous>, transform_indices = @transform_2, window_bounds = array<i64: 1, 128>}, {transform_indices = @transform_3, window_bounds = array<i64: 128, 896>}, {transform_indices = @transform_4, window_bounds = array<i64: 1, 896>}, {transform_indices = @transform_5, window_bounds = array<i64: 1, 1, 896>}]} {
    %c0_i32 = arith.constant 0 : i32
    %0 = arith.cmpi eq, %arg2, %c0_i32 : i32
    %1 = arith.extui %0 : i1 to i32
    %c0_i32_0 = arith.constant 0 : i32
    %2 = arith.cmpi ne, %1, %c0_i32_0 : i32
    scf.if %2 {
      %cst_24 = arith.constant 0.000000e+00 : f32
      %44 = vector.broadcast %cst_24 : f32 to vector<1x896xf32>
      %c0_25 = arith.constant 0 : index
      %c0_26 = arith.constant 0 : index
      %45 = vector.load %arg9[%c0_25, %c0_26] : memref<1x896xf32, #tpu.memory_space<vmem>>, vector<1x896xf32>
      tpu.vector_store %arg9[%c0_25, %c0_26], %44 {strides = array<i32>} : memref<1x896xf32, #tpu.memory_space<vmem>>, vector<1x896xf32>,
    } else {
    }
    %c0 = arith.constant 0 : index
    %c0_1 = arith.constant 0 : index
    %c0_2 = arith.constant 0 : index
    %3 = vector.load %arg3[%c0, %c0_1, %c0_2] : memref<1x64x32xbf16, #tpu.memory_space<vmem>>, vector<1x64x32xbf16>
    %4 = vector.shape_cast %3 : vector<1x64x32xbf16> to vector<64x32xbf16>
    %c0_3 = arith.constant 0 : index
    %c0_4 = arith.constant 0 : index
    %5 = vector.load %arg4[%c0_3, %c0_4] : memref<32x128xbf16, #tpu.memory_space<vmem>>, vector<32x128xbf16>
    %cst = arith.constant dense<0.000000e+00> : vector<64x128xf32>
    %6 = tpu.matmul %4, %5, %cst {dimension_numbers = #tpu.dot_dimension_numbers<[1], [0], [0], [1], [0, 0, 1, 1], [], []>} : vector<64x32xbf16>, vector<32x128xbf16>, vector<64x128xf32> -> vector<64x128xf32>
    %c0_5 = arith.constant 0 : index
    %c0_6 = arith.constant 0 : index
    %7 = vector.load %arg5[%c0_5, %c0_6] : memref<1x128xf32, #tpu.memory_space<vmem>>, vector<1x128xf32>
    %8 = vector.broadcast %7 : vector<1x128xf32> to vector<64x128xf32>
    %9 = arith.addf %6, %8 : vector<64x128xf32>
    %10 = arith.negf %9 : vector<64x128xf32>
    %11 = math.exp %10 : vector<64x128xf32>
    %cst_7 = arith.constant 1.000000e+00 : f32
    %12 = vector.broadcast %cst_7 : f32 to vector<64x128xf32>
    %13 = arith.addf %12, %11 : vector<64x128xf32>
    %14 = arith.divf %12, %13 : vector<64x128xf32>
    %15 = arith.mulf %9, %14 : vector<64x128xf32>
    %16 = arith.truncf %15 : vector<64x128xf32> to vector<64x128xbf16>
    %c0_8 = arith.constant 0 : index
    %c0_9 = arith.constant 0 : index
    %17 = vector.load %arg6[%c0_8, %c0_9] : memref<128x896xbf16, #tpu.memory_space<vmem>>, vector<128x896xbf16>
    %cst_10 = arith.constant dense<0.000000e+00> : vector<64x896xf32>
    %18 = tpu.matmul %16, %17, %cst_10 {dimension_numbers = #tpu.dot_dimension_numbers<[1], [0], [0], [1], [0, 0, 1, 1], [], []>} : vector<64x128xbf16>, vector<128x896xbf16>, vector<64x896xf32> -> vector<64x896xf32>
    %c0_11 = arith.constant 0 : index
    %c0_12 = arith.constant 0 : index
    %19 = vector.load %arg7[%c0_11, %c0_12] : memref<1x896xf32, #tpu.memory_space<vmem>>, vector<1x896xf32>
    %20 = vector.broadcast %19 : vector<1x896xf32> to vector<64x896xf32>
    %21 = arith.addf %18, %20 : vector<64x896xf32>
    %22 = arith.negf %21 : vector<64x896xf32>
    %23 = math.exp %22 : vector<64x896xf32>
    %cst_13 = arith.constant 1.000000e+00 : f32
    %24 = vector.broadcast %cst_13 : f32 to vector<64x896xf32>
    %25 = arith.addf %24, %23 : vector<64x896xf32>
    %26 = arith.divf %24, %25 : vector<64x896xf32>
    %27 = arith.mulf %21, %26 : vector<64x896xf32>
    %28 = tpu.iota {dimensions = array<i32: 1>} : vector<1x64xi32>
    %c64_i32 = arith.constant 64 : i32
    %29 = arith.muli %arg2, %c64_i32 : i32
    %30 = vector.broadcast %29 : i32 to vector<1x64xi32>
    %31 = arith.addi %28, %30 : vector<1x64xi32>
    %c64_i32_14 = arith.constant 64 : i32
    %32 = vector.broadcast %c64_i32_14 : i32 to vector<1x64xi32>
    %33 = arith.cmpi slt, %31, %32 : vector<1x64xi32>
    %cst_15 = arith.constant 1.000000e+00 : f32
    %cst_16 = arith.constant 0.000000e+00 : f32
    %34 = vector.broadcast %cst_15 : f32 to vector<1x64xf32>
    %35 = vector.broadcast %cst_16 : f32 to vector<1x64xf32>
    %36 = arith.select %33, %34, %35 : vector<1x64xi1>, vector<1x64xf32>
    %c0_17 = arith.constant 0 : index
    %c0_18 = arith.constant 0 : index
    %37 = vector.load %arg9[%c0_17, %c0_18] : memref<1x896xf32, #tpu.memory_space<vmem>>, vector<1x896xf32>
    %cst_19 = arith.constant dense<0.000000e+00> : vector<1x896xf32>
    %38 = tpu.matmul %36, %27, %cst_19 {dimension_numbers = #tpu.dot_dimension_numbers<[1], [0], [0], [1], [0, 0, 1, 1], [], []>} : vector<1x64xf32>, vector<64x896xf32>, vector<1x896xf32> -> vector<1x896xf32>
    %39 = arith.addf %37, %38 : vector<1x896xf32>
    %c0_20 = arith.constant 0 : index
    %c0_21 = arith.constant 0 : index
    %40 = vector.load %arg9[%c0_20, %c0_21] : memref<1x896xf32, #tpu.memory_space<vmem>>, vector<1x896xf32>
    tpu.vector_store %arg9[%c0_20, %c0_21], %39 {strides = array<i32>} : memref<1x896xf32, #tpu.memory_space<vmem>>, vector<1x896xf32>,
    %c0_i32_22 = arith.constant 0 : i32
    %41 = arith.cmpi eq, %arg2, %c0_i32_22 : i32
    %42 = arith.extui %41 : i1 to i32
    %c0_i32_23 = arith.constant 0 : i32
    %43 = arith.cmpi ne, %42, %c0_i32_23 : i32
    scf.if %43 {
      %c0_24 = arith.constant 0 : index
      %c0_25 = arith.constant 0 : index
      %44 = vector.load %arg9[%c0_24, %c0_25] : memref<1x896xf32, #tpu.memory_space<vmem>>, vector<1x896xf32>
      %cst_26 = arith.constant 1.562500e-02 : f32
      %45 = vector.broadcast %cst_26 : f32 to vector<1x896xf32>
      %46 = arith.mulf %44, %45 : vector<1x896xf32>
      %47 = vector.shape_cast %46 : vector<1x896xf32> to vector<1x1x896xf32>
      %c0_27 = arith.constant 0 : index
      %c0_28 = arith.constant 0 : index
      %c0_29 = arith.constant 0 : index
      %48 = vector.load %arg8[%c0_27, %c0_28, %c0_29] : memref<1x1x896xf32, #tpu.memory_space<vmem>>, vector<1x1x896xf32>
      tpu.vector_store %arg8[%c0_27, %c0_28, %c0_29], %47 {strides = array<i32>} : memref<1x1x896xf32, #tpu.memory_space<vmem>>, vector<1x1x896xf32>,
    } else {
    }
    return
  }
  func.func @transform_0(%arg0: i32, %arg1: i32, %arg2: i32) -> (i32, i32, i32) {
    %c0_i32 = arith.constant 0 : i32
    %c0_i32_0 = arith.constant 0 : i32
    return %arg0, %arg2, %c0_i32 : i32, i32, i32
  }
  func.func @transform_1(%arg0: i32, %arg1: i32, %arg2: i32) -> (i32, i32) {
    %c0_i32 = arith.constant 0 : i32
    %c0_i32_0 = arith.constant 0 : i32
    %c0_i32_1 = arith.constant 0 : i32
    return %c0_i32, %c0_i32_0 : i32, i32
  }
  func.func @transform_2(%arg0: i32, %arg1: i32, %arg2: i32) -> (i32, i32) {
    %c0_i32 = arith.constant 0 : i32
    %c0_i32_0 = arith.constant 0 : i32
    %c0_i32_1 = arith.constant 0 : i32
    return %c0_i32, %c0_i32_0 : i32, i32
  }
  func.func @transform_3(%arg0: i32, %arg1: i32, %arg2: i32) -> (i32, i32) {
    %c0_i32 = arith.constant 0 : i32
    %c0_i32_0 = arith.constant 0 : i32
    return %c0_i32, %arg1 : i32, i32
  }
  func.func @transform_4(%arg0: i32, %arg1: i32, %arg2: i32) -> (i32, i32) {
    %c0_i32 = arith.constant 0 : i32
    %c0_i32_0 = arith.constant 0 : i32
    return %c0_i32, %arg1 : i32, i32
  }
  func.func @transform_5(%arg0: i32, %arg1: i32, %arg2: i32) -> (i32, i32, i32) {
    %c0_i32 = arith.constant 0 : i32
    %c0_i32_0 = arith.constant 0 : i32
    return %arg0, %c0_i32, %arg1 : i32, i32, i32
  }
}

module attributes {stable_mosaic.version = 11 : i64} {
  func.func @classifier_kernel(%arg0: memref<2x1792xf32, #tpu.memory_space<vmem>>, %arg1: memref<1792x512xf32, #tpu.memory_space<vmem>>, %arg2: memref<1x512xf32, #tpu.memory_space<vmem>>, %arg3: memref<512x256xf32, #tpu.memory_space<vmem>>, %arg4: memref<1x256xf32, #tpu.memory_space<vmem>>, %arg5: memref<256x128xf32, #tpu.memory_space<vmem>>, %arg6: memref<1x128xf32, #tpu.memory_space<vmem>>, %arg7: memref<2x128xf32, #tpu.memory_space<vmem>>) attributes {dimension_semantics = [], scalar_prefetch = 0 : i64, scratch_operands = 0 : i64, tpu.core_type = #tpu.core_type<tc>} {
    %c0 = arith.constant 0 : index
    %c0_0 = arith.constant 0 : index
    %0 = vector.load %arg0[%c0, %c0_0] : memref<2x1792xf32, #tpu.memory_space<vmem>>, vector<2x1792xf32>
    %c0_1 = arith.constant 0 : index
    %c0_2 = arith.constant 0 : index
    %1 = vector.load %arg1[%c0_1, %c0_2] : memref<1792x512xf32, #tpu.memory_space<vmem>>, vector<1792x512xf32>
    %cst = arith.constant dense<0.000000e+00> : vector<2x512xf32>
    %2 = tpu.matmul %0, %1, %cst {dimension_numbers = #tpu.dot_dimension_numbers<[1], [0], [0], [1], [0, 0, 1, 1], [], []>} : vector<2x1792xf32>, vector<1792x512xf32>, vector<2x512xf32> -> vector<2x512xf32>
    %c0_3 = arith.constant 0 : index
    %c0_4 = arith.constant 0 : index
    %3 = vector.load %arg2[%c0_3, %c0_4] : memref<1x512xf32, #tpu.memory_space<vmem>>, vector<1x512xf32>
    %4 = vector.broadcast %3 : vector<1x512xf32> to vector<2x512xf32>
    %5 = arith.addf %2, %4 : vector<2x512xf32>
    %cst_5 = arith.constant 0.000000e+00 : f32
    %6 = vector.broadcast %cst_5 : f32 to vector<2x512xf32>
    %7 = arith.maximumf %5, %6 : vector<2x512xf32>
    %c0_6 = arith.constant 0 : index
    %c0_7 = arith.constant 0 : index
    %8 = vector.load %arg3[%c0_6, %c0_7] : memref<512x256xf32, #tpu.memory_space<vmem>>, vector<512x256xf32>
    %cst_8 = arith.constant dense<0.000000e+00> : vector<2x256xf32>
    %9 = tpu.matmul %7, %8, %cst_8 {dimension_numbers = #tpu.dot_dimension_numbers<[1], [0], [0], [1], [0, 0, 1, 1], [], []>} : vector<2x512xf32>, vector<512x256xf32>, vector<2x256xf32> -> vector<2x256xf32>
    %c0_9 = arith.constant 0 : index
    %c0_10 = arith.constant 0 : index
    %10 = vector.load %arg4[%c0_9, %c0_10] : memref<1x256xf32, #tpu.memory_space<vmem>>, vector<1x256xf32>
    %11 = vector.broadcast %10 : vector<1x256xf32> to vector<2x256xf32>
    %12 = arith.addf %9, %11 : vector<2x256xf32>
    %cst_11 = arith.constant 0.000000e+00 : f32
    %13 = vector.broadcast %cst_11 : f32 to vector<2x256xf32>
    %14 = arith.maximumf %12, %13 : vector<2x256xf32>
    %c0_12 = arith.constant 0 : index
    %c0_13 = arith.constant 0 : index
    %15 = vector.load %arg5[%c0_12, %c0_13] : memref<256x128xf32, #tpu.memory_space<vmem>>, vector<256x128xf32>
    %cst_14 = arith.constant dense<0.000000e+00> : vector<2x128xf32>
    %16 = tpu.matmul %14, %15, %cst_14 {dimension_numbers = #tpu.dot_dimension_numbers<[1], [0], [0], [1], [0, 0, 1, 1], [], []>} : vector<2x256xf32>, vector<256x128xf32>, vector<2x128xf32> -> vector<2x128xf32>
    %c0_15 = arith.constant 0 : index
    %c0_16 = arith.constant 0 : index
    %17 = vector.load %arg6[%c0_15, %c0_16] : memref<1x128xf32, #tpu.memory_space<vmem>>, vector<1x128xf32>
    %18 = vector.broadcast %17 : vector<1x128xf32> to vector<2x128xf32>
    %19 = arith.addf %16, %18 : vector<2x128xf32>
    %c0_17 = arith.constant 0 : index
    %c0_18 = arith.constant 0 : index
    %20 = vector.load %arg7[%c0_17, %c0_18] : memref<2x128xf32, #tpu.memory_space<vmem>>, vector<2x128xf32>
    tpu.vector_store %arg7[%c0_17, %c0_18], %19 {strides = array<i32>} : memref<2x128xf32, #tpu.memory_space<vmem>>, vector<2x128xf32>,
    return
  }
}

</mosaic_0001>

<llo_original>
// kernel: efficientnet_feature_extractor_forward.2
$region0: #{efficientnet_feature_extractor_forward.2}
  #allocation0 [shape = 'u32[]', space=smem, size = 0x4, offset = 0x4, fixed_abs, tag = 'smem constant byte address 0x4 - core index']
  #allocation1 [shape = 'u32[144,128]{1,0:T(1,128)}', space=vmem, size = 0x12000, scoped, tag = 'internal scratch']
  #allocation2 [shape = 'f32[1,896]{1,0:T(1,128)}', space=vmem, size = 0xe00, scoped, tag = 'scratch operand']
  %s0 = inlined_call_operand.vmem [shape: bf16[2,64,32], index: 0, kind: input, shape index: {}]
  %s1 = inlined_call_operand.hbm [shape: bf16[32,128], index: 1, kind: input, shape index: {}]
  %s2 = inlined_call_operand.hbm [shape: f32[1,128], index: 2, kind: input, shape index: {}]
  %s3 = inlined_call_operand.hbm [shape: bf16[128,1792], index: 3, kind: input, shape index: {}]
  %s4 = inlined_call_operand.hbm [shape: f32[1,1792], index: 4, kind: input, shape index: {}]
  %s5 = inlined_call_operand.vmem [shape: f32[2,1,1792], index: 5, kind: output, shape index: {}]
  %s6 = sld [smem:[#allocation0]]
  $region77: #{efficientnet_feature_extractor_forward.2} parent=0
    _
  %s8 = ssub.s32 1, %s6
  %s9 = scalar_select 0, %s8, %s6
  $region1: #{efficientnet_feature_extractor_forward.2} parent=0
    #allocation3 [shape = 'u8[8192]{0}', space=vmem, size = 0x2000, scoped, tag = 'input window, operand 1, single buffered']
    #allocation4 [shape = 's32[2]{0}', space=sflag, size = 0x8, scoped, tag = 'scoped memory for efficientnet_feature_extractor_forward.2']
    #allocation5 [shape = 'u8[512]{0}', space=vmem, size = 0x400, scoped, tag = 'input window, operand 2, single buffered']
    #allocation6 [shape = 's32[1]{0}', space=sflag, size = 0x4, scoped, tag = 'scoped memory for efficientnet_feature_extractor_forward.2']
    #allocation7 [shape = 'u8[458752]{0}', space=vmem, size = 0x70000, scoped, tag = 'input window, operand 3']
    #allocation8 [shape = 'u8[7168]{0}', space=vmem, size = 0x1c00, scoped, tag = 'input window, operand 4']
    %10 = vsyncpa [#allocation4], 0
    %11 = vsyncpa [#allocation6], 0
    loop: start=0, step=1, limit=6
    $region2: #{efficientnet_feature_extractor_forward.2} parent=1 // loop_pre_header
      _
    $region3: #{efficientnet_feature_extractor_forward.2} parent=1 // loop_header
      %s13 = sphi 0, %s17
      %p14 = scmp.ge.s32.totalorder %s13, 6
      %s20 = sphi 0, %s39
      %s21 = sphi 0, %s35
      %s22 = sphi 0, %s31
      %s23 = sphi 0, %s20
      %s24 = sphi 0, %s21
      %s25 = sphi 0, %s22
      %s26 = sphi 0, %s23
      %s27 = sphi 0, %s24
      %s28 = sphi 0, %s25
      %s44 = sphi 0, %s46
      %s47 = sphi 0, %s44
      %s48 = sphi 0, %s47
      %s64 = sphi 0, %s48
      %s68 = sphi 0, %s68
      %s70 = sphi 0, %s68
      %s71 = sphi 0, %s70
      %s85 = sphi 0, %s71
      %s89 = sphi 0, %s89
      %s91 = sphi 0, %s89
      %s92 = sphi 0, %s91
      %s106 = sphi 0, %s92
      %s112 = sphi 0, %s114
      %s115 = sphi 0, %s112
      %s116 = sphi 0, %s115
      %s132 = sphi 0, %s116
      %s138 = sphi 0, %s140
      %s141 = sphi 0, %s138
      %s142 = sphi 0, %s141
      %s158 = sphi 0, %s142
      %s166 = sphi 0, %s168
      %s169 = sphi 0, %s166
      %s170 = sphi 0, %s169
      %s186 = sphi 0, %s170
    $region4: #{efficientnet_feature_extractor_forward.2} parent=1 // loop_header_branch
      %16 = sbr.rel (%p14) target = $region8
    $region5: #{efficientnet_feature_extractor_forward.2} parent=1 // loop_body
      %s18 = ssub.s32 %s13, 1
      %s19 = ssub.s32 %s13, 2
      %s29 = sadd.s32 1, %s22
      %p30 = scmp.ge.s32.totalorder %s29, 1
      %s31 = scalar_select %p30, 0, %s29
      %s32 = sadd.s32 1, %s21
      %s33 = scalar_select %p30, %s32, %s21
      %p34 = scmp.ge.s32.totalorder %s33, 2
      %s35 = scalar_select %p34, 0, %s33
      %s36 = sadd.s32 1, %s20
      %s37 = scalar_select %p34, %s36, %s20
      %p38 = scmp.ge.s32.totalorder %s37, 2
      %s39 = scalar_select %p38, 0, %s37
      %s40 = ssub.s32 %s20, %s39
      %s41 = ssub.s32 %s22, %s31
      %s42 = sor.u32 %s40, %s41
      %p43 = scmp.eq.s32.totalorder %s42, 0
      %s45 = sadd.s32 %s44, 1
      %s46 = scalar_select %p43, %s44, %s45
      %p49 = pneg %p43
      %p50 = scmp.eq.s32.totalorder %s13, 3
      %p51 = por %p49, %p50
      %p52 = scmp.ne.s32.totalorder %s44, %s47
      %p53 = scmp.eq.s32.totalorder %s13, 0
      %p54 = por %p52, %p53
      %p55 = scmp.ne.s32.totalorder %s44, %s47
      %p56 = scmp.eq.s32.totalorder %s18, 3
      %p57 = por %p55, %p56
      %p58 = scmp.ne.s32.totalorder %s47, %s48
      %p59 = scmp.eq.s32.totalorder %s18, 0
      %p60 = por %p58, %p59
      %p61 = scmp.ne.s32.totalorder %s47, %s48
      %p62 = scmp.eq.s32.totalorder %s19, 3
      %p63 = por %p61, %p62
      %p65 = scmp.ne.s32.totalorder %s48, %s64
      %p66 = scmp.eq.s32.totalorder %s19, 0
      %p67 = por %p65, %p66
      %s69 = sadd.s32 %s68, 1
      %p72 = scmp.eq.s32.totalorder %s13, 3
      %p73 = scmp.ne.s32.totalorder %s68, %s70
      %p74 = scmp.eq.s32.totalorder %s13, 0
      %p75 = por %p73, %p74
      %p76 = scmp.ne.s32.totalorder %s68, %s70
      %p77 = scmp.eq.s32.totalorder %s18, 3
      %p78 = por %p76, %p77
      %p79 = scmp.ne.s32.totalorder %s70, %s71
      %p80 = scmp.eq.s32.totalorder %s18, 0
      %p81 = por %p79, %p80
      %p82 = scmp.ne.s32.totalorder %s70, %s71
      %p83 = scmp.eq.s32.totalorder %s19, 3
      %p84 = por %p82, %p83
      %p86 = scmp.ne.s32.totalorder %s71, %s85
      %p87 = scmp.eq.s32.totalorder %s19, 0
      %p88 = por %p86, %p87
      %s90 = sadd.s32 %s89, 1
      %p93 = scmp.eq.s32.totalorder %s13, 3
      %p94 = scmp.ne.s32.totalorder %s89, %s91
      %p95 = scmp.eq.s32.totalorder %s13, 0
      %p96 = por %p94, %p95
      %p97 = scmp.ne.s32.totalorder %s89, %s91
      %p98 = scmp.eq.s32.totalorder %s18, 3
      %p99 = por %p97, %p98
      %p100 = scmp.ne.s32.totalorder %s91, %s92
      %p101 = scmp.eq.s32.totalorder %s18, 0
      %p102 = por %p100, %p101
      %p103 = scmp.ne.s32.totalorder %s91, %s92
      %p104 = scmp.eq.s32.totalorder %s19, 3
      %p105 = por %p103, %p104
      %p107 = scmp.ne.s32.totalorder %s92, %s106
      %p108 = scmp.eq.s32.totalorder %s19, 0
      %p109 = por %p107, %p108
      %s110 = ssub.s32 %s21, %s35
      %p111 = scmp.eq.s32.totalorder %s110, 0
      %s113 = sadd.s32 %s112, 1
      %s114 = scalar_select %p111, %s112, %s113
      %p117 = pneg %p111
      %p118 = scmp.eq.s32.totalorder %s13, 3
      %p119 = por %p117, %p118
      %p120 = scmp.ne.s32.totalorder %s112, %s115
      %p121 = scmp.eq.s32.totalorder %s13, 0
      %p122 = por %p120, %p121
      %p123 = scmp.ne.s32.totalorder %s112, %s115
      %p124 = scmp.eq.s32.totalorder %s18, 3
      %p125 = por %p123, %p124
      %p126 = scmp.ne.s32.totalorder %s115, %s116
      %p127 = scmp.eq.s32.totalorder %s18, 0
      %p128 = por %p126, %p127
      %p129 = scmp.ne.s32.totalorder %s115, %s116
      %p130 = scmp.eq.s32.totalorder %s19, 3
      %p131 = por %p129, %p130
      %p133 = scmp.ne.s32.totalorder %s116, %s132
      %p134 = scmp.eq.s32.totalorder %s19, 0
      %p135 = por %p133, %p134
      %s136 = ssub.s32 %s21, %s35
      %p137 = scmp.eq.s32.totalorder %s136, 0
      %s139 = sadd.s32 %s138, 1
      %s140 = scalar_select %p137, %s138, %s139
      %p143 = pneg %p137
      %p144 = scmp.eq.s32.totalorder %s13, 3
      %p145 = por %p143, %p144
      %p146 = scmp.ne.s32.totalorder %s138, %s141
      %p147 = scmp.eq.s32.totalorder %s13, 0
      %p148 = por %p146, %p147
      %p149 = scmp.ne.s32.totalorder %s138, %s141
      %p150 = scmp.eq.s32.totalorder %s18, 3
      %p151 = por %p149, %p150
      %p152 = scmp.ne.s32.totalorder %s141, %s142
      %p153 = scmp.eq.s32.totalorder %s18, 0
      %p154 = por %p152, %p153
      %p155 = scmp.ne.s32.totalorder %s141, %s142
      %p156 = scmp.eq.s32.totalorder %s19, 3
      %p157 = por %p155, %p156
      %p159 = scmp.ne.s32.totalorder %s142, %s158
      %p160 = scmp.eq.s32.totalorder %s19, 0
      %p161 = por %p159, %p160
      %s162 = ssub.s32 %s20, %s39
      %s163 = ssub.s32 %s21, %s35
      %s164 = sor.u32 %s162, %s163
      %p165 = scmp.eq.s32.totalorder %s164, 0
      %s167 = sadd.s32 %s166, 1
      %s168 = scalar_select %p165, %s166, %s167
      %p171 = pneg %p165
      %p172 = scmp.eq.s32.totalorder %s13, 3
      %p173 = por %p171, %p172
      %p174 = scmp.ne.s32.totalorder %s166, %s169
      %p175 = scmp.eq.s32.totalorder %s13, 0
      %p176 = por %p174, %p175
      %p177 = scmp.ne.s32.totalorder %s166, %s169
      %p178 = scmp.eq.s32.totalorder %s18, 3
      %p179 = por %p177, %p178
      %p180 = scmp.ne.s32.totalorder %s169, %s170
      %p181 = scmp.eq.s32.totalorder %s18, 0
      %p182 = por %p180, %p181
      %p183 = scmp.ne.s32.totalorder %s169, %s170
      %p184 = scmp.eq.s32.totalorder %s19, 3
      %p185 = por %p183, %p184
      %p187 = scmp.ne.s32.totalorder %s170, %s186
      %p188 = scmp.eq.s32.totalorder %s19, 0
      %p189 = por %p187, %p188
      %p190 = scmp.le.s32.totalorder 1, %s13
      %p191 = scmp.lt.s32.totalorder %s13, 5
      %p192 = pnand %p190, %p191
      %p193 = pneg %p192
      // Predicated region
      $region9: #{efficientnet_feature_extractor_forward.2} parent=5 // pred_check
        _
      $region10: #{efficientnet_feature_extractor_forward.2} parent=5 // pred_check_branch
        %195 = sbr.rel (%p192) target = $region12
      $region11: #{efficientnet_feature_extractor_forward.2} parent=5 // pred_region
        %s196 = ssub.s32 %s13, 1
        // Predicated region
        $region13: #{efficientnet_feature_extractor_forward.2} parent=11 // pred_check
          %p197 = pneg %p81
        $region14: #{efficientnet_feature_extractor_forward.2} parent=11 // pred_check_branch
          %199 = sbr.rel (%p197) target = $region16
        $region15: #{efficientnet_feature_extractor_forward.2} parent=11 // pred_region
          %s201 = ssub.s32 256, 256
          %202 = vsyncadd [#allocation4], %s201
          %s203 = sshll.u32 [#allocation3], 4
          %s204 = int_to_ptr.vmem [resolvable:$true] %s203
          %209 = dma.hbm_to_vmem [thread:$0]  %s1, 256, %s204, [#allocation4], 64, 64, 4
        $region16: #{efficientnet_feature_extractor_forward.2} parent=11 // pred_fallthru
          _
        // Predicated region
        $region17: #{efficientnet_feature_extractor_forward.2} parent=11 // pred_check
          %p210 = pneg %p102
        $region18: #{efficientnet_feature_extractor_forward.2} parent=11 // pred_check_branch
          %212 = sbr.rel (%p210) target = $region20
        $region19: #{efficientnet_feature_extractor_forward.2} parent=11 // pred_region
          %s214 = ssub.s32 16, 16
          %215 = vsyncadd [#allocation6], %s214
          %s217 = sshll.u32 [#allocation5], 4
          %s218 = int_to_ptr.vmem [resolvable:$true] %s217
          %220 = dma.hbm_to_vmem [thread:$0]  %s2, 16, %s218, [#allocation6]
        $region20: #{efficientnet_feature_extractor_forward.2} parent=11 // pred_fallthru
          _
      $region12: #{efficientnet_feature_extractor_forward.2} parent=5 // pred_fallthru
        _
      %p221 = scmp.lt.s32.totalorder %s13, 4
      // Predicated region
      $region21: #{efficientnet_feature_extractor_forward.2} parent=5 // pred_check
        %p222 = pneg %p221
      $region22: #{efficientnet_feature_extractor_forward.2} parent=5 // pred_check_branch
        %224 = sbr.rel (%p222) target = $region24
      $region23: #{efficientnet_feature_extractor_forward.2} parent=5 // pred_region
        // Predicated region
        $region25: #{efficientnet_feature_extractor_forward.2} parent=23 // pred_check
          %p225 = pneg %p54
        $region26: #{efficientnet_feature_extractor_forward.2} parent=23 // pred_check_branch
          %227 = sbr.rel (%p225) target = $region28
        $region27: #{efficientnet_feature_extractor_forward.2} parent=23 // pred_region
          %s228 = smul.u32 8, %s22
          %p229 = scmp.lt.s32.totalorder %s20, 1
          %s230 = scalar_select %p229, %s20, 1
          %p231 = scmp.lt.s32.totalorder %s228, 7
          %s232 = scalar_select %p231, %s228, 7
          %s233 = smul.addr %s230, 8
          %s234 = sadd.s32 %s232, %s233
          %s235 = smul.addr %s234, 4
          %s236 = scalar_lea.vmem %s0, %s235
          %s237 = smul.u32 8, %s22
        $region28: #{efficientnet_feature_extractor_forward.2} parent=23 // pred_fallthru
          _
        // Predicated region
        $region29: #{efficientnet_feature_extractor_forward.2} parent=23 // pred_check
          %p238 = pneg %p122
        $region30: #{efficientnet_feature_extractor_forward.2} parent=23 // pred_check_branch
          %240 = sbr.rel (%p238) target = $region32
        $region31: #{efficientnet_feature_extractor_forward.2} parent=23 // pred_region
          %s241 = sand.u32 %s13, 1
          %s242 = scalar_lea.sflag [#allocation4], %s241
          %s243 = sand.u32 %s112, 1
          %s244 = smul.addr %s243, 448
          %s245 = scalar_lea.vmem [#allocation7], %s244
          %s246 = smul.u32 7, %s21
          %s248 = ssub.s32 7168, 7168
          %249 = vsyncadd %s242, %s248
          %s250 = smul.addr %s246, 64
          %s251 = scalar_lea.hbm %s3, %s250
          %s252 = sshll.u32 %s245, 4
          %s253 = int_to_ptr.vmem [resolvable:$true] %s252
          %258 = dma.hbm_to_vmem [thread:$0]  %s251, 7168, %s253, %s242, 896, 448, 28
        $region32: #{efficientnet_feature_extractor_forward.2} parent=23 // pred_fallthru
          _
        // Predicated region
        $region33: #{efficientnet_feature_extractor_forward.2} parent=23 // pred_check
          %p259 = pneg %p148
        $region34: #{efficientnet_feature_extractor_forward.2} parent=23 // pred_check_branch
          %261 = sbr.rel (%p259) target = $region36
        $region35: #{efficientnet_feature_extractor_forward.2} parent=23 // pred_region
          %s262 = sand.u32 %s13, 1
          %s263 = scalar_lea.sflag [#allocation4], %s262
          %s264 = sand.u32 %s138, 1
          %s265 = smul.addr %s264, 7
          %s266 = scalar_lea.vmem [#allocation8], %s265
          %s267 = smul.u32 7, %s21
          %s269 = ssub.s32 112, 112
          %270 = vsyncadd %s263, %s269
          %s271 = smul.addr %s267, 16
          %s272 = scalar_lea.hbm %s4, %s271
          %s274 = sshll.u32 %s266, 4
          %s275 = int_to_ptr.vmem [resolvable:$true] %s274
          %277 = dma.hbm_to_vmem [thread:$0]  %s272, 112, %s275, %s263
        $region36: #{efficientnet_feature_extractor_forward.2} parent=23 // pred_fallthru
          _
      $region24: #{efficientnet_feature_extractor_forward.2} parent=5 // pred_fallthru
        _
      %p278 = scmp.le.s32.totalorder 1, %s13
      %p279 = scmp.lt.s32.totalorder %s13, 5
      %p280 = pnand %p278, %p279
      %p281 = pneg %p280
      // Predicated region
      $region37: #{efficientnet_feature_extractor_forward.2} parent=5 // pred_check
        _
      $region38: #{efficientnet_feature_extractor_forward.2} parent=5 // pred_check_branch
        %283 = sbr.rel (%p280) target = $region40
      $region39: #{efficientnet_feature_extractor_forward.2} parent=5 // pred_region
        %s284 = ssub.s32 %s13, 1
        // Predicated region
        $region41: #{efficientnet_feature_extractor_forward.2} parent=39 // pred_check
          %p285 = pneg %p81
        $region42: #{efficientnet_feature_extractor_forward.2} parent=39 // pred_check_branch
          %287 = sbr.rel (%p285) target = $region44
        $region43: #{efficientnet_feature_extractor_forward.2} parent=39 // pred_region
          %288 = dma.done [#allocation4], 256
        $region44: #{efficientnet_feature_extractor_forward.2} parent=39 // pred_fallthru
          _
        // Predicated region
        $region45: #{efficientnet_feature_extractor_forward.2} parent=39 // pred_check
          %p289 = pneg %p102
        $region46: #{efficientnet_feature_extractor_forward.2} parent=39 // pred_check_branch
          %291 = sbr.rel (%p289) target = $region48
        $region47: #{efficientnet_feature_extractor_forward.2} parent=39 // pred_region
          %292 = dma.done [#allocation6], 16
        $region48: #{efficientnet_feature_extractor_forward.2} parent=39 // pred_fallthru
          _
        %s293 = sand.u32 %s18, 1
        %s294 = scalar_lea.sflag [#allocation4], %s293
        %s295 = sand.u32 %s115, 1
        %s296 = smul.addr %s295, 448
        %s297 = scalar_lea.vmem [#allocation7], %s296
        // Predicated region
        $region49: #{efficientnet_feature_extractor_forward.2} parent=39 // pred_check
          %p298 = pneg %p128
        $region50: #{efficientnet_feature_extractor_forward.2} parent=39 // pred_check_branch
          %300 = sbr.rel (%p298) target = $region52
        $region51: #{efficientnet_feature_extractor_forward.2} parent=39 // pred_region
          %301 = dma.done %s294, 7168
        $region52: #{efficientnet_feature_extractor_forward.2} parent=39 // pred_fallthru
          _
        %s302 = sand.u32 %s18, 1
        %s303 = scalar_lea.sflag [#allocation4], %s302
        %s304 = sand.u32 %s141, 1
        %s305 = smul.addr %s304, 7
        %s306 = scalar_lea.vmem [#allocation8], %s305
        // Predicated region
        $region53: #{efficientnet_feature_extractor_forward.2} parent=39 // pred_check
          %p307 = pneg %p154
        $region54: #{efficientnet_feature_extractor_forward.2} parent=39 // pred_check_branch
          %309 = sbr.rel (%p307) target = $region56
        $region55: #{efficientnet_feature_extractor_forward.2} parent=39 // pred_region
          %310 = dma.done %s303, 112
        $region56: #{efficientnet_feature_extractor_forward.2} parent=39 // pred_fallthru
          _
        %s311 = smul.u32 8, %s25
        %p312 = scmp.lt.s32.totalorder %s23, 1
        %s313 = scalar_select %p312, %s23, 1
        %p314 = scmp.lt.s32.totalorder %s311, 7
        %s315 = scalar_select %p314, %s311, 7
        %s316 = smul.addr %s313, 8
        %s317 = sadd.s32 %s315, %s316
        %s318 = smul.addr %s317, 4
        %s319 = scalar_lea.vmem %s0, %s318
        %p320 = pneg %p60
        %p321 = pneg %p57
        %p322 = pneg %p81
        %p323 = pneg %p78
        %p324 = pneg %p102
        %p325 = pneg %p99
        %s326 = sand.u32 %s18, 1
        %s327 = scalar_lea.sflag [#allocation4], %s326
        %s328 = sand.u32 %s115, 1
        %s329 = smul.addr %s328, 448
        %s330 = scalar_lea.vmem [#allocation7], %s329
        %p331 = pneg %p128
        %p332 = pneg %p125
        %s333 = sand.u32 %s18, 1
        %s334 = scalar_lea.sflag [#allocation4], %s333
        %s335 = sand.u32 %s141, 1
        %s336 = smul.addr %s335, 7
        %s337 = scalar_lea.vmem [#allocation8], %s336
        %p338 = pneg %p154
        %p339 = pneg %p151
        %p340 = pneg %p182
        %p341 = pneg %p179
        %s342 = smul.u32 7, %s24
        %p343 = scmp.lt.s32.totalorder %s23, 1
        %s344 = scalar_select %p343, %s23, 1
        %p345 = scmp.lt.s32.totalorder %s342, 13
        %s346 = scalar_select %p345, %s342, 13
        %s347 = smul.addr %s344, 14
        %s348 = sadd.s32 %s346, %s347
        %s349 = scalar_lea.vmem %s5, %s348
        %s350 = smul.u32 8, %s25
        %p351 = scmp.lt.s32.totalorder %s23, 1
        %s352 = scalar_select %p351, %s23, 1
        %p353 = scmp.lt.s32.totalorder %s350, 7
        %s354 = scalar_select %p353, %s350, 7
        %s355 = smul.addr %s352, 8
        %s356 = sadd.s32 %s354, %s355
        %s357 = smul.addr %s356, 4
        %s358 = scalar_lea.vmem %s0, %s357
        %s359 = smul.u32 8, %s25
        %s360 = smul.u32 7, %s24
        %s361 = smul.u32 7, %s24
        %s362 = smul.u32 7, %s24
        %p363 = scmp.lt.s32.totalorder %s23, 1
        %s364 = scalar_select %p363, %s23, 1
        %p365 = scmp.lt.s32.totalorder %s362, 13
        %s366 = scalar_select %p365, %s362, 13
        %s367 = smul.addr %s364, 14
        %s368 = sadd.s32 %s366, %s367
        %s369 = scalar_lea.vmem %s5, %s368
        %s370 = smul.u32 7, %s24
        %p372 = scmp.eq.s32.totalorder %s25, 0
        // Predicated region
        $region57: #{efficientnet_feature_extractor_forward.2} parent=39 // pred_check
          %p373 = pneg %p372
        $region58: #{efficientnet_feature_extractor_forward.2} parent=39 // pred_check_branch
          %375 = sbr.rel (%p373) target = $region60
        $region59: #{efficientnet_feature_extractor_forward.2} parent=39 // pred_region
          %v376 = vlaneseq
          %vm377 = vcmp.ge.s32.totalorder %v376, 0
          %vm378 = vcmp.lt.s32.totalorder %v376, 896
          %vm379 = vmand %vm377, %vm378
          %380 = vst.msk [vmem:[#allocation2] sm:$0x7f] %vm379, 0.0
        $region60: #{efficientnet_feature_extractor_forward.2} parent=39 // pred_fallthru
          _
        %v381 = vld [vmem:[%s358] sm:$0xf]
        %v382 = vld [vmem:[%s358 + $0x4] sm:$0xf]
        %v383 = vld [vmem:[%s358 + $0x8] sm:$0xf]
        %v384 = vld [vmem:[%s358 + $0xc] sm:$0xf]
        %v385 = vld [vmem:[%s358 + $0x10] sm:$0xf]
        %v386 = vld [vmem:[%s358 + $0x14] sm:$0xf]
        %v387 = vld [vmem:[%s358 + $0x18] sm:$0xf]
        %v388 = vld [vmem:[%s358 + $0x1c] sm:$0xf]
        %v389 = vld [vmem:[#allocation3] sm:$0xf]
        %v390 = vld [vmem:[#allocation3 + $0x4] sm:$0xf]
        %v391 = vld [vmem:[#allocation3 + $0x8] sm:$0xf]
        %v392 = vld [vmem:[#allocation3 + $0xc] sm:$0xf]
        %v393 = vld [vmem:[#allocation5] sm:$0x1]
        %v395 = vlaneseq
        %v396 = vshrl.u32 %v395, 7
        %v397 = vsub.s32 0, %v396
        %v398 = vrot.slane %v393, %v397
        %v408 = vunpack.c.l.b16 %v381
        %v409 = vunpack.c.l.b16 %v382
        %v410 = vunpack.c.l.b16 %v383
        %v411 = vunpack.c.l.b16 %v384
        %v412 = vunpack.c.l.b16 %v385
        %v413 = vunpack.c.l.b16 %v386
        %v414 = vunpack.c.l.b16 %v387
        %v415 = vunpack.c.l.b16 %v388
        %v416 = vpack.c.b16 %v409, %v408
        %v417 = vpack.c.b16 %v411, %v410
        %v418 = vpack.c.b16 %v413, %v412
        %v419 = vpack.c.b16 %v415, %v414
        %v424 = vunpack.c.l.b16 %v389
        %v425 = vunpack.c.l.b16 %v390
        %v426 = vunpack.c.l.b16 %v391
        %v427 = vunpack.c.l.b16 %v392
        %v428 = vpack.c.b16 %v425, %v424
        %v429 = vpack.c.b16 %v427, %v426
        %vm432 = vcmask 261120
        %v434 = vsel %vm432, %v416, 0
        %v437 = vsel %vm432, %v417, 0
        %v440 = vsel %vm432, %v418, 0
        %v443 = vsel %vm432, %v419, 0
        %445 = vmatprep.subr.bf16.mxu0 0
        %446 = vmatpush1.bf16.msra.mxu0 %v428
        %447 = vmatprep.subr.bf16.mxu0 0
        %448 = vmatpush1.bf16.msra.mxu0 %v429
        %449 = vmatprep.subr.bf16.mxu0 0
        %450 = vmatpush1.bf16.msra.mxu0 0
        %451 = vmatprep.subr.bf16.mxu0 0
        %452 = vmatpush1.bf16.msra.mxu0 0
        %453 = vmatprep.subr.bf16.mxu0 0
        %454 = vmatpush1.bf16.msra.mxu0 0
        %455 = vmatprep.subr.bf16.mxu0 0
        %456 = vmatpush1.bf16.msra.mxu0 0
        %457 = vmatprep.subr.bf16.mxu0 0
        %458 = vmatpush1.bf16.msra.mxu0 0
        %459 = vmatprep.subr.bf16.mxu0 0
        %460 = vmatpush1.bf16.msra.mxu0 0
        %461 = vmatprep.subr.bf16.mxu0 0
        %462 = vmatpush1.bf16.msra.mxu0 0
        %463 = vmatprep.subr.bf16.mxu0 0
        %464 = vmatpush1.bf16.msra.mxu0 0
        %465 = vmatprep.subr.bf16.mxu0 0
        %466 = vmatpush1.bf16.msra.mxu0 0
        %467 = vmatprep.subr.bf16.mxu0 0
        %468 = vmatpush1.bf16.msra.mxu0 0
        %469 = vmatprep.subr.bf16.mxu0 0
        %470 = vmatpush1.bf16.msra.mxu0 0
        %471 = vmatprep.subr.bf16.mxu0 0
        %472 = vmatpush1.bf16.msra.mxu0 0
        %473 = vmatprep.subr.bf16.mxu0 0
        %474 = vmatpush1.bf16.msra.mxu0 0
        %475 = vmatprep.subr.bf16.mxu0 0
        %476 = vmatpush1.bf16.msra.mxu0 0
        %477 = vmatprep.mubr.bf16.mxu0 0
        %478 = vmatmul.mubr.bf16.gmra.mrb[0].mxu0 %v434
        %v479 = vpop.f32.mrb[0].mxu0
        %v480 = vadd.f32 %v398, %v479
        %v481 = vpop.f32.mrb[0].mxu0
        %v482 = vpop.f32.mrb[0].mxu0
        %v483 = vadd.f32 %v398, %v482
        %v484 = vpop.f32.mrb[0].mxu0
        %485 = vmatprep.mubr.bf16.mxu0 0
        %486 = vmatmul.mubr.bf16.gmra.mrb[0].mxu0 %v437
        %v487 = vpop.f32.mrb[0].mxu0
        %v488 = vadd.f32 %v398, %v487
        %v489 = vpop.f32.mrb[0].mxu0
        %v490 = vpop.f32.mrb[0].mxu0
        %v491 = vadd.f32 %v398, %v490
        %v492 = vpop.f32.mrb[0].mxu0
        %493 = vmatprep.mubr.bf16.mxu0 0
        %494 = vmatmul.mubr.bf16.gmra.mrb[0].mxu0 %v440
        %v495 = vpop.f32.mrb[0].mxu0
        %v496 = vadd.f32 %v398, %v495
        %v497 = vpop.f32.mrb[0].mxu0
        %v498 = vpop.f32.mrb[0].mxu0
        %v499 = vadd.f32 %v398, %v498
        %v500 = vpop.f32.mrb[0].mxu0
        %501 = vmatprep.mubr.bf16.mxu0 0
        %502 = vmatmul.mubr.bf16.gmra.mrb[0].mxu0 %v443
        %v503 = vpop.f32.mrb[0].mxu0
        %v504 = vadd.f32 %v398, %v503
        %v505 = vpop.f32.mrb[0].mxu0
        %v506 = vpop.f32.mrb[0].mxu0
        %v507 = vadd.f32 %v398, %v506
        %v508 = vpop.f32.mrb[0].mxu0
        %509 = vdwg.mxu0
        %v510 = vxor.u32 %v480, 2147483648
        %v511 = vxor.u32 %v483, 2147483648
        %v512 = vxor.u32 %v488, 2147483648
        %v513 = vxor.u32 %v491, 2147483648
        %v514 = vxor.u32 %v496, 2147483648
        %v515 = vxor.u32 %v499, 2147483648
        %v516 = vxor.u32 %v504, 2147483648
        %v517 = vxor.u32 %v507, 2147483648
        %v518 = vmul.f32 %v510, 1.442695
        %v519 = vpow.pop %v518
        %v520 = vmul.f32 %v511, 1.442695
        %v521 = vpow.pop %v520
        %v522 = vmul.f32 %v512, 1.442695
        %v523 = vpow.pop %v522
        %v524 = vmul.f32 %v513, 1.442695
        %v525 = vpow.pop %v524
        %v526 = vmul.f32 %v514, 1.442695
        %v527 = vpow.pop %v526
        %v528 = vmul.f32 %v515, 1.442695
        %v529 = vpow.pop %v528
        %v530 = vmul.f32 %v516, 1.442695
        %v531 = vpow.pop %v530
        %v532 = vmul.f32 %v517, 1.442695
        %v533 = vpow.pop %v532
        %v534 = vadd.f32 %v519, 1.0
        %v535 = vadd.f32 %v521, 1.0
        %v536 = vadd.f32 %v523, 1.0
        %v537 = vadd.f32 %v525, 1.0
        %v538 = vadd.f32 %v527, 1.0
        %v539 = vadd.f32 %v529, 1.0
        %v540 = vadd.f32 %v531, 1.0
        %v541 = vadd.f32 %v533, 1.0
        %v542 = vrcp.pop %v534
        %v543 = vmul.f32 1.0, %v542
        %v544 = vrcp.pop %v535
        %v545 = vmul.f32 1.0, %v544
        %v546 = vrcp.pop %v536
        %v547 = vmul.f32 1.0, %v546
        %v548 = vrcp.pop %v537
        %v549 = vmul.f32 1.0, %v548
        %v550 = vrcp.pop %v538
        %v551 = vmul.f32 1.0, %v550
        %v552 = vrcp.pop %v539
        %v553 = vmul.f32 1.0, %v552
        %v554 = vrcp.pop %v540
        %v555 = vmul.f32 1.0, %v554
        %v556 = vrcp.pop %v541
        %v557 = vmul.f32 1.0, %v556
        %v558 = vmul.f32 %v480, %v543
        %v559 = vmul.f32 %v483, %v545
        %v560 = vmul.f32 %v488, %v547
        %v561 = vmul.f32 %v491, %v549
        %v562 = vmul.f32 %v496, %v551
        %v563 = vmul.f32 %v499, %v553
        %v564 = vmul.f32 %v504, %v555
        %v565 = vmul.f32 %v507, %v557
        %v566 = vpack.c.bf16 %v559, %v558
        %v567 = vpack.c.bf16 %v561, %v560
        %v568 = vpack.c.bf16 %v563, %v562
        %v569 = vpack.c.bf16 %v565, %v564
        %v570 = vld [vmem:[%s297] sm:$0xff]
        %v571 = vld [vmem:[%s297 + $0x8] sm:$0xff]
        %v572 = vld [vmem:[%s297 + $0x10] sm:$0xff]
        %v573 = vld [vmem:[%s297 + $0x18] sm:$0xf]
        %v574 = vld [vmem:[%s297 + $0x1c] sm:$0xff]
        %v575 = vld [vmem:[%s297 + $0x24] sm:$0xff]
        %v576 = vld [vmem:[%s297 + $0x2c] sm:$0xff]
        %v577 = vld [vmem:[%s297 + $0x34] sm:$0xf]
        %v578 = vld [vmem:[%s297 + $0x38] sm:$0xff]
        %v579 = vld [vmem:[%s297 + $0x40] sm:$0xff]
        %v580 = vld [vmem:[%s297 + $0x48] sm:$0xff]
        %v581 = vld [vmem:[%s297 + $0x50] sm:$0xf]
        %v582 = vld [vmem:[%s297 + $0x54] sm:$0xff]
        %v583 = vld [vmem:[%s297 + $0x5c] sm:$0xff]
        %v584 = vld [vmem:[%s297 + $0x64] sm:$0xff]
        %v585 = vld [vmem:[%s297 + $0x6c] sm:$0xf]
        %v586 = vld [vmem:[%s297 + $0x70] sm:$0xff]
        %v587 = vld [vmem:[%s297 + $0x78] sm:$0xff]
        %v588 = vld [vmem:[%s297 + $0x80] sm:$0xff]
        %v589 = vld [vmem:[%s297 + $0x88] sm:$0xf]
        %v590 = vld [vmem:[%s297 + $0x8c] sm:$0xff]
        %v591 = vld [vmem:[%s297 + $0x94] sm:$0xff]
        %v592 = vld [vmem:[%s297 + $0x9c] sm:$0xff]
        %v593 = vld [vmem:[%s297 + $0xa4] sm:$0xf]
        %v594 = vld [vmem:[%s297 + $0xa8] sm:$0xff]
        %v595 = vld [vmem:[%s297 + $0xb0] sm:$0xff]
        %v596 = vld [vmem:[%s297 + $0xb8] sm:$0xff]
        %v597 = vld [vmem:[%s297 + $0xc0] sm:$0xf]
        %v598 = vld [vmem:[%s297 + $0xc4] sm:$0xff]
        %v599 = vld [vmem:[%s297 + $0xcc] sm:$0xff]
        %v600 = vld [vmem:[%s297 + $0xd4] sm:$0xff]
        %v601 = vld [vmem:[%s297 + $0xdc] sm:$0xf]
        %v602 = vld [vmem:[%s297 + $0xe0] sm:$0xff]
        %v603 = vld [vmem:[%s297 + $0xe8] sm:$0xff]
        %v604 = vld [vmem:[%s297 + $0xf0] sm:$0xff]
        %v605 = vld [vmem:[%s297 + $0xf8] sm:$0xf]
        %v606 = vld [vmem:[%s297 + $0xfc] sm:$0xff]
        %v607 = vld [vmem:[%s297 + $0x104] sm:$0xff]
        %v608 = vld [vmem:[%s297 + $0x10c] sm:$0xff]
        %v609 = vld [vmem:[%s297 + $0x114] sm:$0xf]
        %v610 = vld [vmem:[%s297 + $0x118] sm:$0xff]
        %v611 = vld [vmem:[%s297 + $0x120] sm:$0xff]
        %v612 = vld [vmem:[%s297 + $0x128] sm:$0xff]
        %v613 = vld [vmem:[%s297 + $0x130] sm:$0xf]
        %v614 = vld [vmem:[%s297 + $0x134] sm:$0xff]
        %v615 = vld [vmem:[%s297 + $0x13c] sm:$0xff]
        %v616 = vld [vmem:[%s297 + $0x144] sm:$0xff]
        %v617 = vld [vmem:[%s297 + $0x14c] sm:$0xf]
        %v618 = vld [vmem:[%s297 + $0x150] sm:$0xff]
        %v619 = vld [vmem:[%s297 + $0x158] sm:$0xff]
        %v620 = vld [vmem:[%s297 + $0x160] sm:$0xff]
        %v621 = vld [vmem:[%s297 + $0x168] sm:$0xf]
        %v622 = vld [vmem:[%s297 + $0x16c] sm:$0xff]
        %v623 = vld [vmem:[%s297 + $0x174] sm:$0xff]
        %v624 = vld [vmem:[%s297 + $0x17c] sm:$0xff]
        %v625 = vld [vmem:[%s297 + $0x184] sm:$0xf]
        %v626 = vld [vmem:[%s297 + $0x188] sm:$0xff]
        %v627 = vld [vmem:[%s297 + $0x190] sm:$0xff]
        %v628 = vld [vmem:[%s297 + $0x198] sm:$0xff]
        %v629 = vld [vmem:[%s297 + $0x1a0] sm:$0xf]
        %v630 = vld [vmem:[%s297 + $0x1a4] sm:$0xff]
        %v631 = vld [vmem:[%s297 + $0x1ac] sm:$0xff]
        %v632 = vld [vmem:[%s297 + $0x1b4] sm:$0xff]
        %v633 = vld [vmem:[%s297 + $0x1bc] sm:$0xf]
        %v634 = vld [vmem:[%s306] sm:$0xff]
        %v636 = vlaneseq
        %v637 = vshrl.u32 %v636, 7
        %v638 = vsub.s32 0, %v637
        %v639 = vrot.slane %v634, %v638
        %v640 = vlaneseq
        %v641 = vshrl.u32 %v640, 7
        %v642 = vsub.s32 1, %v641
        %v643 = vrot.slane %v634, %v642
        %v644 = vlaneseq
        %v645 = vshrl.u32 %v644, 7
        %v646 = vsub.s32 2, %v645
        %v647 = vrot.slane %v634, %v646
        %v648 = vlaneseq
        %v649 = vshrl.u32 %v648, 7
        %v650 = vsub.s32 3, %v649
        %v651 = vrot.slane %v634, %v650
        %v652 = vlaneseq
        %v653 = vshrl.u32 %v652, 7
        %v654 = vsub.s32 4, %v653
        %v655 = vrot.slane %v634, %v654
        %v656 = vlaneseq
        %v657 = vshrl.u32 %v656, 7
        %v658 = vsub.s32 5, %v657
        %v659 = vrot.slane %v634, %v658
        %v660 = vlaneseq
        %v661 = vshrl.u32 %v660, 7
        %v662 = vsub.s32 6, %v661
        %v663 = vrot.slane %v634, %v662
        %v735 = vunpack.c.l.b16 %v570
        %v736 = vunpack.c.h.b16 %v570
        %v737 = vunpack.c.l.b16 %v571
        %v738 = vunpack.c.h.b16 %v571
        %v739 = vunpack.c.l.b16 %v572
        %v740 = vunpack.c.h.b16 %v572
        %v741 = vunpack.c.l.b16 %v573
        %v742 = vunpack.c.l.b16 %v574
        %v743 = vunpack.c.h.b16 %v574
        %v744 = vunpack.c.l.b16 %v575
        %v745 = vunpack.c.h.b16 %v575
        %v746 = vunpack.c.l.b16 %v576
        %v747 = vunpack.c.h.b16 %v576
        %v748 = vunpack.c.l.b16 %v577
        %v749 = vunpack.c.l.b16 %v578
        %v750 = vunpack.c.h.b16 %v578
        %v751 = vunpack.c.l.b16 %v579
        %v752 = vunpack.c.h.b16 %v579
        %v753 = vunpack.c.l.b16 %v580
        %v754 = vunpack.c.h.b16 %v580
        %v755 = vunpack.c.l.b16 %v581
        %v756 = vunpack.c.l.b16 %v582
        %v757 = vunpack.c.h.b16 %v582
        %v758 = vunpack.c.l.b16 %v583
        %v759 = vunpack.c.h.b16 %v583
        %v760 = vunpack.c.l.b16 %v584
        %v761 = vunpack.c.h.b16 %v584
        %v762 = vunpack.c.l.b16 %v585
        %v763 = vunpack.c.l.b16 %v586
        %v764 = vunpack.c.h.b16 %v586
        %v765 = vunpack.c.l.b16 %v587
        %v766 = vunpack.c.h.b16 %v587
        %v767 = vunpack.c.l.b16 %v588
        %v768 = vunpack.c.h.b16 %v588
        %v769 = vunpack.c.l.b16 %v589
        %v770 = vunpack.c.l.b16 %v590
        %v771 = vunpack.c.h.b16 %v590
        %v772 = vunpack.c.l.b16 %v591
        %v773 = vunpack.c.h.b16 %v591
        %v774 = vunpack.c.l.b16 %v592
        %v775 = vunpack.c.h.b16 %v592
        %v776 = vunpack.c.l.b16 %v593
        %v777 = vunpack.c.l.b16 %v594
        %v778 = vunpack.c.h.b16 %v594
        %v779 = vunpack.c.l.b16 %v595
        %v780 = vunpack.c.h.b16 %v595
        %v781 = vunpack.c.l.b16 %v596
        %v782 = vunpack.c.h.b16 %v596
        %v783 = vunpack.c.l.b16 %v597
        %v784 = vunpack.c.l.b16 %v598
        %v785 = vunpack.c.h.b16 %v598
        %v786 = vunpack.c.l.b16 %v599
        %v787 = vunpack.c.h.b16 %v599
        %v788 = vunpack.c.l.b16 %v600
        %v789 = vunpack.c.h.b16 %v600
        %v790 = vunpack.c.l.b16 %v601
        %v791 = vunpack.c.l.b16 %v602
        %v792 = vunpack.c.h.b16 %v602
        %v793 = vunpack.c.l.b16 %v603
        %v794 = vunpack.c.h.b16 %v603
        %v795 = vunpack.c.l.b16 %v604
        %v796 = vunpack.c.h.b16 %v604
        %v797 = vunpack.c.l.b16 %v605
        %v798 = vunpack.c.l.b16 %v606
        %v799 = vunpack.c.h.b16 %v606
        %v800 = vunpack.c.l.b16 %v607
        %v801 = vunpack.c.h.b16 %v607
        %v802 = vunpack.c.l.b16 %v608
        %v803 = vunpack.c.h.b16 %v608
        %v804 = vunpack.c.l.b16 %v609
        %v805 = vunpack.c.l.b16 %v610
        %v806 = vunpack.c.h.b16 %v610
        %v807 = vunpack.c.l.b16 %v611
        %v808 = vunpack.c.h.b16 %v611
        %v809 = vunpack.c.l.b16 %v612
        %v810 = vunpack.c.h.b16 %v612
        %v811 = vunpack.c.l.b16 %v613
        %v812 = vunpack.c.l.b16 %v614
        %v813 = vunpack.c.h.b16 %v614
        %v814 = vunpack.c.l.b16 %v615
        %v815 = vunpack.c.h.b16 %v615
        %v816 = vunpack.c.l.b16 %v616
        %v817 = vunpack.c.h.b16 %v616
        %v818 = vunpack.c.l.b16 %v617
        %v819 = vunpack.c.l.b16 %v618
        %v820 = vunpack.c.h.b16 %v618
        %v821 = vunpack.c.l.b16 %v619
        %v822 = vunpack.c.h.b16 %v619
        %v823 = vunpack.c.l.b16 %v620
        %v824 = vunpack.c.h.b16 %v620
        %v825 = vunpack.c.l.b16 %v621
        %v826 = vunpack.c.l.b16 %v622
        %v827 = vunpack.c.h.b16 %v622
        %v828 = vunpack.c.l.b16 %v623
        %v829 = vunpack.c.h.b16 %v623
        %v830 = vunpack.c.l.b16 %v624
        %v831 = vunpack.c.h.b16 %v624
        %v832 = vunpack.c.l.b16 %v625
        %v833 = vunpack.c.l.b16 %v626
        %v834 = vunpack.c.h.b16 %v626
        %v835 = vunpack.c.l.b16 %v627
        %v836 = vunpack.c.h.b16 %v627
        %v837 = vunpack.c.l.b16 %v628
        %v838 = vunpack.c.h.b16 %v628
        %v839 = vunpack.c.l.b16 %v629
        %v840 = vunpack.c.l.b16 %v630
        %v841 = vunpack.c.h.b16 %v630
        %v842 = vunpack.c.l.b16 %v631
        %v843 = vunpack.c.h.b16 %v631
        %v844 = vunpack.c.l.b16 %v632
        %v845 = vunpack.c.h.b16 %v632
        %v846 = vunpack.c.l.b16 %v633
        %v847 = vpack.c.b16 %v742, %v735
        %v848 = vpack.c.b16 %v743, %v736
        %v849 = vpack.c.b16 %v744, %v737
        %v850 = vpack.c.b16 %v745, %v738
        %v851 = vpack.c.b16 %v746, %v739
        %v852 = vpack.c.b16 %v747, %v740
        %v853 = vpack.c.b16 %v748, %v741
        %v854 = vpack.c.b16 %v756, %v749
        %v855 = vpack.c.b16 %v757, %v750
        %v856 = vpack.c.b16 %v758, %v751
        %v857 = vpack.c.b16 %v759, %v752
        %v858 = vpack.c.b16 %v760, %v753
        %v859 = vpack.c.b16 %v761, %v754
        %v860 = vpack.c.b16 %v762, %v755
        %v861 = vpack.c.b16 %v770, %v763
        %v862 = vpack.c.b16 %v771, %v764
        %v863 = vpack.c.b16 %v772, %v765
        %v864 = vpack.c.b16 %v773, %v766
        %v865 = vpack.c.b16 %v774, %v767
        %v866 = vpack.c.b16 %v775, %v768
        %v867 = vpack.c.b16 %v776, %v769
        %v868 = vpack.c.b16 %v784, %v777
        %v869 = vpack.c.b16 %v785, %v778
        %v870 = vpack.c.b16 %v786, %v779
        %v871 = vpack.c.b16 %v787, %v780
        %v872 = vpack.c.b16 %v788, %v781
        %v873 = vpack.c.b16 %v789, %v782
        %v874 = vpack.c.b16 %v790, %v783
        %v875 = vpack.c.b16 %v798, %v791
        %v876 = vpack.c.b16 %v799, %v792
        %v877 = vpack.c.b16 %v800, %v793
        %v878 = vpack.c.b16 %v801, %v794
        %v879 = vpack.c.b16 %v802, %v795
        %v880 = vpack.c.b16 %v803, %v796
        %v881 = vpack.c.b16 %v804, %v797
        %v882 = vpack.c.b16 %v812, %v805
        %v883 = vpack.c.b16 %v813, %v806
        %v884 = vpack.c.b16 %v814, %v807
        %v885 = vpack.c.b16 %v815, %v808
        %v886 = vpack.c.b16 %v816, %v809
        %v887 = vpack.c.b16 %v817, %v810
        %v888 = vpack.c.b16 %v818, %v811
        %v889 = vpack.c.b16 %v826, %v819
        %v890 = vpack.c.b16 %v827, %v820
        %v891 = vpack.c.b16 %v828, %v821
        %v892 = vpack.c.b16 %v829, %v822
        %v893 = vpack.c.b16 %v830, %v823
        %v894 = vpack.c.b16 %v831, %v824
        %v895 = vpack.c.b16 %v832, %v825
        %v896 = vpack.c.b16 %v840, %v833
        %v897 = vpack.c.b16 %v841, %v834
        %v898 = vpack.c.b16 %v842, %v835
        %v899 = vpack.c.b16 %v843, %v836
        %v900 = vpack.c.b16 %v844, %v837
        %v901 = vpack.c.b16 %v845, %v838
        %v902 = vpack.c.b16 %v846, %v839
        %959 = vmatprep.subr.bf16.mxu0 %v848
        %960 = vmatpush1.bf16.msra.mxu0 %v847
        %961 = vmatprep.subr.bf16.mxu0 %v855
        %962 = vmatpush1.bf16.msra.mxu0 %v854
        %963 = vmatprep.subr.bf16.mxu0 %v862
        %964 = vmatpush1.bf16.msra.mxu0 %v861
        %965 = vmatprep.subr.bf16.mxu0 %v869
        %966 = vmatpush1.bf16.msra.mxu0 %v868
        %967 = vmatprep.subr.bf16.mxu0 %v876
        %968 = vmatpush1.bf16.msra.mxu0 %v875
        %969 = vmatprep.subr.bf16.mxu0 %v883
        %970 = vmatpush1.bf16.msra.mxu0 %v882
        %971 = vmatprep.subr.bf16.mxu0 %v890
        %972 = vmatpush1.bf16.msra.mxu0 %v889
        %973 = vmatprep.subr.bf16.mxu0 %v897
        %974 = vmatpush1.bf16.msra.mxu0 %v896
        %975 = vmatprep.subr.bf16.mxu0 0
        %976 = vmatpush1.bf16.msra.mxu0 0
        %977 = vmatprep.subr.bf16.mxu0 0
        %978 = vmatpush1.bf16.msra.mxu0 0
        %979 = vmatprep.subr.bf16.mxu0 0
        %980 = vmatpush1.bf16.msra.mxu0 0
        %981 = vmatprep.subr.bf16.mxu0 0
        %982 = vmatpush1.bf16.msra.mxu0 0
        %983 = vmatprep.subr.bf16.mxu0 0
        %984 = vmatpush1.bf16.msra.mxu0 0
        %985 = vmatprep.subr.bf16.mxu0 0
        %986 = vmatpush1.bf16.msra.mxu0 0
        %987 = vmatprep.subr.bf16.mxu0 0
        %988 = vmatpush1.bf16.msra.mxu0 0
        %989 = vmatprep.subr.bf16.mxu0 0
        %990 = vmatpush1.bf16.msra.mxu0 0
        %991 = vmatprep.mubr.bf16.mxu0 0
        %992 = vmatmul.mubr.bf16.gmra.mrb[0].mxu0 %v566
        %v993 = vpop.f32.mrb[0].mxu0
        %v994 = vadd.f32 %v639, %v993
        %v995 = vpop.f32.mrb[0].mxu0
        %v996 = vadd.f32 %v643, %v995
        %v997 = vpop.f32.mrb[0].mxu0
        %v998 = vadd.f32 %v639, %v997
        %v999 = vpop.f32.mrb[0].mxu0
        %v1000 = vadd.f32 %v643, %v999
        %1001 = vmatprep.mubr.bf16.mxu0 0
        %1002 = vmatmul.mubr.bf16.gmra.mrb[0].mxu0 %v567
        %v1003 = vpop.f32.mrb[0].mxu0
        %v1004 = vadd.f32 %v639, %v1003
        %v1005 = vpop.f32.mrb[0].mxu0
        %v1006 = vadd.f32 %v643, %v1005
        %v1007 = vpop.f32.mrb[0].mxu0
        %v1008 = vadd.f32 %v639, %v1007
        %v1009 = vpop.f32.mrb[0].mxu0
        %v1010 = vadd.f32 %v643, %v1009
        %1011 = vmatprep.mubr.bf16.mxu0 0
        %1012 = vmatmul.mubr.bf16.gmra.mrb[0].mxu0 %v568
        %v1013 = vpop.f32.mrb[0].mxu0
        %v1014 = vadd.f32 %v639, %v1013
        %v1015 = vpop.f32.mrb[0].mxu0
        %v1016 = vadd.f32 %v643, %v1015
        %v1017 = vpop.f32.mrb[0].mxu0
        %v1018 = vadd.f32 %v639, %v1017
        %v1019 = vpop.f32.mrb[0].mxu0
        %v1020 = vadd.f32 %v643, %v1019
        %1021 = vmatprep.mubr.bf16.mxu0 0
        %1022 = vmatmul.mubr.bf16.gmra.mrb[0].mxu0 %v569
        %v1023 = vpop.f32.mrb[0].mxu0
        %v1024 = vadd.f32 %v639, %v1023
        %v1025 = vpop.f32.mrb[0].mxu0
        %v1026 = vadd.f32 %v643, %v1025
        %v1027 = vpop.f32.mrb[0].mxu0
        %v1028 = vadd.f32 %v639, %v1027
        %v1029 = vpop.f32.mrb[0].mxu0
        %v1030 = vadd.f32 %v643, %v1029
        %1031 = vdwg.mxu0
        %1032 = vmatprep.subr.bf16.mxu0 %v850
        %1033 = vmatpush1.bf16.msra.mxu0 %v849
        %1034 = vmatprep.subr.bf16.mxu0 %v857
        %1035 = vmatpush1.bf16.msra.mxu0 %v856
        %1036 = vmatprep.subr.bf16.mxu0 %v864
        %1037 = vmatpush1.bf16.msra.mxu0 %v863
        %1038 = vmatprep.subr.bf16.mxu0 %v871
        %1039 = vmatpush1.bf16.msra.mxu0 %v870
        %1040 = vmatprep.subr.bf16.mxu0 %v878
        %1041 = vmatpush1.bf16.msra.mxu0 %v877
        %1042 = vmatprep.subr.bf16.mxu0 %v885
        %1043 = vmatpush1.bf16.msra.mxu0 %v884
        %1044 = vmatprep.subr.bf16.mxu0 %v892
        %1045 = vmatpush1.bf16.msra.mxu0 %v891
        %1046 = vmatprep.subr.bf16.mxu0 %v899
        %1047 = vmatpush1.bf16.msra.mxu0 %v898
        %1048 = vmatprep.subr.bf16.mxu0 0
        %1049 = vmatpush1.bf16.msra.mxu0 0
        %1050 = vmatprep.subr.bf16.mxu0 0
        %1051 = vmatpush1.bf16.msra.mxu0 0
        %1052 = vmatprep.subr.bf16.mxu0 0
        %1053 = vmatpush1.bf16.msra.mxu0 0
        %1054 = vmatprep.subr.bf16.mxu0 0
        %1055 = vmatpush1.bf16.msra.mxu0 0
        %1056 = vmatprep.subr.bf16.mxu0 0
        %1057 = vmatpush1.bf16.msra.mxu0 0
        %1058 = vmatprep.subr.bf16.mxu0 0
        %1059 = vmatpush1.bf16.msra.mxu0 0
        %1060 = vmatprep.subr.bf16.mxu0 0
        %1061 = vmatpush1.bf16.msra.mxu0 0
        %1062 = vmatprep.subr.bf16.mxu0 0
        %1063 = vmatpush1.bf16.msra.mxu0 0
        %1064 = vmatprep.mubr.bf16.mxu0 0
        %1065 = vmatmul.mubr.bf16.gmra.mrb[0].mxu0 %v566
        %v1066 = vpop.f32.mrb[0].mxu0
        %v1067 = vadd.f32 %v647, %v1066
        %v1068 = vpop.f32.mrb[0].mxu0
        %v1069 = vadd.f32 %v651, %v1068
        %v1070 = vpop.f32.mrb[0].mxu0
        %v1071 = vadd.f32 %v647, %v1070
        %v1072 = vpop.f32.mrb[0].mxu0
        %v1073 = vadd.f32 %v651, %v1072
        %1074 = vmatprep.mubr.bf16.mxu0 0
        %1075 = vmatmul.mubr.bf16.gmra.mrb[0].mxu0 %v567
        %v1076 = vpop.f32.mrb[0].mxu0
        %v1077 = vadd.f32 %v647, %v1076
        %v1078 = vpop.f32.mrb[0].mxu0
        %v1079 = vadd.f32 %v651, %v1078
        %v1080 = vpop.f32.mrb[0].mxu0
        %v1081 = vadd.f32 %v647, %v1080
        %v1082 = vpop.f32.mrb[0].mxu0
        %v1083 = vadd.f32 %v651, %v1082
        %1084 = vmatprep.mubr.bf16.mxu0 0
        %1085 = vmatmul.mubr.bf16.gmra.mrb[0].mxu0 %v568
        %v1086 = vpop.f32.mrb[0].mxu0
        %v1087 = vadd.f32 %v647, %v1086
        %v1088 = vpop.f32.mrb[0].mxu0
        %v1089 = vadd.f32 %v651, %v1088
        %v1090 = vpop.f32.mrb[0].mxu0
        %v1091 = vadd.f32 %v647, %v1090
        %v1092 = vpop.f32.mrb[0].mxu0
        %v1093 = vadd.f32 %v651, %v1092
        %1094 = vmatprep.mubr.bf16.mxu0 0
        %1095 = vmatmul.mubr.bf16.gmra.mrb[0].mxu0 %v569
        %v1096 = vpop.f32.mrb[0].mxu0
        %v1097 = vadd.f32 %v647, %v1096
        %v1098 = vpop.f32.mrb[0].mxu0
        %v1099 = vadd.f32 %v651, %v1098
        %v1100 = vpop.f32.mrb[0].mxu0
        %v1101 = vadd.f32 %v647, %v1100
        %v1102 = vpop.f32.mrb[0].mxu0
        %v1103 = vadd.f32 %v651, %v1102
        %1104 = vdwg.mxu0
        %1105 = vmatprep.subr.bf16.mxu0 %v852
        %1106 = vmatpush1.bf16.msra.mxu0 %v851
        %1107 = vmatprep.subr.bf16.mxu0 %v859
        %1108 = vmatpush1.bf16.msra.mxu0 %v858
        %1109 = vmatprep.subr.bf16.mxu0 %v866
        %1110 = vmatpush1.bf16.msra.mxu0 %v865
        %1111 = vmatprep.subr.bf16.mxu0 %v873
        %1112 = vmatpush1.bf16.msra.mxu0 %v872
        %1113 = vmatprep.subr.bf16.mxu0 %v880
        %1114 = vmatpush1.bf16.msra.mxu0 %v879
        %1115 = vmatprep.subr.bf16.mxu0 %v887
        %1116 = vmatpush1.bf16.msra.mxu0 %v886
        %1117 = vmatprep.subr.bf16.mxu0 %v894
        %1118 = vmatpush1.bf16.msra.mxu0 %v893
        %1119 = vmatprep.subr.bf16.mxu0 %v901
        %1120 = vmatpush1.bf16.msra.mxu0 %v900
        %1121 = vmatprep.subr.bf16.mxu0 0
        %1122 = vmatpush1.bf16.msra.mxu0 0
        %1123 = vmatprep.subr.bf16.mxu0 0
        %1124 = vmatpush1.bf16.msra.mxu0 0
        %1125 = vmatprep.subr.bf16.mxu0 0
        %1126 = vmatpush1.bf16.msra.mxu0 0
        %1127 = vmatprep.subr.bf16.mxu0 0
        %1128 = vmatpush1.bf16.msra.mxu0 0
        %1129 = vmatprep.subr.bf16.mxu0 0
        %1130 = vmatpush1.bf16.msra.mxu0 0
        %1131 = vmatprep.subr.bf16.mxu0 0
        %1132 = vmatpush1.bf16.msra.mxu0 0
        %1133 = vmatprep.subr.bf16.mxu0 0
        %1134 = vmatpush1.bf16.msra.mxu0 0
        %1135 = vmatprep.subr.bf16.mxu0 0
        %1136 = vmatpush1.bf16.msra.mxu0 0
        %1137 = vmatprep.mubr.bf16.mxu0 0
        %1138 = vmatmul.mubr.bf16.gmra.mrb[0].mxu0 %v566
        %v1139 = vpop.f32.mrb[0].mxu0
        %v1140 = vadd.f32 %v655, %v1139
        %v1141 = vpop.f32.mrb[0].mxu0
        %v1142 = vadd.f32 %v659, %v1141
        %v1143 = vpop.f32.mrb[0].mxu0
        %v1144 = vadd.f32 %v655, %v1143
        %v1145 = vpop.f32.mrb[0].mxu0
        %v1146 = vadd.f32 %v659, %v1145
        %1147 = vmatprep.mubr.bf16.mxu0 0
        %1148 = vmatmul.mubr.bf16.gmra.mrb[0].mxu0 %v567
        %v1149 = vpop.f32.mrb[0].mxu0
        %v1150 = vadd.f32 %v655, %v1149
        %v1151 = vpop.f32.mrb[0].mxu0
        %v1152 = vadd.f32 %v659, %v1151
        %v1153 = vpop.f32.mrb[0].mxu0
        %v1154 = vadd.f32 %v655, %v1153
        %v1155 = vpop.f32.mrb[0].mxu0
        %v1156 = vadd.f32 %v659, %v1155
        %1157 = vmatprep.mubr.bf16.mxu0 0
        %1158 = vmatmul.mubr.bf16.gmra.mrb[0].mxu0 %v568
        %v1159 = vpop.f32.mrb[0].mxu0
        %v1160 = vadd.f32 %v655, %v1159
        %v1161 = vpop.f32.mrb[0].mxu0
        %v1162 = vadd.f32 %v659, %v1161
        %v1163 = vpop.f32.mrb[0].mxu0
        %v1164 = vadd.f32 %v655, %v1163
        %v1165 = vpop.f32.mrb[0].mxu0
        %v1166 = vadd.f32 %v659, %v1165
        %1167 = vmatprep.mubr.bf16.mxu0 0
        %1168 = vmatmul.mubr.bf16.gmra.mrb[0].mxu0 %v569
        %v1169 = vpop.f32.mrb[0].mxu0
        %v1170 = vadd.f32 %v655, %v1169
        %v1171 = vpop.f32.mrb[0].mxu0
        %v1172 = vadd.f32 %v659, %v1171
        %v1173 = vpop.f32.mrb[0].mxu0
        %v1174 = vadd.f32 %v655, %v1173
        %v1175 = vpop.f32.mrb[0].mxu0
        %v1176 = vadd.f32 %v659, %v1175
        %1177 = vdwg.mxu0
        %1178 = vmatprep.subr.bf16.mxu0 0
        %1179 = vmatpush1.bf16.msra.mxu0 %v853
        %1180 = vmatprep.subr.bf16.mxu0 0
        %1181 = vmatpush1.bf16.msra.mxu0 %v860
        %1182 = vmatprep.subr.bf16.mxu0 0
        %1183 = vmatpush1.bf16.msra.mxu0 %v867
        %1184 = vmatprep.subr.bf16.mxu0 0
        %1185 = vmatpush1.bf16.msra.mxu0 %v874
        %1186 = vmatprep.subr.bf16.mxu0 0
        %1187 = vmatpush1.bf16.msra.mxu0 %v881
        %1188 = vmatprep.subr.bf16.mxu0 0
        %1189 = vmatpush1.bf16.msra.mxu0 %v888
        %1190 = vmatprep.subr.bf16.mxu0 0
        %1191 = vmatpush1.bf16.msra.mxu0 %v895
        %1192 = vmatprep.subr.bf16.mxu0 0
        %1193 = vmatpush1.bf16.msra.mxu0 %v902
        %1194 = vmatprep.subr.bf16.mxu0 0
        %1195 = vmatpush1.bf16.msra.mxu0 0
        %1196 = vmatprep.subr.bf16.mxu0 0
        %1197 = vmatpush1.bf16.msra.mxu0 0
        %1198 = vmatprep.subr.bf16.mxu0 0
        %1199 = vmatpush1.bf16.msra.mxu0 0
        %1200 = vmatprep.subr.bf16.mxu0 0
        %1201 = vmatpush1.bf16.msra.mxu0 0
        %1202 = vmatprep.subr.bf16.mxu0 0
        %1203 = vmatpush1.bf16.msra.mxu0 0
        %1204 = vmatprep.subr.bf16.mxu0 0
        %1205 = vmatpush1.bf16.msra.mxu0 0
        %1206 = vmatprep.subr.bf16.mxu0 0
        %1207 = vmatpush1.bf16.msra.mxu0 0
        %1208 = vmatprep.subr.bf16.mxu0 0
        %1209 = vmatpush1.bf16.msra.mxu0 0
        %1210 = vmatprep.mubr.bf16.mxu0 0
        %1211 = vmatmul.mubr.bf16.gmra.mrb[0].mxu0 %v566
        %v1212 = vpop.f32.mrb[0].mxu0
        %v1213 = vadd.f32 %v663, %v1212
        %v1214 = vpop.f32.mrb[0].mxu0
        %v1215 = vpop.f32.mrb[0].mxu0
        %v1216 = vadd.f32 %v663, %v1215
        %v1217 = vpop.f32.mrb[0].mxu0
        %1218 = vmatprep.mubr.bf16.mxu0 0
        %1219 = vmatmul.mubr.bf16.gmra.mrb[0].mxu0 %v567
        %v1220 = vpop.f32.mrb[0].mxu0
        %v1221 = vadd.f32 %v663, %v1220
        %v1222 = vpop.f32.mrb[0].mxu0
        %v1223 = vpop.f32.mrb[0].mxu0
        %v1224 = vadd.f32 %v663, %v1223
        %v1225 = vpop.f32.mrb[0].mxu0
        %1226 = vmatprep.mubr.bf16.mxu0 0
        %1227 = vmatmul.mubr.bf16.gmra.mrb[0].mxu0 %v568
        %v1228 = vpop.f32.mrb[0].mxu0
        %v1229 = vadd.f32 %v663, %v1228
        %v1230 = vpop.f32.mrb[0].mxu0
        %v1231 = vpop.f32.mrb[0].mxu0
        %v1232 = vadd.f32 %v663, %v1231
        %v1233 = vpop.f32.mrb[0].mxu0
        %1234 = vmatprep.mubr.bf16.mxu0 0
        %1235 = vmatmul.mubr.bf16.gmra.mrb[0].mxu0 %v569
        %v1236 = vpop.f32.mrb[0].mxu0
        %v1237 = vadd.f32 %v663, %v1236
        %v1238 = vpop.f32.mrb[0].mxu0
        %v1239 = vpop.f32.mrb[0].mxu0
        %v1240 = vadd.f32 %v663, %v1239
        %v1241 = vpop.f32.mrb[0].mxu0
        %1242 = vdwg.mxu0
        %v1243 = vxor.u32 %v994, 2147483648
        %v1244 = vxor.u32 %v996, 2147483648
        %v1245 = vxor.u32 %v1067, 2147483648
        %v1246 = vxor.u32 %v1069, 2147483648
        %v1247 = vxor.u32 %v1140, 2147483648
        %v1248 = vxor.u32 %v1142, 2147483648
        %v1249 = vxor.u32 %v1213, 2147483648
        %v1250 = vxor.u32 %v998, 2147483648
        %v1251 = vxor.u32 %v1000, 2147483648
        %v1252 = vxor.u32 %v1071, 2147483648
        %v1253 = vxor.u32 %v1073, 2147483648
        %v1254 = vxor.u32 %v1144, 2147483648
        %v1255 = vxor.u32 %v1146, 2147483648
        %v1256 = vxor.u32 %v1216, 2147483648
        %v1257 = vxor.u32 %v1004, 2147483648
        %v1258 = vxor.u32 %v1006, 2147483648
        %v1259 = vxor.u32 %v1077, 2147483648
        %v1260 = vxor.u32 %v1079, 2147483648
        %v1261 = vxor.u32 %v1150, 2147483648
        %v1262 = vxor.u32 %v1152, 2147483648
        %v1263 = vxor.u32 %v1221, 2147483648
        %v1264 = vxor.u32 %v1008, 2147483648
        %v1265 = vxor.u32 %v1010, 2147483648
        %v1266 = vxor.u32 %v1081, 2147483648
        %v1267 = vxor.u32 %v1083, 2147483648
        %v1268 = vxor.u32 %v1154, 2147483648
        %v1269 = vxor.u32 %v1156, 2147483648
        %v1270 = vxor.u32 %v1224, 2147483648
        %v1271 = vxor.u32 %v1014, 2147483648
        %v1272 = vxor.u32 %v1016, 2147483648
        %v1273 = vxor.u32 %v1087, 2147483648
        %v1274 = vxor.u32 %v1089, 2147483648
        %v1275 = vxor.u32 %v1160, 2147483648
        %v1276 = vxor.u32 %v1162, 2147483648
        %v1277 = vxor.u32 %v1229, 2147483648
        %v1278 = vxor.u32 %v1018, 2147483648
        %v1279 = vxor.u32 %v1020, 2147483648
        %v1280 = vxor.u32 %v1091, 2147483648
        %v1281 = vxor.u32 %v1093, 2147483648
        %v1282 = vxor.u32 %v1164, 2147483648
        %v1283 = vxor.u32 %v1166, 2147483648
        %v1284 = vxor.u32 %v1232, 2147483648
        %v1285 = vxor.u32 %v1024, 2147483648
        %v1286 = vxor.u32 %v1026, 2147483648
        %v1287 = vxor.u32 %v1097, 2147483648
        %v1288 = vxor.u32 %v1099, 2147483648
        %v1289 = vxor.u32 %v1170, 2147483648
        %v1290 = vxor.u32 %v1172, 2147483648
        %v1291 = vxor.u32 %v1237, 2147483648
        %v1292 = vxor.u32 %v1028, 2147483648
        %v1293 = vxor.u32 %v1030, 2147483648
        %v1294 = vxor.u32 %v1101, 2147483648
        %v1295 = vxor.u32 %v1103, 2147483648
        %v1296 = vxor.u32 %v1174, 2147483648
        %v1297 = vxor.u32 %v1176, 2147483648
        %v1298 = vxor.u32 %v1240, 2147483648
        %v1299 = vmul.f32 %v1243, 1.442695
        %v1300 = vpow.pop %v1299
        %v1301 = vmul.f32 %v1244, 1.442695
        %v1302 = vpow.pop %v1301
        %v1303 = vmul.f32 %v1245, 1.442695
        %v1304 = vpow.pop %v1303
        %v1305 = vmul.f32 %v1246, 1.442695
        %v1306 = vpow.pop %v1305
        %v1307 = vmul.f32 %v1247, 1.442695
        %v1308 = vpow.pop %v1307
        %v1309 = vmul.f32 %v1248, 1.442695
        %v1310 = vpow.pop %v1309
        %v1311 = vmul.f32 %v1249, 1.442695
        %v1312 = vpow.pop %v1311
        %v1313 = vmul.f32 %v1250, 1.442695
        %v1314 = vpow.pop %v1313
        %v1315 = vmul.f32 %v1251, 1.442695
        %v1316 = vpow.pop %v1315
        %v1317 = vmul.f32 %v1252, 1.442695
        %v1318 = vpow.pop %v1317
        %v1319 = vmul.f32 %v1253, 1.442695
        %v1320 = vpow.pop %v1319
        %v1321 = vmul.f32 %v1254, 1.442695
        %v1322 = vpow.pop %v1321
        %v1323 = vmul.f32 %v1255, 1.442695
        %v1324 = vpow.pop %v1323
        %v1325 = vmul.f32 %v1256, 1.442695
        %v1326 = vpow.pop %v1325
        %v1327 = vmul.f32 %v1257, 1.442695
        %v1328 = vpow.pop %v1327
        %v1329 = vmul.f32 %v1258, 1.442695
        %v1330 = vpow.pop %v1329
        %v1331 = vmul.f32 %v1259, 1.442695
        %v1332 = vpow.pop %v1331
        %v1333 = vmul.f32 %v1260, 1.442695
        %v1334 = vpow.pop %v1333
        %v1335 = vmul.f32 %v1261, 1.442695
        %v1336 = vpow.pop %v1335
        %v1337 = vmul.f32 %v1262, 1.442695
        %v1338 = vpow.pop %v1337
        %v1339 = vmul.f32 %v1263, 1.442695
        %v1340 = vpow.pop %v1339
        %v1341 = vmul.f32 %v1264, 1.442695
        %v1342 = vpow.pop %v1341
        %v1343 = vmul.f32 %v1265, 1.442695
        %v1344 = vpow.pop %v1343
        %v1345 = vmul.f32 %v1266, 1.442695
        %v1346 = vpow.pop %v1345
        %v1347 = vmul.f32 %v1267, 1.442695
        %v1348 = vpow.pop %v1347
        %v1349 = vmul.f32 %v1268, 1.442695
        %v1350 = vpow.pop %v1349
        %v1351 = vmul.f32 %v1269, 1.442695
        %v1352 = vpow.pop %v1351
        %v1353 = vmul.f32 %v1270, 1.442695
        %v1354 = vpow.pop %v1353
        %v1355 = vmul.f32 %v1271, 1.442695
        %v1356 = vpow.pop %v1355
        %v1357 = vmul.f32 %v1272, 1.442695
        %v1358 = vpow.pop %v1357
        %v1359 = vmul.f32 %v1273, 1.442695
        %v1360 = vpow.pop %v1359
        %v1361 = vmul.f32 %v1274, 1.442695
        %v1362 = vpow.pop %v1361
        %v1363 = vmul.f32 %v1275, 1.442695
        %v1364 = vpow.pop %v1363
        %v1365 = vmul.f32 %v1276, 1.442695
        %v1366 = vpow.pop %v1365
        %v1367 = vmul.f32 %v1277, 1.442695
        %v1368 = vpow.pop %v1367
        %v1369 = vmul.f32 %v1278, 1.442695
        %v1370 = vpow.pop %v1369
        %v1371 = vmul.f32 %v1279, 1.442695
        %v1372 = vpow.pop %v1371
        %v1373 = vmul.f32 %v1280, 1.442695
        %v1374 = vpow.pop %v1373
        %v1375 = vmul.f32 %v1281, 1.442695
        %v1376 = vpow.pop %v1375
        %v1377 = vmul.f32 %v1282, 1.442695
        %v1378 = vpow.pop %v1377
        %v1379 = vmul.f32 %v1283, 1.442695
        %v1380 = vpow.pop %v1379
        %v1381 = vmul.f32 %v1284, 1.442695
        %v1382 = vpow.pop %v1381
        %v1383 = vmul.f32 %v1285, 1.442695
        %v1384 = vpow.pop %v1383
        %v1385 = vmul.f32 %v1286, 1.442695
        %v1386 = vpow.pop %v1385
        %v1387 = vmul.f32 %v1287, 1.442695
        %v1388 = vpow.pop %v1387
        %v1389 = vmul.f32 %v1288, 1.442695
        %v1390 = vpow.pop %v1389
        %v1391 = vmul.f32 %v1289, 1.442695
        %v1392 = vpow.pop %v1391
        %v1393 = vmul.f32 %v1290, 1.442695
        %v1394 = vpow.pop %v1393
        %v1395 = vmul.f32 %v1291, 1.442695
        %v1396 = vpow.pop %v1395
        %v1397 = vmul.f32 %v1292, 1.442695
        %v1398 = vpow.pop %v1397
        %v1399 = vmul.f32 %v1293, 1.442695
        %v1400 = vpow.pop %v1399
        %v1401 = vmul.f32 %v1294, 1.442695
        %v1402 = vpow.pop %v1401
        %v1403 = vmul.f32 %v1295, 1.442695
        %v1404 = vpow.pop %v1403
        %v1405 = vmul.f32 %v1296, 1.442695
        %v1406 = vpow.pop %v1405
        %v1407 = vmul.f32 %v1297, 1.442695
        %v1408 = vpow.pop %v1407
        %v1409 = vmul.f32 %v1298, 1.442695
        %v1410 = vpow.pop %v1409
        %v1411 = vadd.f32 %v1300, 1.0
        %v1412 = vadd.f32 %v1302, 1.0
        %v1413 = vadd.f32 %v1304, 1.0
        %v1414 = vadd.f32 %v1306, 1.0
        %v1415 = vadd.f32 %v1308, 1.0
        %v1416 = vadd.f32 %v1310, 1.0
        %v1417 = vadd.f32 %v1312, 1.0
        %v1418 = vadd.f32 %v1314, 1.0
        %v1419 = vadd.f32 %v1316, 1.0
        %v1420 = vadd.f32 %v1318, 1.0
        %v1421 = vadd.f32 %v1320, 1.0
        %v1422 = vadd.f32 %v1322, 1.0
        %v1423 = vadd.f32 %v1324, 1.0
        %v1424 = vadd.f32 %v1326, 1.0
        %v1425 = vadd.f32 %v1328, 1.0
        %v1426 = vadd.f32 %v1330, 1.0
        %v1427 = vadd.f32 %v1332, 1.0
        %v1428 = vadd.f32 %v1334, 1.0
        %v1429 = vadd.f32 %v1336, 1.0
        %v1430 = vadd.f32 %v1338, 1.0
        %v1431 = vadd.f32 %v1340, 1.0
        %v1432 = vadd.f32 %v1342, 1.0
        %v1433 = vadd.f32 %v1344, 1.0
        %v1434 = vadd.f32 %v1346, 1.0
        %v1435 = vadd.f32 %v1348, 1.0
        %v1436 = vadd.f32 %v1350, 1.0
        %v1437 = vadd.f32 %v1352, 1.0
        %v1438 = vadd.f32 %v1354, 1.0
        %v1439 = vadd.f32 %v1356, 1.0
        %v1440 = vadd.f32 %v1358, 1.0
        %v1441 = vadd.f32 %v1360, 1.0
        %v1442 = vadd.f32 %v1362, 1.0
        %v1443 = vadd.f32 %v1364, 1.0
        %v1444 = vadd.f32 %v1366, 1.0
        %v1445 = vadd.f32 %v1368, 1.0
        %v1446 = vadd.f32 %v1370, 1.0
        %v1447 = vadd.f32 %v1372, 1.0
        %v1448 = vadd.f32 %v1374, 1.0
        %v1449 = vadd.f32 %v1376, 1.0
        %v1450 = vadd.f32 %v1378, 1.0
        %v1451 = vadd.f32 %v1380, 1.0
        %v1452 = vadd.f32 %v1382, 1.0
        %v1453 = vadd.f32 %v1384, 1.0
        %v1454 = vadd.f32 %v1386, 1.0
        %v1455 = vadd.f32 %v1388, 1.0
        %v1456 = vadd.f32 %v1390, 1.0
        %v1457 = vadd.f32 %v1392, 1.0
        %v1458 = vadd.f32 %v1394, 1.0
        %v1459 = vadd.f32 %v1396, 1.0
        %v1460 = vadd.f32 %v1398, 1.0
        %v1461 = vadd.f32 %v1400, 1.0
        %v1462 = vadd.f32 %v1402, 1.0
        %v1463 = vadd.f32 %v1404, 1.0
        %v1464 = vadd.f32 %v1406, 1.0
        %v1465 = vadd.f32 %v1408, 1.0
        %v1466 = vadd.f32 %v1410, 1.0
        %v1467 = vrcp.pop %v1411
        %v1468 = vmul.f32 1.0, %v1467
        %v1469 = vrcp.pop %v1412
        %v1470 = vmul.f32 1.0, %v1469
        %v1471 = vrcp.pop %v1413
        %v1472 = vmul.f32 1.0, %v1471
        %v1473 = vrcp.pop %v1414
        %v1474 = vmul.f32 1.0, %v1473
        %v1475 = vrcp.pop %v1415
        %v1476 = vmul.f32 1.0, %v1475
        %v1477 = vrcp.pop %v1416
        %v1478 = vmul.f32 1.0, %v1477
        %v1479 = vrcp.pop %v1417
        %v1480 = vmul.f32 1.0, %v1479
        %v1481 = vrcp.pop %v1418
        %v1482 = vmul.f32 1.0, %v1481
        %v1483 = vrcp.pop %v1419
        %v1484 = vmul.f32 1.0, %v1483
        %v1485 = vrcp.pop %v1420
        %v1486 = vmul.f32 1.0, %v1485
        %v1487 = vrcp.pop %v1421
        %v1488 = vmul.f32 1.0, %v1487
        %v1489 = vrcp.pop %v1422
        %v1490 = vmul.f32 1.0, %v1489
        %v1491 = vrcp.pop %v1423
        %v1492 = vmul.f32 1.0, %v1491
        %v1493 = vrcp.pop %v1424
        %v1494 = vmul.f32 1.0, %v1493
        %v1495 = vrcp.pop %v1425
        %v1496 = vmul.f32 1.0, %v1495
        %v1497 = vrcp.pop %v1426
        %v1498 = vmul.f32 1.0, %v1497
        %v1499 = vrcp.pop %v1427
        %v1500 = vmul.f32 1.0, %v1499
        %v1501 = vrcp.pop %v1428
        %v1502 = vmul.f32 1.0, %v1501
        %v1503 = vrcp.pop %v1429
        %v1504 = vmul.f32 1.0, %v1503
        %v1505 = vrcp.pop %v1430
        %v1506 = vmul.f32 1.0, %v1505
        %v1507 = vrcp.pop %v1431
        %v1508 = vmul.f32 1.0, %v1507
        %v1509 = vrcp.pop %v1432
        %v1510 = vmul.f32 1.0, %v1509
        %v1511 = vrcp.pop %v1433
        %v1512 = vmul.f32 1.0, %v1511
        %v1513 = vrcp.pop %v1434
        %v1514 = vmul.f32 1.0, %v1513
        %v1515 = vrcp.pop %v1435
        %v1516 = vmul.f32 1.0, %v1515
        %v1517 = vrcp.pop %v1436
        %v1518 = vmul.f32 1.0, %v1517
        %v1519 = vrcp.pop %v1437
        %v1520 = vmul.f32 1.0, %v1519
        %v1521 = vrcp.pop %v1438
        %v1522 = vmul.f32 1.0, %v1521
        %v1523 = vrcp.pop %v1439
        %v1524 = vmul.f32 1.0, %v1523
        %v1525 = vrcp.pop %v1440
        %v1526 = vmul.f32 1.0, %v1525
        %v1527 = vrcp.pop %v1441
        %v1528 = vmul.f32 1.0, %v1527
        %v1529 = vrcp.pop %v1442
        %v1530 = vmul.f32 1.0, %v1529
        %v1531 = vrcp.pop %v1443
        %v1532 = vmul.f32 1.0, %v1531
        %v1533 = vrcp.pop %v1444
        %v1534 = vmul.f32 1.0, %v1533
        %v1535 = vrcp.pop %v1445
        %v1536 = vmul.f32 1.0, %v1535
        %v1537 = vrcp.pop %v1446
        %v1538 = vmul.f32 1.0, %v1537
        %v1539 = vrcp.pop %v1447
        %v1540 = vmul.f32 1.0, %v1539
        %v1541 = vrcp.pop %v1448
        %v1542 = vmul.f32 1.0, %v1541
        %v1543 = vrcp.pop %v1449
        %v1544 = vmul.f32 1.0, %v1543
        %v1545 = vrcp.pop %v1450
        %v1546 = vmul.f32 1.0, %v1545
        %v1547 = vrcp.pop %v1451
        %v1548 = vmul.f32 1.0, %v1547
        %v1549 = vrcp.pop %v1452
        %v1550 = vmul.f32 1.0, %v1549
        %v1551 = vrcp.pop %v1453
        %v1552 = vmul.f32 1.0, %v1551
        %v1553 = vrcp.pop %v1454
        %v1554 = vmul.f32 1.0, %v1553
        %v1555 = vrcp.pop %v1455
        %v1556 = vmul.f32 1.0, %v1555
        %v1557 = vrcp.pop %v1456
        %v1558 = vmul.f32 1.0, %v1557
        %v1559 = vrcp.pop %v1457
        %v1560 = vmul.f32 1.0, %v1559
        %v1561 = vrcp.pop %v1458
        %v1562 = vmul.f32 1.0, %v1561
        %v1563 = vrcp.pop %v1459
        %v1564 = vmul.f32 1.0, %v1563
        %v1565 = vrcp.pop %v1460
        %v1566 = vmul.f32 1.0, %v1565
        %v1567 = vrcp.pop %v1461
        %v1568 = vmul.f32 1.0, %v1567
        %v1569 = vrcp.pop %v1462
        %v1570 = vmul.f32 1.0, %v1569
        %v1571 = vrcp.pop %v1463
        %v1572 = vmul.f32 1.0, %v1571
        %v1573 = vrcp.pop %v1464
        %v1574 = vmul.f32 1.0, %v1573
        %v1575 = vrcp.pop %v1465
        %v1576 = vmul.f32 1.0, %v1575
        %v1577 = vrcp.pop %v1466
        %v1578 = vmul.f32 1.0, %v1577
        %v1579 = vmul.f32 %v994, %v1468
        %v1580 = vmul.f32 %v996, %v1470
        %v1581 = vmul.f32 %v1067, %v1472
        %v1582 = vmul.f32 %v1069, %v1474
        %v1583 = vmul.f32 %v1140, %v1476
        %v1584 = vmul.f32 %v1142, %v1478
        %v1585 = vmul.f32 %v1213, %v1480
        %v1586 = vmul.f32 %v998, %v1482
        %v1587 = vmul.f32 %v1000, %v1484
        %v1588 = vmul.f32 %v1071, %v1486
        %v1589 = vmul.f32 %v1073, %v1488
        %v1590 = vmul.f32 %v1144, %v1490
        %v1591 = vmul.f32 %v1146, %v1492
        %v1592 = vmul.f32 %v1216, %v1494
        %v1593 = vmul.f32 %v1004, %v1496
        %v1594 = vmul.f32 %v1006, %v1498
        %v1595 = vmul.f32 %v1077, %v1500
        %v1596 = vmul.f32 %v1079, %v1502
        %v1597 = vmul.f32 %v1150, %v1504
        %v1598 = vmul.f32 %v1152, %v1506
        %v1599 = vmul.f32 %v1221, %v1508
        %v1600 = vmul.f32 %v1008, %v1510
        %v1601 = vmul.f32 %v1010, %v1512
        %v1602 = vmul.f32 %v1081, %v1514
        %v1603 = vmul.f32 %v1083, %v1516
        %v1604 = vmul.f32 %v1154, %v1518
        %v1605 = vmul.f32 %v1156, %v1520
        %v1606 = vmul.f32 %v1224, %v1522
        %v1607 = vmul.f32 %v1014, %v1524
        %v1608 = vmul.f32 %v1016, %v1526
        %v1609 = vmul.f32 %v1087, %v1528
        %v1610 = vmul.f32 %v1089, %v1530
        %v1611 = vmul.f32 %v1160, %v1532
        %v1612 = vmul.f32 %v1162, %v1534
        %v1613 = vmul.f32 %v1229, %v1536
        %v1614 = vmul.f32 %v1018, %v1538
        %v1615 = vmul.f32 %v1020, %v1540
        %v1616 = vmul.f32 %v1091, %v1542
        %v1617 = vmul.f32 %v1093, %v1544
        %v1618 = vmul.f32 %v1164, %v1546
        %v1619 = vmul.f32 %v1166, %v1548
        %v1620 = vmul.f32 %v1232, %v1550
        %v1621 = vmul.f32 %v1024, %v1552
        %v1622 = vmul.f32 %v1026, %v1554
        %v1623 = vmul.f32 %v1097, %v1556
        %v1624 = vmul.f32 %v1099, %v1558
        %v1625 = vmul.f32 %v1170, %v1560
        %v1626 = vmul.f32 %v1172, %v1562
        %v1627 = vmul.f32 %v1237, %v1564
        %v1628 = vmul.f32 %v1028, %v1566
        %v1629 = vmul.f32 %v1030, %v1568
        %v1630 = vmul.f32 %v1101, %v1570
        %v1631 = vmul.f32 %v1103, %v1572
        %v1632 = vmul.f32 %v1174, %v1574
        %v1633 = vmul.f32 %v1176, %v1576
        %v1634 = vmul.f32 %v1240, %v1578
        %v1635 = vlaneseq
        %v1636 = vand.u32 %v1635, 127
        %s1637 = smul.u32 %s25, 64
        %v1638 = vstv %s1637
        %v1639 = vadd.s32 %v1636, %v1638
        %vm1640 = vcmp.lt.s32.totalorder %v1639, 64
        %v1641 = vsel %vm1640, 1.0, 0.0
        %v1642 = vld [vmem:[#allocation2] sm:$0xff]
        %vm1643 = vcmask 523264
        %v1645 = vsel %vm1643, %v1641, 0
        %1647 = vmatprep.subr.mxu0 %v1580
        %1648 = vmatpush1.msra.mxu0 %v1579
        %1649 = vmatprep.subr.mxu0 %v1587
        %1650 = vmatpush1.msra.mxu0 %v1586
        %1651 = vmatprep.subr.mxu0 %v1594
        %1652 = vmatpush1.msra.mxu0 %v1593
        %1653 = vmatprep.subr.mxu0 %v1601
        %1654 = vmatpush1.msra.mxu0 %v1600
        %1655 = vmatprep.subr.mxu0 %v1608
        %1656 = vmatpush1.msra.mxu0 %v1607
        %1657 = vmatprep.subr.mxu0 %v1615
        %1658 = vmatpush1.msra.mxu0 %v1614
        %1659 = vmatprep.subr.mxu0 %v1622
        %1660 = vmatpush1.msra.mxu0 %v1621
        %1661 = vmatprep.subr.mxu0 %v1629
        %1662 = vmatpush1.msra.mxu0 %v1628
        %1663 = vmatprep.subr.mxu0 0.0
        %1664 = vmatpush1.msra.mxu0 0.0
        %1665 = vmatprep.subr.mxu0 0.0
        %1666 = vmatpush1.msra.mxu0 0.0
        %1667 = vmatprep.subr.mxu0 0.0
        %1668 = vmatpush1.msra.mxu0 0.0
        %1669 = vmatprep.subr.mxu0 0.0
        %1670 = vmatpush1.msra.mxu0 0.0
        %1671 = vmatprep.subr.mxu0 0.0
        %1672 = vmatpush1.msra.mxu0 0.0
        %1673 = vmatprep.subr.mxu0 0.0
        %1674 = vmatpush1.msra.mxu0 0.0
        %1675 = vmatprep.subr.mxu0 0.0
        %1676 = vmatpush1.msra.mxu0 0.0
        %1677 = vmatprep.subr.mxu0 0.0
        %1678 = vmatpush1.msra.mxu0 0.0
        %1679 = vmatprep.subr.mxu0 0.0
        %1680 = vmatpush1.msra.mxu0 0.0
        %1681 = vmatprep.subr.mxu0 0.0
        %1682 = vmatpush1.msra.mxu0 0.0
        %1683 = vmatprep.subr.mxu0 0.0
        %1684 = vmatpush1.msra.mxu0 0.0
        %1685 = vmatprep.subr.mxu0 0.0
        %1686 = vmatpush1.msra.mxu0 0.0
        %1687 = vmatprep.subr.mxu0 0.0
        %1688 = vmatpush1.msra.mxu0 0.0
        %1689 = vmatprep.subr.mxu0 0.0
        %1690 = vmatpush1.msra.mxu0 0.0
        %1691 = vmatprep.subr.mxu0 0.0
        %1692 = vmatpush1.msra.mxu0 0.0
        %1693 = vmatprep.subr.mxu0 0.0
        %1694 = vmatpush1.msra.mxu0 0.0
        %1695 = vmatprep.subr.mxu0 0.0
        %1696 = vmatpush1.msra.mxu0 0.0
        %1697 = vmatprep.subr.mxu0 0.0
        %1698 = vmatpush1.msra.mxu0 0.0
        %1699 = vmatprep.subr.mxu0 0.0
        %1700 = vmatpush1.msra.mxu0 0.0
        %1701 = vmatprep.subr.mxu0 0.0
        %1702 = vmatpush1.msra.mxu0 0.0
        %1703 = vmatprep.subr.mxu0 0.0
        %1704 = vmatpush1.msra.mxu0 0.0
        %1705 = vmatprep.subr.mxu0 0.0
        %1706 = vmatpush1.msra.mxu0 0.0
        %1707 = vmatprep.subr.mxu0 0.0
        %1708 = vmatpush1.msra.mxu0 0.0
        %1709 = vmatprep.subr.mxu0 0.0
        %1710 = vmatpush1.msra.mxu0 0.0
        %1711 = vmatprep.mubr.f32.mxu0 0.0
        %1712 = vmatmul.mubr.f32.gmra.mrb[0].mxu0 %v1645
        %v1713 = vpop.f32.mrb[0].mxu0
        %v1714 = vadd.f32 0.0, %v1713
        %v1715 = vpop.f32.mrb[0].mxu0
        %v1716 = vadd.f32 0.0, %v1715
        %1717 = vdwg.mxu0
        %1718 = vmatprep.subr.mxu0 %v1582
        %1719 = vmatpush1.msra.mxu0 %v1581
        %1720 = vmatprep.subr.mxu0 %v1589
        %1721 = vmatpush1.msra.mxu0 %v1588
        %1722 = vmatprep.subr.mxu0 %v1596
        %1723 = vmatpush1.msra.mxu0 %v1595
        %1724 = vmatprep.subr.mxu0 %v1603
        %1725 = vmatpush1.msra.mxu0 %v1602
        %1726 = vmatprep.subr.mxu0 %v1610
        %1727 = vmatpush1.msra.mxu0 %v1609
        %1728 = vmatprep.subr.mxu0 %v1617
        %1729 = vmatpush1.msra.mxu0 %v1616
        %1730 = vmatprep.subr.mxu0 %v1624
        %1731 = vmatpush1.msra.mxu0 %v1623
        %1732 = vmatprep.subr.mxu0 %v1631
        %1733 = vmatpush1.msra.mxu0 %v1630
        %1734 = vmatprep.subr.mxu0 0.0
        %1735 = vmatpush1.msra.mxu0 0.0
        %1736 = vmatprep.subr.mxu0 0.0
        %1737 = vmatpush1.msra.mxu0 0.0
        %1738 = vmatprep.subr.mxu0 0.0
        %1739 = vmatpush1.msra.mxu0 0.0
        %1740 = vmatprep.subr.mxu0 0.0
        %1741 = vmatpush1.msra.mxu0 0.0
        %1742 = vmatprep.subr.mxu0 0.0
        %1743 = vmatpush1.msra.mxu0 0.0
        %1744 = vmatprep.subr.mxu0 0.0
        %1745 = vmatpush1.msra.mxu0 0.0
        %1746 = vmatprep.subr.mxu0 0.0
        %1747 = vmatpush1.msra.mxu0 0.0
        %1748 = vmatprep.subr.mxu0 0.0
        %1749 = vmatpush1.msra.mxu0 0.0
        %1750 = vmatprep.subr.mxu0 0.0
        %1751 = vmatpush1.msra.mxu0 0.0
        %1752 = vmatprep.subr.mxu0 0.0
        %1753 = vmatpush1.msra.mxu0 0.0
        %1754 = vmatprep.subr.mxu0 0.0
        %1755 = vmatpush1.msra.mxu0 0.0
        %1756 = vmatprep.subr.mxu0 0.0
        %1757 = vmatpush1.msra.mxu0 0.0
        %1758 = vmatprep.subr.mxu0 0.0
        %1759 = vmatpush1.msra.mxu0 0.0
        %1760 = vmatprep.subr.mxu0 0.0
        %1761 = vmatpush1.msra.mxu0 0.0
        %1762 = vmatprep.subr.mxu0 0.0
        %1763 = vmatpush1.msra.mxu0 0.0
        %1764 = vmatprep.subr.mxu0 0.0
        %1765 = vmatpush1.msra.mxu0 0.0
        %1766 = vmatprep.subr.mxu0 0.0
        %1767 = vmatpush1.msra.mxu0 0.0
        %1768 = vmatprep.subr.mxu0 0.0
        %1769 = vmatpush1.msra.mxu0 0.0
        %1770 = vmatprep.subr.mxu0 0.0
        %1771 = vmatpush1.msra.mxu0 0.0
        %1772 = vmatprep.subr.mxu0 0.0
        %1773 = vmatpush1.msra.mxu0 0.0
        %1774 = vmatprep.subr.mxu0 0.0
        %1775 = vmatpush1.msra.mxu0 0.0
        %1776 = vmatprep.subr.mxu0 0.0
        %1777 = vmatpush1.msra.mxu0 0.0
        %1778 = vmatprep.subr.mxu0 0.0
        %1779 = vmatpush1.msra.mxu0 0.0
        %1780 = vmatprep.subr.mxu0 0.0
        %1781 = vmatpush1.msra.mxu0 0.0
        %1782 = vmatprep.mubr.f32.mxu0 0.0
        %1783 = vmatmul.mubr.f32.gmra.mrb[0].mxu0 %v1645
        %v1784 = vpop.f32.mrb[0].mxu0
        %v1785 = vadd.f32 0.0, %v1784
        %v1786 = vpop.f32.mrb[0].mxu0
        %v1787 = vadd.f32 0.0, %v1786
        %1788 = vdwg.mxu0
        %1789 = vmatprep.subr.mxu0 %v1584
        %1790 = vmatpush1.msra.mxu0 %v1583
        %1791 = vmatprep.subr.mxu0 %v1591
        %1792 = vmatpush1.msra.mxu0 %v1590
        %1793 = vmatprep.subr.mxu0 %v1598
        %1794 = vmatpush1.msra.mxu0 %v1597
        %1795 = vmatprep.subr.mxu0 %v1605
        %1796 = vmatpush1.msra.mxu0 %v1604
        %1797 = vmatprep.subr.mxu0 %v1612
        %1798 = vmatpush1.msra.mxu0 %v1611
        %1799 = vmatprep.subr.mxu0 %v1619
        %1800 = vmatpush1.msra.mxu0 %v1618
        %1801 = vmatprep.subr.mxu0 %v1626
        %1802 = vmatpush1.msra.mxu0 %v1625
        %1803 = vmatprep.subr.mxu0 %v1633
        %1804 = vmatpush1.msra.mxu0 %v1632
        %1805 = vmatprep.subr.mxu0 0.0
        %1806 = vmatpush1.msra.mxu0 0.0
        %1807 = vmatprep.subr.mxu0 0.0
        %1808 = vmatpush1.msra.mxu0 0.0
        %1809 = vmatprep.subr.mxu0 0.0
        %1810 = vmatpush1.msra.mxu0 0.0
        %1811 = vmatprep.subr.mxu0 0.0
        %1812 = vmatpush1.msra.mxu0 0.0
        %1813 = vmatprep.subr.mxu0 0.0
        %1814 = vmatpush1.msra.mxu0 0.0
        %1815 = vmatprep.subr.mxu0 0.0
        %1816 = vmatpush1.msra.mxu0 0.0
        %1817 = vmatprep.subr.mxu0 0.0
        %1818 = vmatpush1.msra.mxu0 0.0
        %1819 = vmatprep.subr.mxu0 0.0
        %1820 = vmatpush1.msra.mxu0 0.0
        %1821 = vmatprep.subr.mxu0 0.0
        %1822 = vmatpush1.msra.mxu0 0.0
        %1823 = vmatprep.subr.mxu0 0.0
        %1824 = vmatpush1.msra.mxu0 0.0
        %1825 = vmatprep.subr.mxu0 0.0
        %1826 = vmatpush1.msra.mxu0 0.0
        %1827 = vmatprep.subr.mxu0 0.0
        %1828 = vmatpush1.msra.mxu0 0.0
        %1829 = vmatprep.subr.mxu0 0.0
        %1830 = vmatpush1.msra.mxu0 0.0
        %1831 = vmatprep.subr.mxu0 0.0
        %1832 = vmatpush1.msra.mxu0 0.0
        %1833 = vmatprep.subr.mxu0 0.0
        %1834 = vmatpush1.msra.mxu0 0.0
        %1835 = vmatprep.subr.mxu0 0.0
        %1836 = vmatpush1.msra.mxu0 0.0
        %1837 = vmatprep.subr.mxu0 0.0
        %1838 = vmatpush1.msra.mxu0 0.0
        %1839 = vmatprep.subr.mxu0 0.0
        %1840 = vmatpush1.msra.mxu0 0.0
        %1841 = vmatprep.subr.mxu0 0.0
        %1842 = vmatpush1.msra.mxu0 0.0
        %1843 = vmatprep.subr.mxu0 0.0
        %1844 = vmatpush1.msra.mxu0 0.0
        %1845 = vmatprep.subr.mxu0 0.0
        %1846 = vmatpush1.msra.mxu0 0.0
        %1847 = vmatprep.subr.mxu0 0.0
        %1848 = vmatpush1.msra.mxu0 0.0
        %1849 = vmatprep.subr.mxu0 0.0
        %1850 = vmatpush1.msra.mxu0 0.0
        %1851 = vmatprep.subr.mxu0 0.0
        %1852 = vmatpush1.msra.mxu0 0.0
        %1853 = vmatprep.mubr.f32.mxu0 0.0
        %1854 = vmatmul.mubr.f32.gmra.mrb[0].mxu0 %v1645
        %v1855 = vpop.f32.mrb[0].mxu0
        %v1856 = vadd.f32 0.0, %v1855
        %v1857 = vpop.f32.mrb[0].mxu0
        %v1858 = vadd.f32 0.0, %v1857
        %1859 = vdwg.mxu0
        %1860 = vmatprep.subr.mxu0 0.0
        %1861 = vmatpush1.msra.mxu0 %v1585
        %1862 = vmatprep.subr.mxu0 0.0
        %1863 = vmatpush1.msra.mxu0 %v1592
        %1864 = vmatprep.subr.mxu0 0.0
        %1865 = vmatpush1.msra.mxu0 %v1599
        %1866 = vmatprep.subr.mxu0 0.0
        %1867 = vmatpush1.msra.mxu0 %v1606
        %1868 = vmatprep.subr.mxu0 0.0
        %1869 = vmatpush1.msra.mxu0 %v1613
        %1870 = vmatprep.subr.mxu0 0.0
        %1871 = vmatpush1.msra.mxu0 %v1620
        %1872 = vmatprep.subr.mxu0 0.0
        %1873 = vmatpush1.msra.mxu0 %v1627
        %1874 = vmatprep.subr.mxu0 0.0
        %1875 = vmatpush1.msra.mxu0 %v1634
        %1876 = vmatprep.subr.mxu0 0.0
        %1877 = vmatpush1.msra.mxu0 0.0
        %1878 = vmatprep.subr.mxu0 0.0
        %1879 = vmatpush1.msra.mxu0 0.0
        %1880 = vmatprep.subr.mxu0 0.0
        %1881 = vmatpush1.msra.mxu0 0.0
        %1882 = vmatprep.subr.mxu0 0.0
        %1883 = vmatpush1.msra.mxu0 0.0
        %1884 = vmatprep.subr.mxu0 0.0
        %1885 = vmatpush1.msra.mxu0 0.0
        %1886 = vmatprep.subr.mxu0 0.0
        %1887 = vmatpush1.msra.mxu0 0.0
        %1888 = vmatprep.subr.mxu0 0.0
        %1889 = vmatpush1.msra.mxu0 0.0
        %1890 = vmatprep.subr.mxu0 0.0
        %1891 = vmatpush1.msra.mxu0 0.0
        %1892 = vmatprep.subr.mxu0 0.0
        %1893 = vmatpush1.msra.mxu0 0.0
        %1894 = vmatprep.subr.mxu0 0.0
        %1895 = vmatpush1.msra.mxu0 0.0
        %1896 = vmatprep.subr.mxu0 0.0
        %1897 = vmatpush1.msra.mxu0 0.0
        %1898 = vmatprep.subr.mxu0 0.0
        %1899 = vmatpush1.msra.mxu0 0.0
        %1900 = vmatprep.subr.mxu0 0.0
        %1901 = vmatpush1.msra.mxu0 0.0
        %1902 = vmatprep.subr.mxu0 0.0
        %1903 = vmatpush1.msra.mxu0 0.0
        %1904 = vmatprep.subr.mxu0 0.0
        %1905 = vmatpush1.msra.mxu0 0.0
        %1906 = vmatprep.subr.mxu0 0.0
        %1907 = vmatpush1.msra.mxu0 0.0
        %1908 = vmatprep.subr.mxu0 0.0
        %1909 = vmatpush1.msra.mxu0 0.0
        %1910 = vmatprep.subr.mxu0 0.0
        %1911 = vmatpush1.msra.mxu0 0.0
        %1912 = vmatprep.subr.mxu0 0.0
        %1913 = vmatpush1.msra.mxu0 0.0
        %1914 = vmatprep.subr.mxu0 0.0
        %1915 = vmatpush1.msra.mxu0 0.0
        %1916 = vmatprep.subr.mxu0 0.0
        %1917 = vmatpush1.msra.mxu0 0.0
        %1918 = vmatprep.subr.mxu0 0.0
        %1919 = vmatpush1.msra.mxu0 0.0
        %1920 = vmatprep.subr.mxu0 0.0
        %1921 = vmatpush1.msra.mxu0 0.0
        %1922 = vmatprep.subr.mxu0 0.0
        %1923 = vmatpush1.msra.mxu0 0.0
        %1924 = vmatprep.mubr.f32.mxu0 0.0
        %1925 = vmatmul.mubr.f32.gmra.mrb[0].mxu0 %v1645
        %v1926 = vpop.f32.mrb[0].mxu0
        %v1927 = vadd.f32 0.0, %v1926
        %v1928 = vpop.f32.mrb[0].mxu0
        %1929 = vdwg.mxu0
        %v1937 = vcombine.low %v1714, %v1716
        %v1938 = vcombine.low %v1785, %v1787
        %v1939 = vcombine.low %v1856, %v1858
        %v1941 = vunpack.c.l.s4 1966171168
        %v1942 = vunpack.c.0.s8 %v1941
        %v1943 = vlaneseq
        %v1944 = vshrl.u32 %v1943, 7
        %v1945 = vsub.s32 %v1942, %v1944
        %v1946 = vrot.slane %v1937, %v1945
        %v1948 = vunpack.c.l.s4 1966171168
        %v1949 = vunpack.c.0.s8 %v1948
        %v1950 = vlaneseq
        %v1951 = vshrl.u32 %v1950, 7
        %v1952 = vsub.s32 %v1949, %v1951
        %v1953 = vrot.slane %v1938, %v1952
        %v1955 = vunpack.c.l.s4 1966171168
        %v1956 = vunpack.c.0.s8 %v1955
        %v1957 = vlaneseq
        %v1958 = vshrl.u32 %v1957, 7
        %v1959 = vsub.s32 %v1956, %v1958
        %v1960 = vrot.slane %v1939, %v1959
        %v1962 = vunpack.c.l.s4 1966171168
        %v1963 = vunpack.c.0.s8 %v1962
        %v1964 = vlaneseq
        %v1965 = vshrl.u32 %v1964, 7
        %v1966 = vsub.s32 %v1963, %v1965
        %v1967 = vrot.slane %v1927, %v1966
        %v1968 = vcombine.low %v1946, %v1953
        %v1969 = vcombine.low %v1960, %v1967
        %v1971 = vunpack.c.l.s4 1966171168
        %v1972 = vunpack.c.0.s8 %v1971
        %v1973 = vlaneseq
        %v1974 = vshrl.u32 %v1973, 7
        %v1975 = vsub.s32 %v1972, %v1974
        %v1976 = vrot.slane %v1968, %v1975
        %v1978 = vunpack.c.l.s4 1966171168
        %v1979 = vunpack.c.0.s8 %v1978
        %v1980 = vlaneseq
        %v1981 = vshrl.u32 %v1980, 7
        %v1982 = vsub.s32 %v1979, %v1981
        %v1983 = vrot.slane %v1969, %v1982
        %v1984 = vcombine.low %v1976, %v1983
        %v1986 = vadd.f32 %v1642, %v1984
        %v1987 = vlaneseq
        %vm1988 = vcmp.ge.s32.totalorder %v1987, 0
        %vm1989 = vcmp.lt.s32.totalorder %v1987, 896
        %vm1990 = vmand %vm1988, %vm1989
        %1991 = vst.msk [vmem:[#allocation2] sm:$0x7f] %vm1990, %v1986
        // Predicated region
        $region61: #{efficientnet_feature_extractor_forward.2} parent=39 // pred_check
          %p1992 = pneg %p372
        $region62: #{efficientnet_feature_extractor_forward.2} parent=39 // pred_check_branch
          %1994 = sbr.rel (%p1992) target = $region64
        $region63: #{efficientnet_feature_extractor_forward.2} parent=39 // pred_region
          %v1995 = vld [vmem:[#allocation2] sm:$0xff]
          %v1996 = vmul.f32 %v1995, 0.015625
          %1997 = vst.msk [vmem:[%s369] sm:$0x7f] %vm1990, %v1996
        $region64: #{efficientnet_feature_extractor_forward.2} parent=39 // pred_fallthru
          _
        %s1998 = smul.u32 7, %s24
        %p1999 = scmp.lt.s32.totalorder %s23, 1
        %s2000 = scalar_select %p1999, %s23, 1
        %p2001 = scmp.lt.s32.totalorder %s1998, 13
        %s2002 = scalar_select %p2001, %s1998, 13
        %s2003 = smul.addr %s2000, 14
        %s2004 = sadd.s32 %s2002, %s2003
        %s2005 = scalar_lea.vmem %s5, %s2004
        // Predicated region
        $region65: #{efficientnet_feature_extractor_forward.2} parent=39 // pred_check
          %p2006 = pneg %p179
        $region66: #{efficientnet_feature_extractor_forward.2} parent=39 // pred_check_branch
          %2008 = sbr.rel (%p2006) target = $region68
        $region67: #{efficientnet_feature_extractor_forward.2} parent=39 // pred_region
          %s2009 = smul.u32 7, %s24
        $region68: #{efficientnet_feature_extractor_forward.2} parent=39 // pred_fallthru
          _
      $region40: #{efficientnet_feature_extractor_forward.2} parent=5 // pred_fallthru
        _
      %p2010 = scmp.le.s32.totalorder 2, %s13
      // Predicated region
      $region69: #{efficientnet_feature_extractor_forward.2} parent=5 // pred_check
        %p2011 = pneg %p2010
      $region70: #{efficientnet_feature_extractor_forward.2} parent=5 // pred_check_branch
        %2013 = sbr.rel (%p2011) target = $region72
      $region71: #{efficientnet_feature_extractor_forward.2} parent=5 // pred_region
        %s2014 = ssub.s32 %s13, 2
        // Predicated region
        $region73: #{efficientnet_feature_extractor_forward.2} parent=71 // pred_check
          %p2015 = pneg %p185
        $region74: #{efficientnet_feature_extractor_forward.2} parent=71 // pred_check_branch
          %2017 = sbr.rel (%p2015) target = $region76
        $region75: #{efficientnet_feature_extractor_forward.2} parent=71 // pred_region
          %s2018 = smul.u32 7, %s27
          %p2019 = scmp.lt.s32.totalorder %s26, 1
          %s2020 = scalar_select %p2019, %s26, 1
          %p2021 = scmp.lt.s32.totalorder %s2018, 13
          %s2022 = scalar_select %p2021, %s2018, 13
          %s2023 = smul.addr %s2020, 14
          %s2024 = sadd.s32 %s2022, %s2023
          %s2025 = scalar_lea.vmem %s5, %s2024
        $region76: #{efficientnet_feature_extractor_forward.2} parent=71 // pred_fallthru
          _
      $region72: #{efficientnet_feature_extractor_forward.2} parent=5 // pred_fallthru
        _
    $region6: #{efficientnet_feature_extractor_forward.2} parent=1 // loop_footer
      %s17 = sadd.s32 1, %s13
    $region7: #{efficientnet_feature_extractor_forward.2} parent=1 // loop_footer_branch
      %12 = sbr.rel target = $region3
    $region8: #{efficientnet_feature_extractor_forward.2} parent=1 // loop_exit
      _
    %2026 = vsyncpa [#allocation4], 1
    %s2027 = scalar_lea.sflag [#allocation4], 1
    %2028 = vsyncpa %s2027, 1
    %2029 = vsyncpa [#allocation6], 1

// kernel: efficientnet_feature_extractor_forward.3
$region0: #{efficientnet_feature_extractor_forward.3}
  #allocation0 [shape = 'u32[]', space=smem, size = 0x4, offset = 0x4, fixed_abs, tag = 'smem constant byte address 0x4 - core index']
  #allocation1 [shape = 'u32[144,128]{1,0:T(1,128)}', space=vmem, size = 0x12000, scoped, tag = 'internal scratch']
  %s0 = inlined_call_operand.vmem [shape: f32[2,1792], index: 0, kind: input, shape index: {}]
  %s1 = inlined_call_operand.hbm [shape: f32[1792,512], index: 1, kind: input, shape index: {}]
  %s2 = inlined_call_operand.hbm [shape: f32[1,512], index: 2, kind: input, shape index: {}]
  %s3 = inlined_call_operand.hbm [shape: f32[512,256], index: 3, kind: input, shape index: {}]
  %s4 = inlined_call_operand.hbm [shape: f32[1,256], index: 4, kind: input, shape index: {}]
  %s5 = inlined_call_operand.hbm [shape: f32[256,128], index: 5, kind: input, shape index: {}]
  %s6 = inlined_call_operand.hbm [shape: f32[1,128], index: 6, kind: input, shape index: {}]
  %s7 = inlined_call_operand.hbm [shape: f32[2,128], index: 7, kind: output, shape index: {}]
  %s8 = sld [smem:[#allocation0]]
  $region62: #{efficientnet_feature_extractor_forward.3} parent=0
    _
  %s10 = ssub.s32 1, %s8
  %s11 = scalar_select 0, %s10, %s8
  $region1: #{efficientnet_feature_extractor_forward.3} parent=0
    #allocation2 [shape = 'u8[3670016]{0}', space=vmem, size = 0x380000, scoped, tag = 'input window, operand 1, single buffered']
    #allocation3 [shape = 's32[1]{0}', space=sflag, size = 0x4, scoped, tag = 'scoped memory for efficientnet_feature_extractor_forward.3']
    #allocation4 [shape = 's32[1]{0}', space=sflag, size = 0x4, scoped, tag = 'scoped memory for efficientnet_feature_extractor_forward.3']
    #allocation5 [shape = 'u8[2048]{0}', space=vmem, size = 0x800, scoped, tag = 'input window, operand 2, single buffered']
    #allocation6 [shape = 's32[1]{0}', space=sflag, size = 0x4, scoped, tag = 'scoped memory for efficientnet_feature_extractor_forward.3']
    #allocation7 [shape = 'u8[524288]{0}', space=vmem, size = 0x80000, scoped, tag = 'input window, operand 3, single buffered']
    #allocation8 [shape = 'u8[1024]{0}', space=vmem, size = 0x400, scoped, tag = 'input window, operand 4, single buffered']
    #allocation9 [shape = 's32[1]{0}', space=sflag, size = 0x4, scoped, tag = 'scoped memory for efficientnet_feature_extractor_forward.3']
    #allocation10 [shape = 'u8[131072]{0}', space=vmem, size = 0x20000, scoped, tag = 'input window, operand 5, single buffered']
    #allocation11 [shape = 'u8[512]{0}', space=vmem, size = 0x400, scoped, tag = 'input window, operand 6, single buffered']
    #allocation12 [shape = 's32[1]{0}', space=sflag, size = 0x4, scoped, tag = 'scoped memory for efficientnet_feature_extractor_forward.3']
    #allocation13 [shape = 'u8[1024]{0}', space=vmem, size = 0x400, scoped, tag = 'output window, operand 0, single buffered']
    %12 = vsyncpa [#allocation3], 0
    %13 = vsyncpa [#allocation6], 0
    %14 = vsyncpa [#allocation9], 0
    %15 = vsyncpa [#allocation12], 0
    %16 = vsyncpa [#allocation4], 0
    // Predicated region
    $region2: #{efficientnet_feature_extractor_forward.3} parent=1 // pred_check
      _
    $region3: #{efficientnet_feature_extractor_forward.3} parent=1 // pred_check_branch
      %18 = sbr.rel (0) target = $region5
    $region4: #{efficientnet_feature_extractor_forward.3} parent=1 // pred_region
      _
    $region5: #{efficientnet_feature_extractor_forward.3} parent=1 // pred_fallthru
      _
    // Predicated region
    $region6: #{efficientnet_feature_extractor_forward.3} parent=1 // pred_check
      _
    $region7: #{efficientnet_feature_extractor_forward.3} parent=1 // pred_check_branch
      %20 = sbr.rel (0) target = $region9
    $region8: #{efficientnet_feature_extractor_forward.3} parent=1 // pred_region
      %s22 = ssub.s32 114688, 114688
      %23 = vsyncadd [#allocation3], %s22
      %s24 = sshll.u32 [#allocation2], 4
      %s25 = int_to_ptr.vmem [resolvable:$true] %s24
      %30 = dma.hbm_to_vmem [thread:$0]  %s1, 114688, %s25, [#allocation3], 512, 512, 32
    $region9: #{efficientnet_feature_extractor_forward.3} parent=1 // pred_fallthru
      _
    // Predicated region
    $region10: #{efficientnet_feature_extractor_forward.3} parent=1 // pred_check
      _
    $region11: #{efficientnet_feature_extractor_forward.3} parent=1 // pred_check_branch
      %32 = sbr.rel (0) target = $region13
    $region12: #{efficientnet_feature_extractor_forward.3} parent=1 // pred_region
      %s34 = ssub.s32 64, 64
      %35 = vsyncadd [#allocation6], %s34
      %s37 = sshll.u32 [#allocation5], 4
      %s38 = int_to_ptr.vmem [resolvable:$true] %s37
      %40 = dma.hbm_to_vmem [thread:$0]  %s2, 64, %s38, [#allocation6]
    $region13: #{efficientnet_feature_extractor_forward.3} parent=1 // pred_fallthru
      _
    // Predicated region
    $region14: #{efficientnet_feature_extractor_forward.3} parent=1 // pred_check
      _
    $region15: #{efficientnet_feature_extractor_forward.3} parent=1 // pred_check_branch
      %42 = sbr.rel (0) target = $region17
    $region16: #{efficientnet_feature_extractor_forward.3} parent=1 // pred_region
      %s44 = ssub.s32 16384, 16384
      %45 = vsyncadd [#allocation6], %s44
      %s46 = sshll.u32 [#allocation7], 4
      %s47 = int_to_ptr.vmem [resolvable:$true] %s46
      %52 = dma.hbm_to_vmem [thread:$0]  %s3, 16384, %s47, [#allocation6], 256, 256, 16
    $region17: #{efficientnet_feature_extractor_forward.3} parent=1 // pred_fallthru
      _
    // Predicated region
    $region18: #{efficientnet_feature_extractor_forward.3} parent=1 // pred_check
      _
    $region19: #{efficientnet_feature_extractor_forward.3} parent=1 // pred_check_branch
      %54 = sbr.rel (0) target = $region21
    $region20: #{efficientnet_feature_extractor_forward.3} parent=1 // pred_region
      %s56 = ssub.s32 32, 32
      %57 = vsyncadd [#allocation9], %s56
      %s59 = sshll.u32 [#allocation8], 4
      %s60 = int_to_ptr.vmem [resolvable:$true] %s59
      %62 = dma.hbm_to_vmem [thread:$0]  %s4, 32, %s60, [#allocation9]
    $region21: #{efficientnet_feature_extractor_forward.3} parent=1 // pred_fallthru
      _
    // Predicated region
    $region22: #{efficientnet_feature_extractor_forward.3} parent=1 // pred_check
      _
    $region23: #{efficientnet_feature_extractor_forward.3} parent=1 // pred_check_branch
      %64 = sbr.rel (0) target = $region25
    $region24: #{efficientnet_feature_extractor_forward.3} parent=1 // pred_region
      %s66 = ssub.s32 4096, 4096
      %67 = vsyncadd [#allocation9], %s66
      %s68 = sshll.u32 [#allocation10], 4
      %s69 = int_to_ptr.vmem [resolvable:$true] %s68
      %74 = dma.hbm_to_vmem [thread:$0]  %s5, 4096, %s69, [#allocation9], 128, 128, 8
    $region25: #{efficientnet_feature_extractor_forward.3} parent=1 // pred_fallthru
      _
    // Predicated region
    $region26: #{efficientnet_feature_extractor_forward.3} parent=1 // pred_check
      _
    $region27: #{efficientnet_feature_extractor_forward.3} parent=1 // pred_check_branch
      %76 = sbr.rel (0) target = $region29
    $region28: #{efficientnet_feature_extractor_forward.3} parent=1 // pred_region
      %s78 = ssub.s32 16, 16
      %79 = vsyncadd [#allocation12], %s78
      %s81 = sshll.u32 [#allocation11], 4
      %s82 = int_to_ptr.vmem [resolvable:$true] %s81
      %84 = dma.hbm_to_vmem [thread:$0]  %s6, 16, %s82, [#allocation12]
    $region29: #{efficientnet_feature_extractor_forward.3} parent=1 // pred_fallthru
      _
    // Predicated region
    $region30: #{efficientnet_feature_extractor_forward.3} parent=1 // pred_check
      _
    $region31: #{efficientnet_feature_extractor_forward.3} parent=1 // pred_check_branch
      %86 = sbr.rel (0) target = $region33
    $region32: #{efficientnet_feature_extractor_forward.3} parent=1 // pred_region
      %87 = dma.done [#allocation3], 114688
    $region33: #{efficientnet_feature_extractor_forward.3} parent=1 // pred_fallthru
      _
    // Predicated region
    $region34: #{efficientnet_feature_extractor_forward.3} parent=1 // pred_check
      _
    $region35: #{efficientnet_feature_extractor_forward.3} parent=1 // pred_check_branch
      %89 = sbr.rel (0) target = $region37
    $region36: #{efficientnet_feature_extractor_forward.3} parent=1 // pred_region
      %90 = dma.done [#allocation6], 64
    $region37: #{efficientnet_feature_extractor_forward.3} parent=1 // pred_fallthru
      _
    // Predicated region
    $region38: #{efficientnet_feature_extractor_forward.3} parent=1 // pred_check
      _
    $region39: #{efficientnet_feature_extractor_forward.3} parent=1 // pred_check_branch
      %92 = sbr.rel (0) target = $region41
    $region40: #{efficientnet_feature_extractor_forward.3} parent=1 // pred_region
      %93 = dma.done [#allocation6], 16384
    $region41: #{efficientnet_feature_extractor_forward.3} parent=1 // pred_fallthru
      _
    // Predicated region
    $region42: #{efficientnet_feature_extractor_forward.3} parent=1 // pred_check
      _
    $region43: #{efficientnet_feature_extractor_forward.3} parent=1 // pred_check_branch
      %95 = sbr.rel (0) target = $region45
    $region44: #{efficientnet_feature_extractor_forward.3} parent=1 // pred_region
      %96 = dma.done [#allocation9], 32
    $region45: #{efficientnet_feature_extractor_forward.3} parent=1 // pred_fallthru
      _
    // Predicated region
    $region46: #{efficientnet_feature_extractor_forward.3} parent=1 // pred_check
      _
    $region47: #{efficientnet_feature_extractor_forward.3} parent=1 // pred_check_branch
      %98 = sbr.rel (0) target = $region49
    $region48: #{efficientnet_feature_extractor_forward.3} parent=1 // pred_region
      %99 = dma.done [#allocation9], 4096
    $region49: #{efficientnet_feature_extractor_forward.3} parent=1 // pred_fallthru
      _
    // Predicated region
    $region50: #{efficientnet_feature_extractor_forward.3} parent=1 // pred_check
      _
    $region51: #{efficientnet_feature_extractor_forward.3} parent=1 // pred_check_branch
      %101 = sbr.rel (0) target = $region53
    $region52: #{efficientnet_feature_extractor_forward.3} parent=1 // pred_region
      %102 = dma.done [#allocation12], 16
    $region53: #{efficientnet_feature_extractor_forward.3} parent=1 // pred_fallthru
      _
    %v103 = vld [vmem:[%s0] sm:$0xff]
    %v104 = vld [vmem:[%s0 + $0x8] sm:$0xff]
    %v105 = vld [vmem:[%s0 + $0x10] sm:$0xff]
    %v106 = vld [vmem:[%s0 + $0x18] sm:$0xf]
    %v107 = vld [vmem:[#allocation2] sm:$0xff]
    %v108 = vld [vmem:[#allocation2 + $0x8] sm:$0xff]
    %v109 = vld [vmem:[#allocation2 + $0x10] sm:$0xff]
    %v110 = vld [vmem:[#allocation2 + $0x18] sm:$0xff]
    %v111 = vld [vmem:[#allocation2 + $0x20] sm:$0xff]
    %v112 = vld [vmem:[#allocation2 + $0x28] sm:$0xff]
    %v113 = vld [vmem:[#allocation2 + $0x30] sm:$0xff]
    %v114 = vld [vmem:[#allocation2 + $0x38] sm:$0xff]
    %v115 = vld [vmem:[#allocation2 + $0x40] sm:$0xff]
    %v116 = vld [vmem:[#allocation2 + $0x48] sm:$0xff]
    %v117 = vld [vmem:[#allocation2 + $0x50] sm:$0xff]
    %v118 = vld [vmem:[#allocation2 + $0x58] sm:$0xff]
    %v119 = vld [vmem:[#allocation2 + $0x60] sm:$0xff]
    %v120 = vld [vmem:[#allocation2 + $0x68] sm:$0xff]
    %v121 = vld [vmem:[#allocation2 + $0x70] sm:$0xff]
    %v122 = vld [vmem:[#allocation2 + $0x78] sm:$0xff]
    %v123 = vld [vmem:[#allocation2 + $0x80] sm:$0xff]
    %v124 = vld [vmem:[#allocation2 + $0x88] sm:$0xff]
    %v125 = vld [vmem:[#allocation2 + $0x90] sm:$0xff]
    %v126 = vld [vmem:[#allocation2 + $0x98] sm:$0xff]
    %v127 = vld [vmem:[#allocation2 + $0xa0] sm:$0xff]
    %v128 = vld [vmem:[#allocation2 + $0xa8] sm:$0xff]
    %v129 = vld [vmem:[#allocation2 + $0xb0] sm:$0xff]
    %v130 = vld [vmem:[#allocation2 + $0xb8] sm:$0xff]
    %v131 = vld [vmem:[#allocation2 + $0xc0] sm:$0xff]
    %v132 = vld [vmem:[#allocation2 + $0xc8] sm:$0xff]
    %v133 = vld [vmem:[#allocation2 + $0xd0] sm:$0xff]
    %v134 = vld [vmem:[#allocation2 + $0xd8] sm:$0xff]
    %v135 = vld [vmem:[#allocation2 + $0xe0] sm:$0xff]
    %v136 = vld [vmem:[#allocation2 + $0xe8] sm:$0xff]
    %v137 = vld [vmem:[#allocation2 + $0xf0] sm:$0xff]
    %v138 = vld [vmem:[#allocation2 + $0xf8] sm:$0xff]
    %v139 = vld [vmem:[#allocation2 + $0x100] sm:$0xff]
    %v140 = vld [vmem:[#allocation2 + $0x108] sm:$0xff]
    %v141 = vld [vmem:[#allocation2 + $0x110] sm:$0xff]
    %v142 = vld [vmem:[#allocation2 + $0x118] sm:$0xff]
    %v143 = vld [vmem:[#allocation2 + $0x120] sm:$0xff]
    %v144 = vld [vmem:[#allocation2 + $0x128] sm:$0xff]
    %v145 = vld [vmem:[#allocation2 + $0x130] sm:$0xff]
    %v146 = vld [vmem:[#allocation2 + $0x138] sm:$0xff]
    %v147 = vld [vmem:[#allocation2 + $0x140] sm:$0xff]
    %v148 = vld [vmem:[#allocation2 + $0x148] sm:$0xff]
    %v149 = vld [vmem:[#allocation2 + $0x150] sm:$0xff]
    %v150 = vld [vmem:[#allocation2 + $0x158] sm:$0xff]
    %v151 = vld [vmem:[#allocation2 + $0x160] sm:$0xff]
    %v152 = vld [vmem:[#allocation2 + $0x168] sm:$0xff]
    %v153 = vld [vmem:[#allocation2 + $0x170] sm:$0xff]
    %v154 = vld [vmem:[#allocation2 + $0x178] sm:$0xff]
    %v155 = vld [vmem:[#allocation2 + $0x180] sm:$0xff]
    %v156 = vld [vmem:[#allocation2 + $0x188] sm:$0xff]
    %v157 = vld [vmem:[#allocation2 + $0x190] sm:$0xff]
    %v158 = vld [vmem:[#allocation2 + $0x198] sm:$0xff]
    %v159 = vld [vmem:[#allocation2 + $0x1a0] sm:$0xff]
    %v160 = vld [vmem:[#allocation2 + $0x1a8] sm:$0xff]
    %v161 = vld [vmem:[#allocation2 + $0x1b0] sm:$0xff]
    %v162 = vld [vmem:[#allocation2 + $0x1b8] sm:$0xff]
    %v163 = vld [vmem:[#allocation2 + $0x1c0] sm:$0xff]
    %v164 = vld [vmem:[#allocation2 + $0x1c8] sm:$0xff]
    %v165 = vld [vmem:[#allocation2 + $0x1d0] sm:$0xff]
    %v166 = vld [vmem:[#allocation2 + $0x1d8] sm:$0xff]
    %v167 = vld [vmem:[#allocation2 + $0x1e0] sm:$0xff]
    %v168 = vld [vmem:[#allocation2 + $0x1e8] sm:$0xff]
    %v169 = vld [vmem:[#allocation2 + $0x1f0] sm:$0xff]
    %v170 = vld [vmem:[#allocation2 + $0x1f8] sm:$0xff]
    %v171 = vld [vmem:[#allocation2 + $0x200] sm:$0xff]
    %v172 = vld [vmem:[#allocation2 + $0x208] sm:$0xff]
    %v173 = vld [vmem:[#allocation2 + $0x210] sm:$0xff]
    %v174 = vld [vmem:[#allocation2 + $0x218] sm:$0xff]
    %v175 = vld [vmem:[#allocation2 + $0x220] sm:$0xff]
    %v176 = vld [vmem:[#allocation2 + $0x228] sm:$0xff]
    %v177 = vld [vmem:[#allocation2 + $0x230] sm:$0xff]
    %v178 = vld [vmem:[#allocation2 + $0x238] sm:$0xff]
    %v179 = vld [vmem:[#allocation2 + $0x240] sm:$0xff]
    %v180 = vld [vmem:[#allocation2 + $0x248] sm:$0xff]
    %v181 = vld [vmem:[#allocation2 + $0x250] sm:$0xff]
    %v182 = vld [vmem:[#allocation2 + $0x258] sm:$0xff]
    %v183 = vld [vmem:[#allocation2 + $0x260] sm:$0xff]
    %v184 = vld [vmem:[#allocation2 + $0x268] sm:$0xff]
    %v185 = vld [vmem:[#allocation2 + $0x270] sm:$0xff]
    %v186 = vld [vmem:[#allocation2 + $0x278] sm:$0xff]
    %v187 = vld [vmem:[#allocation2 + $0x280] sm:$0xff]
    %v188 = vld [vmem:[#allocation2 + $0x288] sm:$0xff]
    %v189 = vld [vmem:[#allocation2 + $0x290] sm:$0xff]
    %v190 = vld [vmem:[#allocation2 + $0x298] sm:$0xff]
    %v191 = vld [vmem:[#allocation2 + $0x2a0] sm:$0xff]
    %v192 = vld [vmem:[#allocation2 + $0x2a8] sm:$0xff]
    %v193 = vld [vmem:[#allocation2 + $0x2b0] sm:$0xff]
    %v194 = vld [vmem:[#allocation2 + $0x2b8] sm:$0xff]
    %v195 = vld [vmem:[#allocation2 + $0x2c0] sm:$0xff]
    %v196 = vld [vmem:[#allocation2 + $0x2c8] sm:$0xff]
    %v197 = vld [vmem:[#allocation2 + $0x2d0] sm:$0xff]
    %v198 = vld [vmem:[#allocation2 + $0x2d8] sm:$0xff]
    %v199 = vld [vmem:[#allocation2 + $0x2e0] sm:$0xff]
    %v200 = vld [vmem:[#allocation2 + $0x2e8] sm:$0xff]
    %v201 = vld [vmem:[#allocation2 + $0x2f0] sm:$0xff]
    %v202 = vld [vmem:[#allocation2 + $0x2f8] sm:$0xff]
    %v203 = vld [vmem:[#allocation2 + $0x300] sm:$0xff]
    %v204 = vld [vmem:[#allocation2 + $0x308] sm:$0xff]
    %v205 = vld [vmem:[#allocation2 + $0x310] sm:$0xff]
    %v206 = vld [vmem:[#allocation2 + $0x318] sm:$0xff]
    %v207 = vld [vmem:[#allocation2 + $0x320] sm:$0xff]
    %v208 = vld [vmem:[#allocation2 + $0x328] sm:$0xff]
    %v209 = vld [vmem:[#allocation2 + $0x330] sm:$0xff]
    %v210 = vld [vmem:[#allocation2 + $0x338] sm:$0xff]
    %v211 = vld [vmem:[#allocation2 + $0x340] sm:$0xff]
    %v212 = vld [vmem:[#allocation2 + $0x348] sm:$0xff]
    %v213 = vld [vmem:[#allocation2 + $0x350] sm:$0xff]
    %v214 = vld [vmem:[#allocation2 + $0x358] sm:$0xff]
    %v215 = vld [vmem:[#allocation2 + $0x360] sm:$0xff]
    %v216 = vld [vmem:[#allocation2 + $0x368] sm:$0xff]
    %v217 = vld [vmem:[#allocation2 + $0x370] sm:$0xff]
    %v218 = vld [vmem:[#allocation2 + $0x378] sm:$0xff]
    %v219 = vld [vmem:[#allocation2 + $0x380] sm:$0xff]
    %v220 = vld [vmem:[#allocation2 + $0x388] sm:$0xff]
    %v221 = vld [vmem:[#allocation2 + $0x390] sm:$0xff]
    %v222 = vld [vmem:[#allocation2 + $0x398] sm:$0xff]
    %v223 = vld [vmem:[#allocation2 + $0x3a0] sm:$0xff]
    %v224 = vld [vmem:[#allocation2 + $0x3a8] sm:$0xff]
    %v225 = vld [vmem:[#allocation2 + $0x3b0] sm:$0xff]
    %v226 = vld [vmem:[#allocation2 + $0x3b8] sm:$0xff]
    %v227 = vld [vmem:[#allocation2 + $0x3c0] sm:$0xff]
    %v228 = vld [vmem:[#allocation2 + $0x3c8] sm:$0xff]
    %v229 = vld [vmem:[#allocation2 + $0x3d0] sm:$0xff]
    %v230 = vld [vmem:[#allocation2 + $0x3d8] sm:$0xff]
    %v231 = vld [vmem:[#allocation2 + $0x3e0] sm:$0xff]
    %v232 = vld [vmem:[#allocation2 + $0x3e8] sm:$0xff]
    %v233 = vld [vmem:[#allocation2 + $0x3f0] sm:$0xff]
    %v234 = vld [vmem:[#allocation2 + $0x3f8] sm:$0xff]
    %v235 = vld [vmem:[#allocation2 + $0x400] sm:$0xff]
    %v236 = vld [vmem:[#allocation2 + $0x408] sm:$0xff]
    %v237 = vld [vmem:[#allocation2 + $0x410] sm:$0xff]
    %v238 = vld [vmem:[#allocation2 + $0x418] sm:$0xff]
    %v239 = vld [vmem:[#allocation2 + $0x420] sm:$0xff]
    %v240 = vld [vmem:[#allocation2 + $0x428] sm:$0xff]
    %v241 = vld [vmem:[#allocation2 + $0x430] sm:$0xff]
    %v242 = vld [vmem:[#allocation2 + $0x438] sm:$0xff]
    %v243 = vld [vmem:[#allocation2 + $0x440] sm:$0xff]
    %v244 = vld [vmem:[#allocation2 + $0x448] sm:$0xff]
    %v245 = vld [vmem:[#allocation2 + $0x450] sm:$0xff]
    %v246 = vld [vmem:[#allocation2 + $0x458] sm:$0xff]
    %v247 = vld [vmem:[#allocation2 + $0x460] sm:$0xff]
    %v248 = vld [vmem:[#allocation2 + $0x468] sm:$0xff]
    %v249 = vld [vmem:[#allocation2 + $0x470] sm:$0xff]
    %v250 = vld [vmem:[#allocation2 + $0x478] sm:$0xff]
    %v251 = vld [vmem:[#allocation2 + $0x480] sm:$0xff]
    %v252 = vld [vmem:[#allocation2 + $0x488] sm:$0xff]
    %v253 = vld [vmem:[#allocation2 + $0x490] sm:$0xff]
    %v254 = vld [vmem:[#allocation2 + $0x498] sm:$0xff]
    %v255 = vld [vmem:[#allocation2 + $0x4a0] sm:$0xff]
    %v256 = vld [vmem:[#allocation2 + $0x4a8] sm:$0xff]
    %v257 = vld [vmem:[#allocation2 + $0x4b0] sm:$0xff]
    %v258 = vld [vmem:[#allocation2 + $0x4b8] sm:$0xff]
    %v259 = vld [vmem:[#allocation2 + $0x4c0] sm:$0xff]
    %v260 = vld [vmem:[#allocation2 + $0x4c8] sm:$0xff]
    %v261 = vld [vmem:[#allocation2 + $0x4d0] sm:$0xff]
    %v262 = vld [vmem:[#allocation2 + $0x4d8] sm:$0xff]
    %v263 = vld [vmem:[#allocation2 + $0x4e0] sm:$0xff]
    %v264 = vld [vmem:[#allocation2 + $0x4e8] sm:$0xff]
    %v265 = vld [vmem:[#allocation2 + $0x4f0] sm:$0xff]
    %v266 = vld [vmem:[#allocation2 + $0x4f8] sm:$0xff]
    %v267 = vld [vmem:[#allocation2 + $0x500] sm:$0xff]
    %v268 = vld [vmem:[#allocation2 + $0x508] sm:$0xff]
    %v269 = vld [vmem:[#allocation2 + $0x510] sm:$0xff]
    %v270 = vld [vmem:[#allocation2 + $0x518] sm:$0xff]
    %v271 = vld [vmem:[#allocation2 + $0x520] sm:$0xff]
    %v272 = vld [vmem:[#allocation2 + $0x528] sm:$0xff]
    %v273 = vld [vmem:[#allocation2 + $0x530] sm:$0xff]
    %v274 = vld [vmem:[#allocation2 + $0x538] sm:$0xff]
    %v275 = vld [vmem:[#allocation2 + $0x540] sm:$0xff]
    %v276 = vld [vmem:[#allocation2 + $0x548] sm:$0xff]
    %v277 = vld [vmem:[#allocation2 + $0x550] sm:$0xff]
    %v278 = vld [vmem:[#allocation2 + $0x558] sm:$0xff]
    %v279 = vld [vmem:[#allocation2 + $0x560] sm:$0xff]
    %v280 = vld [vmem:[#allocation2 + $0x568] sm:$0xff]
    %v281 = vld [vmem:[#allocation2 + $0x570] sm:$0xff]
    %v282 = vld [vmem:[#allocation2 + $0x578] sm:$0xff]
    %v283 = vld [vmem:[#allocation2 + $0x580] sm:$0xff]
    %v284 = vld [vmem:[#allocation2 + $0x588] sm:$0xff]
    %v285 = vld [vmem:[#allocation2 + $0x590] sm:$0xff]
    %v286 = vld [vmem:[#allocation2 + $0x598] sm:$0xff]
    %v287 = vld [vmem:[#allocation2 + $0x5a0] sm:$0xff]
    %v288 = vld [vmem:[#allocation2 + $0x5a8] sm:$0xff]
    %v289 = vld [vmem:[#allocation2 + $0x5b0] sm:$0xff]
    %v290 = vld [vmem:[#allocation2 + $0x5b8] sm:$0xff]
    %v291 = vld [vmem:[#allocation2 + $0x5c0] sm:$0xff]
    %v292 = vld [vmem:[#allocation2 + $0x5c8] sm:$0xff]
    %v293 = vld [vmem:[#allocation2 + $0x5d0] sm:$0xff]
    %v294 = vld [vmem:[#allocation2 + $0x5d8] sm:$0xff]
    %v295 = vld [vmem:[#allocation2 + $0x5e0] sm:$0xff]
    %v296 = vld [vmem:[#allocation2 + $0x5e8] sm:$0xff]
    %v297 = vld [vmem:[#allocation2 + $0x5f0] sm:$0xff]
    %v298 = vld [vmem:[#allocation2 + $0x5f8] sm:$0xff]
    %v299 = vld [vmem:[#allocation2 + $0x600] sm:$0xff]
    %v300 = vld [vmem:[#allocation2 + $0x608] sm:$0xff]
    %v301 = vld [vmem:[#allocation2 + $0x610] sm:$0xff]
    %v302 = vld [vmem:[#allocation2 + $0x618] sm:$0xff]
    %v303 = vld [vmem:[#allocation2 + $0x620] sm:$0xff]
    %v304 = vld [vmem:[#allocation2 + $0x628] sm:$0xff]
    %v305 = vld [vmem:[#allocation2 + $0x630] sm:$0xff]
    %v306 = vld [vmem:[#allocation2 + $0x638] sm:$0xff]
    %v307 = vld [vmem:[#allocation2 + $0x640] sm:$0xff]
    %v308 = vld [vmem:[#allocation2 + $0x648] sm:$0xff]
    %v309 = vld [vmem:[#allocation2 + $0x650] sm:$0xff]
    %v310 = vld [vmem:[#allocation2 + $0x658] sm:$0xff]
    %v311 = vld [vmem:[#allocation2 + $0x660] sm:$0xff]
    %v312 = vld [vmem:[#allocation2 + $0x668] sm:$0xff]
    %v313 = vld [vmem:[#allocation2 + $0x670] sm:$0xff]
    %v314 = vld [vmem:[#allocation2 + $0x678] sm:$0xff]
    %v315 = vld [vmem:[#allocation2 + $0x680] sm:$0xff]
    %v316 = vld [vmem:[#allocation2 + $0x688] sm:$0xff]
    %v317 = vld [vmem:[#allocation2 + $0x690] sm:$0xff]
    %v318 = vld [vmem:[#allocation2 + $0x698] sm:$0xff]
    %v319 = vld [vmem:[#allocation2 + $0x6a0] sm:$0xff]
    %v320 = vld [vmem:[#allocation2 + $0x6a8] sm:$0xff]
    %v321 = vld [vmem:[#allocation2 + $0x6b0] sm:$0xff]
    %v322 = vld [vmem:[#allocation2 + $0x6b8] sm:$0xff]
    %v323 = vld [vmem:[#allocation2 + $0x6c0] sm:$0xff]
    %v324 = vld [vmem:[#allocation2 + $0x6c8] sm:$0xff]
    %v325 = vld [vmem:[#allocation2 + $0x6d0] sm:$0xff]
    %v326 = vld [vmem:[#allocation2 + $0x6d8] sm:$0xff]
    %v327 = vld [vmem:[#allocation2 + $0x6e0] sm:$0xff]
    %v328 = vld [vmem:[#allocation2 + $0x6e8] sm:$0xff]
    %v329 = vld [vmem:[#allocation2 + $0x6f0] sm:$0xff]
    %v330 = vld [vmem:[#allocation2 + $0x6f8] sm:$0xff]
    %v331 = vld [vmem:[#allocation2 + $0x700] sm:$0xff]
    %v332 = vld [vmem:[#allocation2 + $0x708] sm:$0xff]
    %v333 = vld [vmem:[#allocation2 + $0x710] sm:$0xff]
    %v334 = vld [vmem:[#allocation2 + $0x718] sm:$0xff]
    %v335 = vld [vmem:[#allocation2 + $0x720] sm:$0xff]
    %v336 = vld [vmem:[#allocation2 + $0x728] sm:$0xff]
    %v337 = vld [vmem:[#allocation2 + $0x730] sm:$0xff]
    %v338 = vld [vmem:[#allocation2 + $0x738] sm:$0xff]
    %v339 = vld [vmem:[#allocation2 + $0x740] sm:$0xff]
    %v340 = vld [vmem:[#allocation2 + $0x748] sm:$0xff]
    %v341 = vld [vmem:[#allocation2 + $0x750] sm:$0xff]
    %v342 = vld [vmem:[#allocation2 + $0x758] sm:$0xff]
    %v343 = vld [vmem:[#allocation2 + $0x760] sm:$0xff]
    %v344 = vld [vmem:[#allocation2 + $0x768] sm:$0xff]
    %v345 = vld [vmem:[#allocation2 + $0x770] sm:$0xff]
    %v346 = vld [vmem:[#allocation2 + $0x778] sm:$0xff]
    %v347 = vld [vmem:[#allocation2 + $0x780] sm:$0xff]
    %v348 = vld [vmem:[#allocation2 + $0x788] sm:$0xff]
    %v349 = vld [vmem:[#allocation2 + $0x790] sm:$0xff]
    %v350 = vld [vmem:[#allocation2 + $0x798] sm:$0xff]
    %v351 = vld [vmem:[#allocation2 + $0x7a0] sm:$0xff]
    %v352 = vld [vmem:[#allocation2 + $0x7a8] sm:$0xff]
    %v353 = vld [vmem:[#allocation2 + $0x7b0] sm:$0xff]
    %v354 = vld [vmem:[#allocation2 + $0x7b8] sm:$0xff]
    %v355 = vld [vmem:[#allocation2 + $0x7c0] sm:$0xff]
    %v356 = vld [vmem:[#allocation2 + $0x7c8] sm:$0xff]
    %v357 = vld [vmem:[#allocation2 + $0x7d0] sm:$0xff]
    %v358 = vld [vmem:[#allocation2 + $0x7d8] sm:$0xff]
    %v359 = vld [vmem:[#allocation2 + $0x7e0] sm:$0xff]
    %v360 = vld [vmem:[#allocation2 + $0x7e8] sm:$0xff]
    %v361 = vld [vmem:[#allocation2 + $0x7f0] sm:$0xff]
    %v362 = vld [vmem:[#allocation2 + $0x7f8] sm:$0xff]
    %v363 = vld [vmem:[#allocation2 + $0x800] sm:$0xff]
    %v364 = vld [vmem:[#allocation2 + $0x808] sm:$0xff]
    %v365 = vld [vmem:[#allocation2 + $0x810] sm:$0xff]
    %v366 = vld [vmem:[#allocation2 + $0x818] sm:$0xff]
    %v367 = vld [vmem:[#allocation2 + $0x820] sm:$0xff]
    %v368 = vld [vmem:[#allocation2 + $0x828] sm:$0xff]
    %v369 = vld [vmem:[#allocation2 + $0x830] sm:$0xff]
    %v370 = vld [vmem:[#allocation2 + $0x838] sm:$0xff]
    %v371 = vld [vmem:[#allocation2 + $0x840] sm:$0xff]
    %v372 = vld [vmem:[#allocation2 + $0x848] sm:$0xff]
    %v373 = vld [vmem:[#allocation2 + $0x850] sm:$0xff]
    %v374 = vld [vmem:[#allocation2 + $0x858] sm:$0xff]
    %v375 = vld [vmem:[#allocation2 + $0x860] sm:$0xff]
    %v376 = vld [vmem:[#allocation2 + $0x868] sm:$0xff]
    %v377 = vld [vmem:[#allocation2 + $0x870] sm:$0xff]
    %v378 = vld [vmem:[#allocation2 + $0x878] sm:$0xff]
    %v379 = vld [vmem:[#allocation2 + $0x880] sm:$0xff]
    %v380 = vld [vmem:[#allocation2 + $0x888] sm:$0xff]
    %v381 = vld [vmem:[#allocation2 + $0x890] sm:$0xff]
    %v382 = vld [vmem:[#allocation2 + $0x898] sm:$0xff]
    %v383 = vld [vmem:[#allocation2 + $0x8a0] sm:$0xff]
    %v384 = vld [vmem:[#allocation2 + $0x8a8] sm:$0xff]
    %v385 = vld [vmem:[#allocation2 + $0x8b0] sm:$0xff]
    %v386 = vld [vmem:[#allocation2 + $0x8b8] sm:$0xff]
    %v387 = vld [vmem:[#allocation2 + $0x8c0] sm:$0xff]
    %v388 = vld [vmem:[#allocation2 + $0x8c8] sm:$0xff]
    %v389 = vld [vmem:[#allocation2 + $0x8d0] sm:$0xff]
    %v390 = vld [vmem:[#allocation2 + $0x8d8] sm:$0xff]
    %v391 = vld [vmem:[#allocation2 + $0x8e0] sm:$0xff]
    %v392 = vld [vmem:[#allocation2 + $0x8e8] sm:$0xff]
    %v393 = vld [vmem:[#allocation2 + $0x8f0] sm:$0xff]
    %v394 = vld [vmem:[#allocation2 + $0x8f8] sm:$0xff]
    %v395 = vld [vmem:[#allocation2 + $0x900] sm:$0xff]
    %v396 = vld [vmem:[#allocation2 + $0x908] sm:$0xff]
    %v397 = vld [vmem:[#allocation2 + $0x910] sm:$0xff]
    %v398 = vld [vmem:[#allocation2 + $0x918] sm:$0xff]
    %v399 = vld [vmem:[#allocation2 + $0x920] sm:$0xff]
    %v400 = vld [vmem:[#allocation2 + $0x928] sm:$0xff]
    %v401 = vld [vmem:[#allocation2 + $0x930] sm:$0xff]
    %v402 = vld [vmem:[#allocation2 + $0x938] sm:$0xff]
    %v403 = vld [vmem:[#allocation2 + $0x940] sm:$0xff]
    %v404 = vld [vmem:[#allocation2 + $0x948] sm:$0xff]
    %v405 = vld [vmem:[#allocation2 + $0x950] sm:$0xff]
    %v406 = vld [vmem:[#allocation2 + $0x958] sm:$0xff]
    %v407 = vld [vmem:[#allocation2 + $0x960] sm:$0xff]
    %v408 = vld [vmem:[#allocation2 + $0x968] sm:$0xff]
    %v409 = vld [vmem:[#allocation2 + $0x970] sm:$0xff]
    %v410 = vld [vmem:[#allocation2 + $0x978] sm:$0xff]
    %v411 = vld [vmem:[#allocation2 + $0x980] sm:$0xff]
    %v412 = vld [vmem:[#allocation2 + $0x988] sm:$0xff]
    %v413 = vld [vmem:[#allocation2 + $0x990] sm:$0xff]
    %v414 = vld [vmem:[#allocation2 + $0x998] sm:$0xff]
    %v415 = vld [vmem:[#allocation2 + $0x9a0] sm:$0xff]
    %v416 = vld [vmem:[#allocation2 + $0x9a8] sm:$0xff]
    %v417 = vld [vmem:[#allocation2 + $0x9b0] sm:$0xff]
    %v418 = vld [vmem:[#allocation2 + $0x9b8] sm:$0xff]
    %v419 = vld [vmem:[#allocation2 + $0x9c0] sm:$0xff]
    %v420 = vld [vmem:[#allocation2 + $0x9c8] sm:$0xff]
    %v421 = vld [vmem:[#allocation2 + $0x9d0] sm:$0xff]
    %v422 = vld [vmem:[#allocation2 + $0x9d8] sm:$0xff]
    %v423 = vld [vmem:[#allocation2 + $0x9e0] sm:$0xff]
    %v424 = vld [vmem:[#allocation2 + $0x9e8] sm:$0xff]
    %v425 = vld [vmem:[#allocation2 + $0x9f0] sm:$0xff]
    %v426 = vld [vmem:[#allocation2 + $0x9f8] sm:$0xff]
    %v427 = vld [vmem:[#allocation2 + $0xa00] sm:$0xff]
    %v428 = vld [vmem:[#allocation2 + $0xa08] sm:$0xff]
    %v429 = vld [vmem:[#allocation2 + $0xa10] sm:$0xff]
    %v430 = vld [vmem:[#allocation2 + $0xa18] sm:$0xff]
    %v431 = vld [vmem:[#allocation2 + $0xa20] sm:$0xff]
    %v432 = vld [vmem:[#allocation2 + $0xa28] sm:$0xff]
    %v433 = vld [vmem:[#allocation2 + $0xa30] sm:$0xff]
    %v434 = vld [vmem:[#allocation2 + $0xa38] sm:$0xff]
    %v435 = vld [vmem:[#allocation2 + $0xa40] sm:$0xff]
    %v436 = vld [vmem:[#allocation2 + $0xa48] sm:$0xff]
    %v437 = vld [vmem:[#allocation2 + $0xa50] sm:$0xff]
    %v438 = vld [vmem:[#allocation2 + $0xa58] sm:$0xff]
    %v439 = vld [vmem:[#allocation2 + $0xa60] sm:$0xff]
    %v440 = vld [vmem:[#allocation2 + $0xa68] sm:$0xff]
    %v441 = vld [vmem:[#allocation2 + $0xa70] sm:$0xff]
    %v442 = vld [vmem:[#allocation2 + $0xa78] sm:$0xff]
    %v443 = vld [vmem:[#allocation2 + $0xa80] sm:$0xff]
    %v444 = vld [vmem:[#allocation2 + $0xa88] sm:$0xff]
    %v445 = vld [vmem:[#allocation2 + $0xa90] sm:$0xff]
    %v446 = vld [vmem:[#allocation2 + $0xa98] sm:$0xff]
    %v447 = vld [vmem:[#allocation2 + $0xaa0] sm:$0xff]
    %v448 = vld [vmem:[#allocation2 + $0xaa8] sm:$0xff]
    %v449 = vld [vmem:[#allocation2 + $0xab0] sm:$0xff]
    %v450 = vld [vmem:[#allocation2 + $0xab8] sm:$0xff]
    %v451 = vld [vmem:[#allocation2 + $0xac0] sm:$0xff]
    %v452 = vld [vmem:[#allocation2 + $0xac8] sm:$0xff]
    %v453 = vld [vmem:[#allocation2 + $0xad0] sm:$0xff]
    %v454 = vld [vmem:[#allocation2 + $0xad8] sm:$0xff]
    %v455 = vld [vmem:[#allocation2 + $0xae0] sm:$0xff]
    %v456 = vld [vmem:[#allocation2 + $0xae8] sm:$0xff]
    %v457 = vld [vmem:[#allocation2 + $0xaf0] sm:$0xff]
    %v458 = vld [vmem:[#allocation2 + $0xaf8] sm:$0xff]
    %v459 = vld [vmem:[#allocation2 + $0xb00] sm:$0xff]
    %v460 = vld [vmem:[#allocation2 + $0xb08] sm:$0xff]
    %v461 = vld [vmem:[#allocation2 + $0xb10] sm:$0xff]
    %v462 = vld [vmem:[#allocation2 + $0xb18] sm:$0xff]
    %v463 = vld [vmem:[#allocation2 + $0xb20] sm:$0xff]
    %v464 = vld [vmem:[#allocation2 + $0xb28] sm:$0xff]
    %v465 = vld [vmem:[#allocation2 + $0xb30] sm:$0xff]
    %v466 = vld [vmem:[#allocation2 + $0xb38] sm:$0xff]
    %v467 = vld [vmem:[#allocation2 + $0xb40] sm:$0xff]
    %v468 = vld [vmem:[#allocation2 + $0xb48] sm:$0xff]
    %v469 = vld [vmem:[#allocation2 + $0xb50] sm:$0xff]
    %v470 = vld [vmem:[#allocation2 + $0xb58] sm:$0xff]
    %v471 = vld [vmem:[#allocation2 + $0xb60] sm:$0xff]
    %v472 = vld [vmem:[#allocation2 + $0xb68] sm:$0xff]
    %v473 = vld [vmem:[#allocation2 + $0xb70] sm:$0xff]
    %v474 = vld [vmem:[#allocation2 + $0xb78] sm:$0xff]
    %v475 = vld [vmem:[#allocation2 + $0xb80] sm:$0xff]
    %v476 = vld [vmem:[#allocation2 + $0xb88] sm:$0xff]
    %v477 = vld [vmem:[#allocation2 + $0xb90] sm:$0xff]
    %v478 = vld [vmem:[#allocation2 + $0xb98] sm:$0xff]
    %v479 = vld [vmem:[#allocation2 + $0xba0] sm:$0xff]
    %v480 = vld [vmem:[#allocation2 + $0xba8] sm:$0xff]
    %v481 = vld [vmem:[#allocation2 + $0xbb0] sm:$0xff]
    %v482 = vld [vmem:[#allocation2 + $0xbb8] sm:$0xff]
    %v483 = vld [vmem:[#allocation2 + $0xbc0] sm:$0xff]
    %v484 = vld [vmem:[#allocation2 + $0xbc8] sm:$0xff]
    %v485 = vld [vmem:[#allocation2 + $0xbd0] sm:$0xff]
    %v486 = vld [vmem:[#allocation2 + $0xbd8] sm:$0xff]
    %v487 = vld [vmem:[#allocation2 + $0xbe0] sm:$0xff]
    %v488 = vld [vmem:[#allocation2 + $0xbe8] sm:$0xff]
    %v489 = vld [vmem:[#allocation2 + $0xbf0] sm:$0xff]
    %v490 = vld [vmem:[#allocation2 + $0xbf8] sm:$0xff]
    %v491 = vld [vmem:[#allocation2 + $0xc00] sm:$0xff]
    %v492 = vld [vmem:[#allocation2 + $0xc08] sm:$0xff]
    %v493 = vld [vmem:[#allocation2 + $0xc10] sm:$0xff]
    %v494 = vld [vmem:[#allocation2 + $0xc18] sm:$0xff]
    %v495 = vld [vmem:[#allocation2 + $0xc20] sm:$0xff]
    %v496 = vld [vmem:[#allocation2 + $0xc28] sm:$0xff]
    %v497 = vld [vmem:[#allocation2 + $0xc30] sm:$0xff]
    %v498 = vld [vmem:[#allocation2 + $0xc38] sm:$0xff]
    %v499 = vld [vmem:[#allocation2 + $0xc40] sm:$0xff]
    %v500 = vld [vmem:[#allocation2 + $0xc48] sm:$0xff]
    %v501 = vld [vmem:[#allocation2 + $0xc50] sm:$0xff]
    %v502 = vld [vmem:[#allocation2 + $0xc58] sm:$0xff]
    %v503 = vld [vmem:[#allocation2 + $0xc60] sm:$0xff]
    %v504 = vld [vmem:[#allocation2 + $0xc68] sm:$0xff]
    %v505 = vld [vmem:[#allocation2 + $0xc70] sm:$0xff]
    %v506 = vld [vmem:[#allocation2 + $0xc78] sm:$0xff]
    %v507 = vld [vmem:[#allocation2 + $0xc80] sm:$0xff]
    %v508 = vld [vmem:[#allocation2 + $0xc88] sm:$0xff]
    %v509 = vld [vmem:[#allocation2 + $0xc90] sm:$0xff]
    %v510 = vld [vmem:[#allocation2 + $0xc98] sm:$0xff]
    %v511 = vld [vmem:[#allocation2 + $0xca0] sm:$0xff]
    %v512 = vld [vmem:[#allocation2 + $0xca8] sm:$0xff]
    %v513 = vld [vmem:[#allocation2 + $0xcb0] sm:$0xff]
    %v514 = vld [vmem:[#allocation2 + $0xcb8] sm:$0xff]
    %v515 = vld [vmem:[#allocation2 + $0xcc0] sm:$0xff]
    %v516 = vld [vmem:[#allocation2 + $0xcc8] sm:$0xff]
    %v517 = vld [vmem:[#allocation2 + $0xcd0] sm:$0xff]
    %v518 = vld [vmem:[#allocation2 + $0xcd8] sm:$0xff]
    %v519 = vld [vmem:[#allocation2 + $0xce0] sm:$0xff]
    %v520 = vld [vmem:[#allocation2 + $0xce8] sm:$0xff]
    %v521 = vld [vmem:[#allocation2 + $0xcf0] sm:$0xff]
    %v522 = vld [vmem:[#allocation2 + $0xcf8] sm:$0xff]
    %v523 = vld [vmem:[#allocation2 + $0xd00] sm:$0xff]
    %v524 = vld [vmem:[#allocation2 + $0xd08] sm:$0xff]
    %v525 = vld [vmem:[#allocation2 + $0xd10] sm:$0xff]
    %v526 = vld [vmem:[#allocation2 + $0xd18] sm:$0xff]
    %v527 = vld [vmem:[#allocation2 + $0xd20] sm:$0xff]
    %v528 = vld [vmem:[#allocation2 + $0xd28] sm:$0xff]
    %v529 = vld [vmem:[#allocation2 + $0xd30] sm:$0xff]
    %v530 = vld [vmem:[#allocation2 + $0xd38] sm:$0xff]
    %v531 = vld [vmem:[#allocation2 + $0xd40] sm:$0xff]
    %v532 = vld [vmem:[#allocation2 + $0xd48] sm:$0xff]
    %v533 = vld [vmem:[#allocation2 + $0xd50] sm:$0xff]
    %v534 = vld [vmem:[#allocation2 + $0xd58] sm:$0xff]
    %v535 = vld [vmem:[#allocation2 + $0xd60] sm:$0xff]
    %v536 = vld [vmem:[#allocation2 + $0xd68] sm:$0xff]
    %v537 = vld [vmem:[#allocation2 + $0xd70] sm:$0xff]
    %v538 = vld [vmem:[#allocation2 + $0xd78] sm:$0xff]
    %v539 = vld [vmem:[#allocation2 + $0xd80] sm:$0xff]
    %v540 = vld [vmem:[#allocation2 + $0xd88] sm:$0xff]
    %v541 = vld [vmem:[#allocation2 + $0xd90] sm:$0xff]
    %v542 = vld [vmem:[#allocation2 + $0xd98] sm:$0xff]
    %v543 = vld [vmem:[#allocation2 + $0xda0] sm:$0xff]
    %v544 = vld [vmem:[#allocation2 + $0xda8] sm:$0xff]
    %v545 = vld [vmem:[#allocation2 + $0xdb0] sm:$0xff]
    %v546 = vld [vmem:[#allocation2 + $0xdb8] sm:$0xff]
    %v547 = vld [vmem:[#allocation2 + $0xdc0] sm:$0xff]
    %v548 = vld [vmem:[#allocation2 + $0xdc8] sm:$0xff]
    %v549 = vld [vmem:[#allocation2 + $0xdd0] sm:$0xff]
    %v550 = vld [vmem:[#allocation2 + $0xdd8] sm:$0xff]
    %v551 = vld [vmem:[#allocation2 + $0xde0] sm:$0xff]
    %v552 = vld [vmem:[#allocation2 + $0xde8] sm:$0xff]
    %v553 = vld [vmem:[#allocation2 + $0xdf0] sm:$0xff]
    %v554 = vld [vmem:[#allocation2 + $0xdf8] sm:$0xff]
    %v555 = vld [vmem:[#allocation2 + $0xe00] sm:$0xff]
    %v556 = vld [vmem:[#allocation2 + $0xe08] sm:$0xff]
    %v557 = vld [vmem:[#allocation2 + $0xe10] sm:$0xff]
    %v558 = vld [vmem:[#allocation2 + $0xe18] sm:$0xff]
    %v559 = vld [vmem:[#allocation2 + $0xe20] sm:$0xff]
    %v560 = vld [vmem:[#allocation2 + $0xe28] sm:$0xff]
    %v561 = vld [vmem:[#allocation2 + $0xe30] sm:$0xff]
    %v562 = vld [vmem:[#allocation2 + $0xe38] sm:$0xff]
    %v563 = vld [vmem:[#allocation2 + $0xe40] sm:$0xff]
    %v564 = vld [vmem:[#allocation2 + $0xe48] sm:$0xff]
    %v565 = vld [vmem:[#allocation2 + $0xe50] sm:$0xff]
    %v566 = vld [vmem:[#allocation2 + $0xe58] sm:$0xff]
    %v567 = vld [vmem:[#allocation2 + $0xe60] sm:$0xff]
    %v568 = vld [vmem:[#allocation2 + $0xe68] sm:$0xff]
    %v569 = vld [vmem:[#allocation2 + $0xe70] sm:$0xff]
    %v570 = vld [vmem:[#allocation2 + $0xe78] sm:$0xff]
    %v571 = vld [vmem:[#allocation2 + $0xe80] sm:$0xff]
    %v572 = vld [vmem:[#allocation2 + $0xe88] sm:$0xff]
    %v573 = vld [vmem:[#allocation2 + $0xe90] sm:$0xff]
    %v574 = vld [vmem:[#allocation2 + $0xe98] sm:$0xff]
    %v575 = vld [vmem:[#allocation2 + $0xea0] sm:$0xff]
    %v576 = vld [vmem:[#allocation2 + $0xea8] sm:$0xff]
    %v577 = vld [vmem:[#allocation2 + $0xeb0] sm:$0xff]
    %v578 = vld [vmem:[#allocation2 + $0xeb8] sm:$0xff]
    %v579 = vld [vmem:[#allocation2 + $0xec0] sm:$0xff]
    %v580 = vld [vmem:[#allocation2 + $0xec8] sm:$0xff]
    %v581 = vld [vmem:[#allocation2 + $0xed0] sm:$0xff]
    %v582 = vld [vmem:[#allocation2 + $0xed8] sm:$0xff]
    %v583 = vld [vmem:[#allocation2 + $0xee0] sm:$0xff]
    %v584 = vld [vmem:[#allocation2 + $0xee8] sm:$0xff]
    %v585 = vld [vmem:[#allocation2 + $0xef0] sm:$0xff]
    %v586 = vld [vmem:[#allocation2 + $0xef8] sm:$0xff]
    %v587 = vld [vmem:[#allocation2 + $0xf00] sm:$0xff]
    %v588 = vld [vmem:[#allocation2 + $0xf08] sm:$0xff]
    %v589 = vld [vmem:[#allocation2 + $0xf10] sm:$0xff]
    %v590 = vld [vmem:[#allocation2 + $0xf18] sm:$0xff]
    %v591 = vld [vmem:[#allocation2 + $0xf20] sm:$0xff]
    %v592 = vld [vmem:[#allocation2 + $0xf28] sm:$0xff]
    %v593 = vld [vmem:[#allocation2 + $0xf30] sm:$0xff]
    %v594 = vld [vmem:[#allocation2 + $0xf38] sm:$0xff]
    %v595 = vld [vmem:[#allocation2 + $0xf40] sm:$0xff]
    %v596 = vld [vmem:[#allocation2 + $0xf48] sm:$0xff]
    %v597 = vld [vmem:[#allocation2 + $0xf50] sm:$0xff]
    %v598 = vld [vmem:[#allocation2 + $0xf58] sm:$0xff]
    %v599 = vld [vmem:[#allocation2 + $0xf60] sm:$0xff]
    %v600 = vld [vmem:[#allocation2 + $0xf68] sm:$0xff]
    %v601 = vld [vmem:[#allocation2 + $0xf70] sm:$0xff]
    %v602 = vld [vmem:[#allocation2 + $0xf78] sm:$0xff]
    %v603 = vld [vmem:[#allocation2 + $0xf80] sm:$0xff]
    %v604 = vld [vmem:[#allocation2 + $0xf88] sm:$0xff]
    %v605 = vld [vmem:[#allocation2 + $0xf90] sm:$0xff]
    %v606 = vld [vmem:[#allocation2 + $0xf98] sm:$0xff]
    %v607 = vld [vmem:[#allocation2 + $0xfa0] sm:$0xff]
    %v608 = vld [vmem:[#allocation2 + $0xfa8] sm:$0xff]
    %v609 = vld [vmem:[#allocation2 + $0xfb0] sm:$0xff]
    %v610 = vld [vmem:[#allocation2 + $0xfb8] sm:$0xff]
    %v611 = vld [vmem:[#allocation2 + $0xfc0] sm:$0xff]
    %v612 = vld [vmem:[#allocation2 + $0xfc8] sm:$0xff]
    %v613 = vld [vmem:[#allocation2 + $0xfd0] sm:$0xff]
    %v614 = vld [vmem:[#allocation2 + $0xfd8] sm:$0xff]
    %v615 = vld [vmem:[#allocation2 + $0xfe0] sm:$0xff]
    %v616 = vld [vmem:[#allocation2 + $0xfe8] sm:$0xff]
    %v617 = vld [vmem:[#allocation2 + $0xff0] sm:$0xff]
    %v618 = vld [vmem:[#allocation2 + $0xff8] sm:$0xff]
    %v619 = vld [vmem:[#allocation2 + $0x1000] sm:$0xff]
    %v620 = vld [vmem:[#allocation2 + $0x1008] sm:$0xff]
    %v621 = vld [vmem:[#allocation2 + $0x1010] sm:$0xff]
    %v622 = vld [vmem:[#allocation2 + $0x1018] sm:$0xff]
    %v623 = vld [vmem:[#allocation2 + $0x1020] sm:$0xff]
    %v624 = vld [vmem:[#allocation2 + $0x1028] sm:$0xff]
    %v625 = vld [vmem:[#allocation2 + $0x1030] sm:$0xff]
    %v626 = vld [vmem:[#allocation2 + $0x1038] sm:$0xff]
    %v627 = vld [vmem:[#allocation2 + $0x1040] sm:$0xff]
    %v628 = vld [vmem:[#allocation2 + $0x1048] sm:$0xff]
    %v629 = vld [vmem:[#allocation2 + $0x1050] sm:$0xff]
    %v630 = vld [vmem:[#allocation2 + $0x1058] sm:$0xff]
    %v631 = vld [vmem:[#allocation2 + $0x1060] sm:$0xff]
    %v632 = vld [vmem:[#allocation2 + $0x1068] sm:$0xff]
    %v633 = vld [vmem:[#allocation2 + $0x1070] sm:$0xff]
    %v634 = vld [vmem:[#allocation2 + $0x1078] sm:$0xff]
    %v635 = vld [vmem:[#allocation2 + $0x1080] sm:$0xff]
    %v636 = vld [vmem:[#allocation2 + $0x1088] sm:$0xff]
    %v637 = vld [vmem:[#allocation2 + $0x1090] sm:$0xff]
    %v638 = vld [vmem:[#allocation2 + $0x1098] sm:$0xff]
    %v639 = vld [vmem:[#allocation2 + $0x10a0] sm:$0xff]
    %v640 = vld [vmem:[#allocation2 + $0x10a8] sm:$0xff]
    %v641 = vld [vmem:[#allocation2 + $0x10b0] sm:$0xff]
    %v642 = vld [vmem:[#allocation2 + $0x10b8] sm:$0xff]
    %v643 = vld [vmem:[#allocation2 + $0x10c0] sm:$0xff]
    %v644 = vld [vmem:[#allocation2 + $0x10c8] sm:$0xff]
    %v645 = vld [vmem:[#allocation2 + $0x10d0] sm:$0xff]
    %v646 = vld [vmem:[#allocation2 + $0x10d8] sm:$0xff]
    %v647 = vld [vmem:[#allocation2 + $0x10e0] sm:$0xff]
    %v648 = vld [vmem:[#allocation2 + $0x10e8] sm:$0xff]
    %v649 = vld [vmem:[#allocation2 + $0x10f0] sm:$0xff]
    %v650 = vld [vmem:[#allocation2 + $0x10f8] sm:$0xff]
    %v651 = vld [vmem:[#allocation2 + $0x1100] sm:$0xff]
    %v652 = vld [vmem:[#allocation2 + $0x1108] sm:$0xff]
    %v653 = vld [vmem:[#allocation2 + $0x1110] sm:$0xff]
    %v654 = vld [vmem:[#allocation2 + $0x1118] sm:$0xff]
    %v655 = vld [vmem:[#allocation2 + $0x1120] sm:$0xff]
    %v656 = vld [vmem:[#allocation2 + $0x1128] sm:$0xff]
    %v657 = vld [vmem:[#allocation2 + $0x1130] sm:$0xff]
    %v658 = vld [vmem:[#allocation2 + $0x1138] sm:$0xff]
    %v659 = vld [vmem:[#allocation2 + $0x1140] sm:$0xff]
    %v660 = vld [vmem:[#allocation2 + $0x1148] sm:$0xff]
    %v661 = vld [vmem:[#allocation2 + $0x1150] sm:$0xff]
    %v662 = vld [vmem:[#allocation2 + $0x1158] sm:$0xff]
    %v663 = vld [vmem:[#allocation2 + $0x1160] sm:$0xff]
    %v664 = vld [vmem:[#allocation2 + $0x1168] sm:$0xff]
    %v665 = vld [vmem:[#allocation2 + $0x1170] sm:$0xff]
    %v666 = vld [vmem:[#allocation2 + $0x1178] sm:$0xff]
    %v667 = vld [vmem:[#allocation2 + $0x1180] sm:$0xff]
    %v668 = vld [vmem:[#allocation2 + $0x1188] sm:$0xff]
    %v669 = vld [vmem:[#allocation2 + $0x1190] sm:$0xff]
    %v670 = vld [vmem:[#allocation2 + $0x1198] sm:$0xff]
    %v671 = vld [vmem:[#allocation2 + $0x11a0] sm:$0xff]
    %v672 = vld [vmem:[#allocation2 + $0x11a8] sm:$0xff]
    %v673 = vld [vmem:[#allocation2 + $0x11b0] sm:$0xff]
    %v674 = vld [vmem:[#allocation2 + $0x11b8] sm:$0xff]
    %v675 = vld [vmem:[#allocation2 + $0x11c0] sm:$0xff]
    %v676 = vld [vmem:[#allocation2 + $0x11c8] sm:$0xff]
    %v677 = vld [vmem:[#allocation2 + $0x11d0] sm:$0xff]
    %v678 = vld [vmem:[#allocation2 + $0x11d8] sm:$0xff]
    %v679 = vld [vmem:[#allocation2 + $0x11e0] sm:$0xff]
    %v680 = vld [vmem:[#allocation2 + $0x11e8] sm:$0xff]
    %v681 = vld [vmem:[#allocation2 + $0x11f0] sm:$0xff]
    %v682 = vld [vmem:[#allocation2 + $0x11f8] sm:$0xff]
    %v683 = vld [vmem:[#allocation2 + $0x1200] sm:$0xff]
    %v684 = vld [vmem:[#allocation2 + $0x1208] sm:$0xff]
    %v685 = vld [vmem:[#allocation2 + $0x1210] sm:$0xff]
    %v686 = vld [vmem:[#allocation2 + $0x1218] sm:$0xff]
    %v687 = vld [vmem:[#allocation2 + $0x1220] sm:$0xff]
    %v688 = vld [vmem:[#allocation2 + $0x1228] sm:$0xff]
    %v689 = vld [vmem:[#allocation2 + $0x1230] sm:$0xff]
    %v690 = vld [vmem:[#allocation2 + $0x1238] sm:$0xff]
    %v691 = vld [vmem:[#allocation2 + $0x1240] sm:$0xff]
    %v692 = vld [vmem:[#allocation2 + $0x1248] sm:$0xff]
    %v693 = vld [vmem:[#allocation2 + $0x1250] sm:$0xff]
    %v694 = vld [vmem:[#allocation2 + $0x1258] sm:$0xff]
    %v695 = vld [vmem:[#allocation2 + $0x1260] sm:$0xff]
    %v696 = vld [vmem:[#allocation2 + $0x1268] sm:$0xff]
    %v697 = vld [vmem:[#allocation2 + $0x1270] sm:$0xff]
    %v698 = vld [vmem:[#allocation2 + $0x1278] sm:$0xff]
    %v699 = vld [vmem:[#allocation2 + $0x1280] sm:$0xff]
    %v700 = vld [vmem:[#allocation2 + $0x1288] sm:$0xff]
    %v701 = vld [vmem:[#allocation2 + $0x1290] sm:$0xff]
    %v702 = vld [vmem:[#allocation2 + $0x1298] sm:$0xff]
    %v703 = vld [vmem:[#allocation2 + $0x12a0] sm:$0xff]
    %v704 = vld [vmem:[#allocation2 + $0x12a8] sm:$0xff]
    %v705 = vld [vmem:[#allocation2 + $0x12b0] sm:$0xff]
    %v706 = vld [vmem:[#allocation2 + $0x12b8] sm:$0xff]
    %v707 = vld [vmem:[#allocation2 + $0x12c0] sm:$0xff]
    %v708 = vld [vmem:[#allocation2 + $0x12c8] sm:$0xff]
    %v709 = vld [vmem:[#allocation2 + $0x12d0] sm:$0xff]
    %v710 = vld [vmem:[#allocation2 + $0x12d8] sm:$0xff]
    %v711 = vld [vmem:[#allocation2 + $0x12e0] sm:$0xff]
    %v712 = vld [vmem:[#allocation2 + $0x12e8] sm:$0xff]
    %v713 = vld [vmem:[#allocation2 + $0x12f0] sm:$0xff]
    %v714 = vld [vmem:[#allocation2 + $0x12f8] sm:$0xff]
    %v715 = vld [vmem:[#allocation2 + $0x1300] sm:$0xff]
    %v716 = vld [vmem:[#allocation2 + $0x1308] sm:$0xff]
    %v717 = vld [vmem:[#allocation2 + $0x1310] sm:$0xff]
    %v718 = vld [vmem:[#allocation2 + $0x1318] sm:$0xff]
    %v719 = vld [vmem:[#allocation2 + $0x1320] sm:$0xff]
    %v720 = vld [vmem:[#allocation2 + $0x1328] sm:$0xff]
    %v721 = vld [vmem:[#allocation2 + $0x1330] sm:$0xff]
    %v722 = vld [vmem:[#allocation2 + $0x1338] sm:$0xff]
    %v723 = vld [vmem:[#allocation2 + $0x1340] sm:$0xff]
    %v724 = vld [vmem:[#allocation2 + $0x1348] sm:$0xff]
    %v725 = vld [vmem:[#allocation2 + $0x1350] sm:$0xff]
    %v726 = vld [vmem:[#allocation2 + $0x1358] sm:$0xff]
    %v727 = vld [vmem:[#allocation2 + $0x1360] sm:$0xff]
    %v728 = vld [vmem:[#allocation2 + $0x1368] sm:$0xff]
    %v729 = vld [vmem:[#allocation2 + $0x1370] sm:$0xff]
    %v730 = vld [vmem:[#allocation2 + $0x1378] sm:$0xff]
    %v731 = vld [vmem:[#allocation2 + $0x1380] sm:$0xff]
    %v732 = vld [vmem:[#allocation2 + $0x1388] sm:$0xff]
    %v733 = vld [vmem:[#allocation2 + $0x1390] sm:$0xff]
    %v734 = vld [vmem:[#allocation2 + $0x1398] sm:$0xff]
    %v735 = vld [vmem:[#allocation2 + $0x13a0] sm:$0xff]
    %v736 = vld [vmem:[#allocation2 + $0x13a8] sm:$0xff]
    %v737 = vld [vmem:[#allocation2 + $0x13b0] sm:$0xff]
    %v738 = vld [vmem:[#allocation2 + $0x13b8] sm:$0xff]
    %v739 = vld [vmem:[#allocation2 + $0x13c0] sm:$0xff]
    %v740 = vld [vmem:[#allocation2 + $0x13c8] sm:$0xff]
    %v741 = vld [vmem:[#allocation2 + $0x13d0] sm:$0xff]
    %v742 = vld [vmem:[#allocation2 + $0x13d8] sm:$0xff]
    %v743 = vld [vmem:[#allocation2 + $0x13e0] sm:$0xff]
    %v744 = vld [vmem:[#allocation2 + $0x13e8] sm:$0xff]
    %v745 = vld [vmem:[#allocation2 + $0x13f0] sm:$0xff]
    %v746 = vld [vmem:[#allocation2 + $0x13f8] sm:$0xff]
    %v747 = vld [vmem:[#allocation2 + $0x1400] sm:$0xff]
    %v748 = vld [vmem:[#allocation2 + $0x1408] sm:$0xff]
    %v749 = vld [vmem:[#allocation2 + $0x1410] sm:$0xff]
    %v750 = vld [vmem:[#allocation2 + $0x1418] sm:$0xff]
    %v751 = vld [vmem:[#allocation2 + $0x1420] sm:$0xff]
    %v752 = vld [vmem:[#allocation2 + $0x1428] sm:$0xff]
    %v753 = vld [vmem:[#allocation2 + $0x1430] sm:$0xff]
    %v754 = vld [vmem:[#allocation2 + $0x1438] sm:$0xff]
    %v755 = vld [vmem:[#allocation2 + $0x1440] sm:$0xff]
    %v756 = vld [vmem:[#allocation2 + $0x1448] sm:$0xff]
    %v757 = vld [vmem:[#allocation2 + $0x1450] sm:$0xff]
    %v758 = vld [vmem:[#allocation2 + $0x1458] sm:$0xff]
    %v759 = vld [vmem:[#allocation2 + $0x1460] sm:$0xff]
    %v760 = vld [vmem:[#allocation2 + $0x1468] sm:$0xff]
    %v761 = vld [vmem:[#allocation2 + $0x1470] sm:$0xff]
    %v762 = vld [vmem:[#allocation2 + $0x1478] sm:$0xff]
    %v763 = vld [vmem:[#allocation2 + $0x1480] sm:$0xff]
    %v764 = vld [vmem:[#allocation2 + $0x1488] sm:$0xff]
    %v765 = vld [vmem:[#allocation2 + $0x1490] sm:$0xff]
    %v766 = vld [vmem:[#allocation2 + $0x1498] sm:$0xff]
    %v767 = vld [vmem:[#allocation2 + $0x14a0] sm:$0xff]
    %v768 = vld [vmem:[#allocation2 + $0x14a8] sm:$0xff]
    %v769 = vld [vmem:[#allocation2 + $0x14b0] sm:$0xff]
    %v770 = vld [vmem:[#allocation2 + $0x14b8] sm:$0xff]
    %v771 = vld [vmem:[#allocation2 + $0x14c0] sm:$0xff]
    %v772 = vld [vmem:[#allocation2 + $0x14c8] sm:$0xff]
    %v773 = vld [vmem:[#allocation2 + $0x14d0] sm:$0xff]
    %v774 = vld [vmem:[#allocation2 + $0x14d8] sm:$0xff]
    %v775 = vld [vmem:[#allocation2 + $0x14e0] sm:$0xff]
    %v776 = vld [vmem:[#allocation2 + $0x14e8] sm:$0xff]
    %v777 = vld [vmem:[#allocation2 + $0x14f0] sm:$0xff]
    %v778 = vld [vmem:[#allocation2 + $0x14f8] sm:$0xff]
    %v779 = vld [vmem:[#allocation2 + $0x1500] sm:$0xff]
    %v780 = vld [vmem:[#allocation2 + $0x1508] sm:$0xff]
    %v781 = vld [vmem:[#allocation2 + $0x1510] sm:$0xff]
    %v782 = vld [vmem:[#allocation2 + $0x1518] sm:$0xff]
    %v783 = vld [vmem:[#allocation2 + $0x1520] sm:$0xff]
    %v784 = vld [vmem:[#allocation2 + $0x1528] sm:$0xff]
    %v785 = vld [vmem:[#allocation2 + $0x1530] sm:$0xff]
    %v786 = vld [vmem:[#allocation2 + $0x1538] sm:$0xff]
    %v787 = vld [vmem:[#allocation2 + $0x1540] sm:$0xff]
    %v788 = vld [vmem:[#allocation2 + $0x1548] sm:$0xff]
    %v789 = vld [vmem:[#allocation2 + $0x1550] sm:$0xff]
    %v790 = vld [vmem:[#allocation2 + $0x1558] sm:$0xff]
    %v791 = vld [vmem:[#allocation2 + $0x1560] sm:$0xff]
    %v792 = vld [vmem:[#allocation2 + $0x1568] sm:$0xff]
    %v793 = vld [vmem:[#allocation2 + $0x1570] sm:$0xff]
    %v794 = vld [vmem:[#allocation2 + $0x1578] sm:$0xff]
    %v795 = vld [vmem:[#allocation2 + $0x1580] sm:$0xff]
    %v796 = vld [vmem:[#allocation2 + $0x1588] sm:$0xff]
    %v797 = vld [vmem:[#allocation2 + $0x1590] sm:$0xff]
    %v798 = vld [vmem:[#allocation2 + $0x1598] sm:$0xff]
    %v799 = vld [vmem:[#allocation2 + $0x15a0] sm:$0xff]
    %v800 = vld [vmem:[#allocation2 + $0x15a8] sm:$0xff]
    %v801 = vld [vmem:[#allocation2 + $0x15b0] sm:$0xff]
    %v802 = vld [vmem:[#allocation2 + $0x15b8] sm:$0xff]
    %v803 = vld [vmem:[#allocation2 + $0x15c0] sm:$0xff]
    %v804 = vld [vmem:[#allocation2 + $0x15c8] sm:$0xff]
    %v805 = vld [vmem:[#allocation2 + $0x15d0] sm:$0xff]
    %v806 = vld [vmem:[#allocation2 + $0x15d8] sm:$0xff]
    %v807 = vld [vmem:[#allocation2 + $0x15e0] sm:$0xff]
    %v808 = vld [vmem:[#allocation2 + $0x15e8] sm:$0xff]
    %v809 = vld [vmem:[#allocation2 + $0x15f0] sm:$0xff]
    %v810 = vld [vmem:[#allocation2 + $0x15f8] sm:$0xff]
    %v811 = vld [vmem:[#allocation2 + $0x1600] sm:$0xff]
    %v812 = vld [vmem:[#allocation2 + $0x1608] sm:$0xff]
    %v813 = vld [vmem:[#allocation2 + $0x1610] sm:$0xff]
    %v814 = vld [vmem:[#allocation2 + $0x1618] sm:$0xff]
    %v815 = vld [vmem:[#allocation2 + $0x1620] sm:$0xff]
    %v816 = vld [vmem:[#allocation2 + $0x1628] sm:$0xff]
    %v817 = vld [vmem:[#allocation2 + $0x1630] sm:$0xff]
    %v818 = vld [vmem:[#allocation2 + $0x1638] sm:$0xff]
    %v819 = vld [vmem:[#allocation2 + $0x1640] sm:$0xff]
    %v820 = vld [vmem:[#allocation2 + $0x1648] sm:$0xff]
    %v821 = vld [vmem:[#allocation2 + $0x1650] sm:$0xff]
    %v822 = vld [vmem:[#allocation2 + $0x1658] sm:$0xff]
    %v823 = vld [vmem:[#allocation2 + $0x1660] sm:$0xff]
    %v824 = vld [vmem:[#allocation2 + $0x1668] sm:$0xff]
    %v825 = vld [vmem:[#allocation2 + $0x1670] sm:$0xff]
    %v826 = vld [vmem:[#allocation2 + $0x1678] sm:$0xff]
    %v827 = vld [vmem:[#allocation2 + $0x1680] sm:$0xff]
    %v828 = vld [vmem:[#allocation2 + $0x1688] sm:$0xff]
    %v829 = vld [vmem:[#allocation2 + $0x1690] sm:$0xff]
    %v830 = vld [vmem:[#allocation2 + $0x1698] sm:$0xff]
    %v831 = vld [vmem:[#allocation2 + $0x16a0] sm:$0xff]
    %v832 = vld [vmem:[#allocation2 + $0x16a8] sm:$0xff]
    %v833 = vld [vmem:[#allocation2 + $0x16b0] sm:$0xff]
    %v834 = vld [vmem:[#allocation2 + $0x16b8] sm:$0xff]
    %v835 = vld [vmem:[#allocation2 + $0x16c0] sm:$0xff]
    %v836 = vld [vmem:[#allocation2 + $0x16c8] sm:$0xff]
    %v837 = vld [vmem:[#allocation2 + $0x16d0] sm:$0xff]
    %v838 = vld [vmem:[#allocation2 + $0x16d8] sm:$0xff]
    %v839 = vld [vmem:[#allocation2 + $0x16e0] sm:$0xff]
    %v840 = vld [vmem:[#allocation2 + $0x16e8] sm:$0xff]
    %v841 = vld [vmem:[#allocation2 + $0x16f0] sm:$0xff]
    %v842 = vld [vmem:[#allocation2 + $0x16f8] sm:$0xff]
    %v843 = vld [vmem:[#allocation2 + $0x1700] sm:$0xff]
    %v844 = vld [vmem:[#allocation2 + $0x1708] sm:$0xff]
    %v845 = vld [vmem:[#allocation2 + $0x1710] sm:$0xff]
    %v846 = vld [vmem:[#allocation2 + $0x1718] sm:$0xff]
    %v847 = vld [vmem:[#allocation2 + $0x1720] sm:$0xff]
    %v848 = vld [vmem:[#allocation2 + $0x1728] sm:$0xff]
    %v849 = vld [vmem:[#allocation2 + $0x1730] sm:$0xff]
    %v850 = vld [vmem:[#allocation2 + $0x1738] sm:$0xff]
    %v851 = vld [vmem:[#allocation2 + $0x1740] sm:$0xff]
    %v852 = vld [vmem:[#allocation2 + $0x1748] sm:$0xff]
    %v853 = vld [vmem:[#allocation2 + $0x1750] sm:$0xff]
    %v854 = vld [vmem:[#allocation2 + $0x1758] sm:$0xff]
    %v855 = vld [vmem:[#allocation2 + $0x1760] sm:$0xff]
    %v856 = vld [vmem:[#allocation2 + $0x1768] sm:$0xff]
    %v857 = vld [vmem:[#allocation2 + $0x1770] sm:$0xff]
    %v858 = vld [vmem:[#allocation2 + $0x1778] sm:$0xff]
    %v859 = vld [vmem:[#allocation2 + $0x1780] sm:$0xff]
    %v860 = vld [vmem:[#allocation2 + $0x1788] sm:$0xff]
    %v861 = vld [vmem:[#allocation2 + $0x1790] sm:$0xff]
    %v862 = vld [vmem:[#allocation2 + $0x1798] sm:$0xff]
    %v863 = vld [vmem:[#allocation2 + $0x17a0] sm:$0xff]
    %v864 = vld [vmem:[#allocation2 + $0x17a8] sm:$0xff]
    %v865 = vld [vmem:[#allocation2 + $0x17b0] sm:$0xff]
    %v866 = vld [vmem:[#allocation2 + $0x17b8] sm:$0xff]
    %v867 = vld [vmem:[#allocation2 + $0x17c0] sm:$0xff]
    %v868 = vld [vmem:[#allocation2 + $0x17c8] sm:$0xff]
    %v869 = vld [vmem:[#allocation2 + $0x17d0] sm:$0xff]
    %v870 = vld [vmem:[#allocation2 + $0x17d8] sm:$0xff]
    %v871 = vld [vmem:[#allocation2 + $0x17e0] sm:$0xff]
    %v872 = vld [vmem:[#allocation2 + $0x17e8] sm:$0xff]
    %v873 = vld [vmem:[#allocation2 + $0x17f0] sm:$0xff]
    %v874 = vld [vmem:[#allocation2 + $0x17f8] sm:$0xff]
    %v875 = vld [vmem:[#allocation2 + $0x1800] sm:$0xff]
    %v876 = vld [vmem:[#allocation2 + $0x1808] sm:$0xff]
    %v877 = vld [vmem:[#allocation2 + $0x1810] sm:$0xff]
    %v878 = vld [vmem:[#allocation2 + $0x1818] sm:$0xff]
    %v879 = vld [vmem:[#allocation2 + $0x1820] sm:$0xff]
    %v880 = vld [vmem:[#allocation2 + $0x1828] sm:$0xff]
    %v881 = vld [vmem:[#allocation2 + $0x1830] sm:$0xff]
    %v882 = vld [vmem:[#allocation2 + $0x1838] sm:$0xff]
    %v883 = vld [vmem:[#allocation2 + $0x1840] sm:$0xff]
    %v884 = vld [vmem:[#allocation2 + $0x1848] sm:$0xff]
    %v885 = vld [vmem:[#allocation2 + $0x1850] sm:$0xff]
    %v886 = vld [vmem:[#allocation2 + $0x1858] sm:$0xff]
    %v887 = vld [vmem:[#allocation2 + $0x1860] sm:$0xff]
    %v888 = vld [vmem:[#allocation2 + $0x1868] sm:$0xff]
    %v889 = vld [vmem:[#allocation2 + $0x1870] sm:$0xff]
    %v890 = vld [vmem:[#allocation2 + $0x1878] sm:$0xff]
    %v891 = vld [vmem:[#allocation2 + $0x1880] sm:$0xff]
    %v892 = vld [vmem:[#allocation2 + $0x1888] sm:$0xff]
    %v893 = vld [vmem:[#allocation2 + $0x1890] sm:$0xff]
    %v894 = vld [vmem:[#allocation2 + $0x1898] sm:$0xff]
    %v895 = vld [vmem:[#allocation2 + $0x18a0] sm:$0xff]
    %v896 = vld [vmem:[#allocation2 + $0x18a8] sm:$0xff]
    %v897 = vld [vmem:[#allocation2 + $0x18b0] sm:$0xff]
    %v898 = vld [vmem:[#allocation2 + $0x18b8] sm:$0xff]
    %v899 = vld [vmem:[#allocation2 + $0x18c0] sm:$0xff]
    %v900 = vld [vmem:[#allocation2 + $0x18c8] sm:$0xff]
    %v901 = vld [vmem:[#allocation2 + $0x18d0] sm:$0xff]
    %v902 = vld [vmem:[#allocation2 + $0x18d8] sm:$0xff]
    %v903 = vld [vmem:[#allocation2 + $0x18e0] sm:$0xff]
    %v904 = vld [vmem:[#allocation2 + $0x18e8] sm:$0xff]
    %v905 = vld [vmem:[#allocation2 + $0x18f0] sm:$0xff]
    %v906 = vld [vmem:[#allocation2 + $0x18f8] sm:$0xff]
    %v907 = vld [vmem:[#allocation2 + $0x1900] sm:$0xff]
    %v908 = vld [vmem:[#allocation2 + $0x1908] sm:$0xff]
    %v909 = vld [vmem:[#allocation2 + $0x1910] sm:$0xff]
    %v910 = vld [vmem:[#allocation2 + $0x1918] sm:$0xff]
    %v911 = vld [vmem:[#allocation2 + $0x1920] sm:$0xff]
    %v912 = vld [vmem:[#allocation2 + $0x1928] sm:$0xff]
    %v913 = vld [vmem:[#allocation2 + $0x1930] sm:$0xff]
    %v914 = vld [vmem:[#allocation2 + $0x1938] sm:$0xff]
    %v915 = vld [vmem:[#allocation2 + $0x1940] sm:$0xff]
    %v916 = vld [vmem:[#allocation2 + $0x1948] sm:$0xff]
    %v917 = vld [vmem:[#allocation2 + $0x1950] sm:$0xff]
    %v918 = vld [vmem:[#allocation2 + $0x1958] sm:$0xff]
    %v919 = vld [vmem:[#allocation2 + $0x1960] sm:$0xff]
    %v920 = vld [vmem:[#allocation2 + $0x1968] sm:$0xff]
    %v921 = vld [vmem:[#allocation2 + $0x1970] sm:$0xff]
    %v922 = vld [vmem:[#allocation2 + $0x1978] sm:$0xff]
    %v923 = vld [vmem:[#allocation2 + $0x1980] sm:$0xff]
    %v924 = vld [vmem:[#allocation2 + $0x1988] sm:$0xff]
    %v925 = vld [vmem:[#allocation2 + $0x1990] sm:$0xff]
    %v926 = vld [vmem:[#allocation2 + $0x1998] sm:$0xff]
    %v927 = vld [vmem:[#allocation2 + $0x19a0] sm:$0xff]
    %v928 = vld [vmem:[#allocation2 + $0x19a8] sm:$0xff]
    %v929 = vld [vmem:[#allocation2 + $0x19b0] sm:$0xff]
    %v930 = vld [vmem:[#allocation2 + $0x19b8] sm:$0xff]
    %v931 = vld [vmem:[#allocation2 + $0x19c0] sm:$0xff]
    %v932 = vld [vmem:[#allocation2 + $0x19c8] sm:$0xff]
    %v933 = vld [vmem:[#allocation2 + $0x19d0] sm:$0xff]
    %v934 = vld [vmem:[#allocation2 + $0x19d8] sm:$0xff]
    %v935 = vld [vmem:[#allocation2 + $0x19e0] sm:$0xff]
    %v936 = vld [vmem:[#allocation2 + $0x19e8] sm:$0xff]
    %v937 = vld [vmem:[#allocation2 + $0x19f0] sm:$0xff]
    %v938 = vld [vmem:[#allocation2 + $0x19f8] sm:$0xff]
    %v939 = vld [vmem:[#allocation2 + $0x1a00] sm:$0xff]
    %v940 = vld [vmem:[#allocation2 + $0x1a08] sm:$0xff]
    %v941 = vld [vmem:[#allocation2 + $0x1a10] sm:$0xff]
    %v942 = vld [vmem:[#allocation2 + $0x1a18] sm:$0xff]
    %v943 = vld [vmem:[#allocation2 + $0x1a20] sm:$0xff]
    %v944 = vld [vmem:[#allocation2 + $0x1a28] sm:$0xff]
    %v945 = vld [vmem:[#allocation2 + $0x1a30] sm:$0xff]
    %v946 = vld [vmem:[#allocation2 + $0x1a38] sm:$0xff]
    %v947 = vld [vmem:[#allocation2 + $0x1a40] sm:$0xff]
    %v948 = vld [vmem:[#allocation2 + $0x1a48] sm:$0xff]
    %v949 = vld [vmem:[#allocation2 + $0x1a50] sm:$0xff]
    %v950 = vld [vmem:[#allocation2 + $0x1a58] sm:$0xff]
    %v951 = vld [vmem:[#allocation2 + $0x1a60] sm:$0xff]
    %v952 = vld [vmem:[#allocation2 + $0x1a68] sm:$0xff]
    %v953 = vld [vmem:[#allocation2 + $0x1a70] sm:$0xff]
    %v954 = vld [vmem:[#allocation2 + $0x1a78] sm:$0xff]
    %v955 = vld [vmem:[#allocation2 + $0x1a80] sm:$0xff]
    %v956 = vld [vmem:[#allocation2 + $0x1a88] sm:$0xff]
    %v957 = vld [vmem:[#allocation2 + $0x1a90] sm:$0xff]
    %v958 = vld [vmem:[#allocation2 + $0x1a98] sm:$0xff]
    %v959 = vld [vmem:[#allocation2 + $0x1aa0] sm:$0xff]
    %v960 = vld [vmem:[#allocation2 + $0x1aa8] sm:$0xff]
    %v961 = vld [vmem:[#allocation2 + $0x1ab0] sm:$0xff]
    %v962 = vld [vmem:[#allocation2 + $0x1ab8] sm:$0xff]
    %v963 = vld [vmem:[#allocation2 + $0x1ac0] sm:$0xff]
    %v964 = vld [vmem:[#allocation2 + $0x1ac8] sm:$0xff]
    %v965 = vld [vmem:[#allocation2 + $0x1ad0] sm:$0xff]
    %v966 = vld [vmem:[#allocation2 + $0x1ad8] sm:$0xff]
    %v967 = vld [vmem:[#allocation2 + $0x1ae0] sm:$0xff]
    %v968 = vld [vmem:[#allocation2 + $0x1ae8] sm:$0xff]
    %v969 = vld [vmem:[#allocation2 + $0x1af0] sm:$0xff]
    %v970 = vld [vmem:[#allocation2 + $0x1af8] sm:$0xff]
    %v971 = vld [vmem:[#allocation2 + $0x1b00] sm:$0xff]
    %v972 = vld [vmem:[#allocation2 + $0x1b08] sm:$0xff]
    %v973 = vld [vmem:[#allocation2 + $0x1b10] sm:$0xff]
    %v974 = vld [vmem:[#allocation2 + $0x1b18] sm:$0xff]
    %v975 = vld [vmem:[#allocation2 + $0x1b20] sm:$0xff]
    %v976 = vld [vmem:[#allocation2 + $0x1b28] sm:$0xff]
    %v977 = vld [vmem:[#allocation2 + $0x1b30] sm:$0xff]
    %v978 = vld [vmem:[#allocation2 + $0x1b38] sm:$0xff]
    %v979 = vld [vmem:[#allocation2 + $0x1b40] sm:$0xff]
    %v980 = vld [vmem:[#allocation2 + $0x1b48] sm:$0xff]
    %v981 = vld [vmem:[#allocation2 + $0x1b50] sm:$0xff]
    %v982 = vld [vmem:[#allocation2 + $0x1b58] sm:$0xff]
    %v983 = vld [vmem:[#allocation2 + $0x1b60] sm:$0xff]
    %v984 = vld [vmem:[#allocation2 + $0x1b68] sm:$0xff]
    %v985 = vld [vmem:[#allocation2 + $0x1b70] sm:$0xff]
    %v986 = vld [vmem:[#allocation2 + $0x1b78] sm:$0xff]
    %v987 = vld [vmem:[#allocation2 + $0x1b80] sm:$0xff]
    %v988 = vld [vmem:[#allocation2 + $0x1b88] sm:$0xff]
    %v989 = vld [vmem:[#allocation2 + $0x1b90] sm:$0xff]
    %v990 = vld [vmem:[#allocation2 + $0x1b98] sm:$0xff]
    %v991 = vld [vmem:[#allocation2 + $0x1ba0] sm:$0xff]
    %v992 = vld [vmem:[#allocation2 + $0x1ba8] sm:$0xff]
    %v993 = vld [vmem:[#allocation2 + $0x1bb0] sm:$0xff]
    %v994 = vld [vmem:[#allocation2 + $0x1bb8] sm:$0xff]
    %v995 = vld [vmem:[#allocation2 + $0x1bc0] sm:$0xff]
    %v996 = vld [vmem:[#allocation2 + $0x1bc8] sm:$0xff]
    %v997 = vld [vmem:[#allocation2 + $0x1bd0] sm:$0xff]
    %v998 = vld [vmem:[#allocation2 + $0x1bd8] sm:$0xff]
    %v999 = vld [vmem:[#allocation2 + $0x1be0] sm:$0xff]
    %v1000 = vld [vmem:[#allocation2 + $0x1be8] sm:$0xff]
    %v1001 = vld [vmem:[#allocation2 + $0x1bf0] sm:$0xff]
    %v1002 = vld [vmem:[#allocation2 + $0x1bf8] sm:$0xff]
    %v1003 = vld [vmem:[#allocation5] sm:$0xf]
    %v1005 = vlaneseq
    %v1006 = vshrl.u32 %v1005, 7
    %v1007 = vsub.s32 0, %v1006
    %v1008 = vrot.slane %v1003, %v1007
    %v1009 = vlaneseq
    %v1010 = vshrl.u32 %v1009, 7
    %v1011 = vsub.s32 1, %v1010
    %v1012 = vrot.slane %v1003, %v1011
    %v1013 = vlaneseq
    %v1014 = vshrl.u32 %v1013, 7
    %v1015 = vsub.s32 2, %v1014
    %v1016 = vrot.slane %v1003, %v1015
    %v1017 = vlaneseq
    %v1018 = vshrl.u32 %v1017, 7
    %v1019 = vsub.s32 3, %v1018
    %v1020 = vrot.slane %v1003, %v1019
    %v1029 = vcombine.high %v103, %v103
    %v1031 = vunpack.c.l.s4 1983009808
    %v1032 = vunpack.c.0.s8 %v1031
    %v1033 = vlaneseq
    %v1034 = vshrl.u32 %v1033, 7
    %v1035 = vsub.s32 %v1032, %v1034
    %v1036 = vrot.slane %v103, %v1035
    %v1038 = vunpack.c.l.s4 1983009808
    %v1039 = vunpack.c.0.s8 %v1038
    %v1040 = vlaneseq
    %v1041 = vshrl.u32 %v1040, 7
    %v1042 = vsub.s32 %v1039, %v1041
    %v1043 = vrot.slane %v1029, %v1042
    %v1044 = vcombine.high %v1036, %v1036
    %v1045 = vcombine.high %v1043, %v1043
    %v1046 = vcombine.high %v104, %v104
    %v1048 = vunpack.c.l.s4 1983009808
    %v1049 = vunpack.c.0.s8 %v1048
    %v1050 = vlaneseq
    %v1051 = vshrl.u32 %v1050, 7
    %v1052 = vsub.s32 %v1049, %v1051
    %v1053 = vrot.slane %v104, %v1052
    %v1055 = vunpack.c.l.s4 1983009808
    %v1056 = vunpack.c.0.s8 %v1055
    %v1057 = vlaneseq
    %v1058 = vshrl.u32 %v1057, 7
    %v1059 = vsub.s32 %v1056, %v1058
    %v1060 = vrot.slane %v1046, %v1059
    %v1061 = vcombine.high %v1053, %v1053
    %v1062 = vcombine.high %v1060, %v1060
    %v1063 = vcombine.high %v105, %v105
    %v1065 = vunpack.c.l.s4 1983009808
    %v1066 = vunpack.c.0.s8 %v1065
    %v1067 = vlaneseq
    %v1068 = vshrl.u32 %v1067, 7
    %v1069 = vsub.s32 %v1066, %v1068
    %v1070 = vrot.slane %v105, %v1069
    %v1072 = vunpack.c.l.s4 1983009808
    %v1073 = vunpack.c.0.s8 %v1072
    %v1074 = vlaneseq
    %v1075 = vshrl.u32 %v1074, 7
    %v1076 = vsub.s32 %v1073, %v1075
    %v1077 = vrot.slane %v1063, %v1076
    %v1078 = vcombine.high %v1070, %v1070
    %v1079 = vcombine.high %v1077, %v1077
    %v1081 = vunpack.c.l.s4 1983009808
    %v1082 = vunpack.c.0.s8 %v1081
    %v1083 = vlaneseq
    %v1084 = vshrl.u32 %v1083, 7
    %v1085 = vsub.s32 %v1082, %v1084
    %v1086 = vrot.slane %v106, %v1085
    %v1087 = vcombine.high %v1086, %v1086
    %1102 = vmatprep.subr.mxu0 %v108
    %1103 = vmatpush1.msra.mxu0 %v107
    %1104 = vmatprep.subr.mxu0 %v112
    %1105 = vmatpush1.msra.mxu0 %v111
    %1106 = vmatprep.subr.mxu0 %v116
    %1107 = vmatpush1.msra.mxu0 %v115
    %1108 = vmatprep.subr.mxu0 %v120
    %1109 = vmatpush1.msra.mxu0 %v119
    %1110 = vmatprep.subr.mxu0 %v124
    %1111 = vmatpush1.msra.mxu0 %v123
    %1112 = vmatprep.subr.mxu0 %v128
    %1113 = vmatpush1.msra.mxu0 %v127
    %1114 = vmatprep.subr.mxu0 %v132
    %1115 = vmatpush1.msra.mxu0 %v131
    %1116 = vmatprep.subr.mxu0 %v136
    %1117 = vmatpush1.msra.mxu0 %v135
    %1118 = vmatprep.subr.mxu0 %v140
    %1119 = vmatpush1.msra.mxu0 %v139
    %1120 = vmatprep.subr.mxu0 %v144
    %1121 = vmatpush1.msra.mxu0 %v143
    %1122 = vmatprep.subr.mxu0 %v148
    %1123 = vmatpush1.msra.mxu0 %v147
    %1124 = vmatprep.subr.mxu0 %v152
    %1125 = vmatpush1.msra.mxu0 %v151
    %1126 = vmatprep.subr.mxu0 %v156
    %1127 = vmatpush1.msra.mxu0 %v155
    %1128 = vmatprep.subr.mxu0 %v160
    %1129 = vmatpush1.msra.mxu0 %v159
    %1130 = vmatprep.subr.mxu0 %v164
    %1131 = vmatpush1.msra.mxu0 %v163
    %1132 = vmatprep.subr.mxu0 %v168
    %1133 = vmatpush1.msra.mxu0 %v167
    %1134 = vmatprep.subr.mxu0 %v172
    %1135 = vmatpush1.msra.mxu0 %v171
    %1136 = vmatprep.subr.mxu0 %v176
    %1137 = vmatpush1.msra.mxu0 %v175
    %1138 = vmatprep.subr.mxu0 %v180
    %1139 = vmatpush1.msra.mxu0 %v179
    %1140 = vmatprep.subr.mxu0 %v184
    %1141 = vmatpush1.msra.mxu0 %v183
    %1142 = vmatprep.subr.mxu0 %v188
    %1143 = vmatpush1.msra.mxu0 %v187
    %1144 = vmatprep.subr.mxu0 %v192
    %1145 = vmatpush1.msra.mxu0 %v191
    %1146 = vmatprep.subr.mxu0 %v196
    %1147 = vmatpush1.msra.mxu0 %v195
    %1148 = vmatprep.subr.mxu0 %v200
    %1149 = vmatpush1.msra.mxu0 %v199
    %1150 = vmatprep.subr.mxu0 %v204
    %1151 = vmatpush1.msra.mxu0 %v203
    %1152 = vmatprep.subr.mxu0 %v208
    %1153 = vmatpush1.msra.mxu0 %v207
    %1154 = vmatprep.subr.mxu0 %v212
    %1155 = vmatpush1.msra.mxu0 %v211
    %1156 = vmatprep.subr.mxu0 %v216
    %1157 = vmatpush1.msra.mxu0 %v215
    %1158 = vmatprep.subr.mxu0 %v220
    %1159 = vmatpush1.msra.mxu0 %v219
    %1160 = vmatprep.subr.mxu0 %v224
    %1161 = vmatpush1.msra.mxu0 %v223
    %1162 = vmatprep.subr.mxu0 %v228
    %1163 = vmatpush1.msra.mxu0 %v227
    %1164 = vmatprep.subr.mxu0 %v232
    %1165 = vmatpush1.msra.mxu0 %v231
    %1166 = vmatprep.mubr.f32.mxu0 %v1044
    %1167 = vmatmul.mubr.f32.gmra.mrb[0].mxu0 %v1036
    %v1168 = vpop.f32.mrb[0].mxu0
    %v1169 = vadd.f32 %v1008, %v1168
    %v1170 = vpop.f32.mrb[0].mxu0
    %v1171 = vadd.f32 %v1012, %v1170
    %1172 = vdwg.mxu0
    %1173 = vmatprep.subr.mxu0 %v236
    %1174 = vmatpush1.msra.mxu0 %v235
    %1175 = vmatprep.subr.mxu0 %v240
    %1176 = vmatpush1.msra.mxu0 %v239
    %1177 = vmatprep.subr.mxu0 %v244
    %1178 = vmatpush1.msra.mxu0 %v243
    %1179 = vmatprep.subr.mxu0 %v248
    %1180 = vmatpush1.msra.mxu0 %v247
    %1181 = vmatprep.subr.mxu0 %v252
    %1182 = vmatpush1.msra.mxu0 %v251
    %1183 = vmatprep.subr.mxu0 %v256
    %1184 = vmatpush1.msra.mxu0 %v255
    %1185 = vmatprep.subr.mxu0 %v260
    %1186 = vmatpush1.msra.mxu0 %v259
    %1187 = vmatprep.subr.mxu0 %v264
    %1188 = vmatpush1.msra.mxu0 %v263
    %1189 = vmatprep.subr.mxu0 %v268
    %1190 = vmatpush1.msra.mxu0 %v267
    %1191 = vmatprep.subr.mxu0 %v272
    %1192 = vmatpush1.msra.mxu0 %v271
    %1193 = vmatprep.subr.mxu0 %v276
    %1194 = vmatpush1.msra.mxu0 %v275
    %1195 = vmatprep.subr.mxu0 %v280
    %1196 = vmatpush1.msra.mxu0 %v279
    %1197 = vmatprep.subr.mxu0 %v284
    %1198 = vmatpush1.msra.mxu0 %v283
    %1199 = vmatprep.subr.mxu0 %v288
    %1200 = vmatpush1.msra.mxu0 %v287
    %1201 = vmatprep.subr.mxu0 %v292
    %1202 = vmatpush1.msra.mxu0 %v291
    %1203 = vmatprep.subr.mxu0 %v296
    %1204 = vmatpush1.msra.mxu0 %v295
    %1205 = vmatprep.subr.mxu0 %v300
    %1206 = vmatpush1.msra.mxu0 %v299
    %1207 = vmatprep.subr.mxu0 %v304
    %1208 = vmatpush1.msra.mxu0 %v303
    %1209 = vmatprep.subr.mxu0 %v308
    %1210 = vmatpush1.msra.mxu0 %v307
    %1211 = vmatprep.subr.mxu0 %v312
    %1212 = vmatpush1.msra.mxu0 %v311
    %1213 = vmatprep.subr.mxu0 %v316
    %1214 = vmatpush1.msra.mxu0 %v315
    %1215 = vmatprep.subr.mxu0 %v320
    %1216 = vmatpush1.msra.mxu0 %v319
    %1217 = vmatprep.subr.mxu0 %v324
    %1218 = vmatpush1.msra.mxu0 %v323
    %1219 = vmatprep.subr.mxu0 %v328
    %1220 = vmatpush1.msra.mxu0 %v327
    %1221 = vmatprep.subr.mxu0 %v332
    %1222 = vmatpush1.msra.mxu0 %v331
    %1223 = vmatprep.subr.mxu0 %v336
    %1224 = vmatpush1.msra.mxu0 %v335
    %1225 = vmatprep.subr.mxu0 %v340
    %1226 = vmatpush1.msra.mxu0 %v339
    %1227 = vmatprep.subr.mxu0 %v344
    %1228 = vmatpush1.msra.mxu0 %v343
    %1229 = vmatprep.subr.mxu0 %v348
    %1230 = vmatpush1.msra.mxu0 %v347
    %1231 = vmatprep.subr.mxu0 %v352
    %1232 = vmatpush1.msra.mxu0 %v351
    %1233 = vmatprep.subr.mxu0 %v356
    %1234 = vmatpush1.msra.mxu0 %v355
    %1235 = vmatprep.subr.mxu0 %v360
    %1236 = vmatpush1.msra.mxu0 %v359
    %1237 = vmatprep.mubr.f32.mxu0 %v1045
    %1238 = vmatmul.mubr.f32.gmra.mrb[0].mxu0 %v1043
    %v1239 = vpop.f32.mrb[0].mxu0
    %v1240 = vadd.f32 %v1169, %v1239
    %v1241 = vpop.f32.mrb[0].mxu0
    %v1242 = vadd.f32 %v1171, %v1241
    %1243 = vdwg.mxu0
    %1244 = vmatprep.subr.mxu0 %v364
    %1245 = vmatpush1.msra.mxu0 %v363
    %1246 = vmatprep.subr.mxu0 %v368
    %1247 = vmatpush1.msra.mxu0 %v367
    %1248 = vmatprep.subr.mxu0 %v372
    %1249 = vmatpush1.msra.mxu0 %v371
    %1250 = vmatprep.subr.mxu0 %v376
    %1251 = vmatpush1.msra.mxu0 %v375
    %1252 = vmatprep.subr.mxu0 %v380
    %1253 = vmatpush1.msra.mxu0 %v379
    %1254 = vmatprep.subr.mxu0 %v384
    %1255 = vmatpush1.msra.mxu0 %v383
    %1256 = vmatprep.subr.mxu0 %v388
    %1257 = vmatpush1.msra.mxu0 %v387
    %1258 = vmatprep.subr.mxu0 %v392
    %1259 = vmatpush1.msra.mxu0 %v391
    %1260 = vmatprep.subr.mxu0 %v396
    %1261 = vmatpush1.msra.mxu0 %v395
    %1262 = vmatprep.subr.mxu0 %v400
    %1263 = vmatpush1.msra.mxu0 %v399
    %1264 = vmatprep.subr.mxu0 %v404
    %1265 = vmatpush1.msra.mxu0 %v403
    %1266 = vmatprep.subr.mxu0 %v408
    %1267 = vmatpush1.msra.mxu0 %v407
    %1268 = vmatprep.subr.mxu0 %v412
    %1269 = vmatpush1.msra.mxu0 %v411
    %1270 = vmatprep.subr.mxu0 %v416
    %1271 = vmatpush1.msra.mxu0 %v415
    %1272 = vmatprep.subr.mxu0 %v420
    %1273 = vmatpush1.msra.mxu0 %v419
    %1274 = vmatprep.subr.mxu0 %v424
    %1275 = vmatpush1.msra.mxu0 %v423
    %1276 = vmatprep.subr.mxu0 %v428
    %1277 = vmatpush1.msra.mxu0 %v427
    %1278 = vmatprep.subr.mxu0 %v432
    %1279 = vmatpush1.msra.mxu0 %v431
    %1280 = vmatprep.subr.mxu0 %v436
    %1281 = vmatpush1.msra.mxu0 %v435
    %1282 = vmatprep.subr.mxu0 %v440
    %1283 = vmatpush1.msra.mxu0 %v439
    %1284 = vmatprep.subr.mxu0 %v444
    %1285 = vmatpush1.msra.mxu0 %v443
    %1286 = vmatprep.subr.mxu0 %v448
    %1287 = vmatpush1.msra.mxu0 %v447
    %1288 = vmatprep.subr.mxu0 %v452
    %1289 = vmatpush1.msra.mxu0 %v451
    %1290 = vmatprep.subr.mxu0 %v456
    %1291 = vmatpush1.msra.mxu0 %v455
    %1292 = vmatprep.subr.mxu0 %v460
    %1293 = vmatpush1.msra.mxu0 %v459
    %1294 = vmatprep.subr.mxu0 %v464
    %1295 = vmatpush1.msra.mxu0 %v463
    %1296 = vmatprep.subr.mxu0 %v468
    %1297 = vmatpush1.msra.mxu0 %v467
    %1298 = vmatprep.subr.mxu0 %v472
    %1299 = vmatpush1.msra.mxu0 %v471
    %1300 = vmatprep.subr.mxu0 %v476
    %1301 = vmatpush1.msra.mxu0 %v475
    %1302 = vmatprep.subr.mxu0 %v480
    %1303 = vmatpush1.msra.mxu0 %v479
    %1304 = vmatprep.subr.mxu0 %v484
    %1305 = vmatpush1.msra.mxu0 %v483
    %1306 = vmatprep.subr.mxu0 %v488
    %1307 = vmatpush1.msra.mxu0 %v487
    %1308 = vmatprep.mubr.f32.mxu0 %v1061
    %1309 = vmatmul.mubr.f32.gmra.mrb[0].mxu0 %v1053
    %v1310 = vpop.f32.mrb[0].mxu0
    %v1311 = vadd.f32 %v1240, %v1310
    %v1312 = vpop.f32.mrb[0].mxu0
    %v1313 = vadd.f32 %v1242, %v1312
    %1314 = vdwg.mxu0
    %1315 = vmatprep.subr.mxu0 %v492
    %1316 = vmatpush1.msra.mxu0 %v491
    %1317 = vmatprep.subr.mxu0 %v496
    %1318 = vmatpush1.msra.mxu0 %v495
    %1319 = vmatprep.subr.mxu0 %v500
    %1320 = vmatpush1.msra.mxu0 %v499
    %1321 = vmatprep.subr.mxu0 %v504
    %1322 = vmatpush1.msra.mxu0 %v503
    %1323 = vmatprep.subr.mxu0 %v508
    %1324 = vmatpush1.msra.mxu0 %v507
    %1325 = vmatprep.subr.mxu0 %v512
    %1326 = vmatpush1.msra.mxu0 %v511
    %1327 = vmatprep.subr.mxu0 %v516
    %1328 = vmatpush1.msra.mxu0 %v515
    %1329 = vmatprep.subr.mxu0 %v520
    %1330 = vmatpush1.msra.mxu0 %v519
    %1331 = vmatprep.subr.mxu0 %v524
    %1332 = vmatpush1.msra.mxu0 %v523
    %1333 = vmatprep.subr.mxu0 %v528
    %1334 = vmatpush1.msra.mxu0 %v527
    %1335 = vmatprep.subr.mxu0 %v532
    %1336 = vmatpush1.msra.mxu0 %v531
    %1337 = vmatprep.subr.mxu0 %v536
    %1338 = vmatpush1.msra.mxu0 %v535
    %1339 = vmatprep.subr.mxu0 %v540
    %1340 = vmatpush1.msra.mxu0 %v539
    %1341 = vmatprep.subr.mxu0 %v544
    %1342 = vmatpush1.msra.mxu0 %v543
    %1343 = vmatprep.subr.mxu0 %v548
    %1344 = vmatpush1.msra.mxu0 %v547
    %1345 = vmatprep.subr.mxu0 %v552
    %1346 = vmatpush1.msra.mxu0 %v551
    %1347 = vmatprep.subr.mxu0 %v556
    %1348 = vmatpush1.msra.mxu0 %v555
    %1349 = vmatprep.subr.mxu0 %v560
    %1350 = vmatpush1.msra.mxu0 %v559
    %1351 = vmatprep.subr.mxu0 %v564
    %1352 = vmatpush1.msra.mxu0 %v563
    %1353 = vmatprep.subr.mxu0 %v568
    %1354 = vmatpush1.msra.mxu0 %v567
    %1355 = vmatprep.subr.mxu0 %v572
    %1356 = vmatpush1.msra.mxu0 %v571
    %1357 = vmatprep.subr.mxu0 %v576
    %1358 = vmatpush1.msra.mxu0 %v575
    %1359 = vmatprep.subr.mxu0 %v580
    %1360 = vmatpush1.msra.mxu0 %v579
    %1361 = vmatprep.subr.mxu0 %v584
    %1362 = vmatpush1.msra.mxu0 %v583
    %1363 = vmatprep.subr.mxu0 %v588
    %1364 = vmatpush1.msra.mxu0 %v587
    %1365 = vmatprep.subr.mxu0 %v592
    %1366 = vmatpush1.msra.mxu0 %v591
    %1367 = vmatprep.subr.mxu0 %v596
    %1368 = vmatpush1.msra.mxu0 %v595
    %1369 = vmatprep.subr.mxu0 %v600
    %1370 = vmatpush1.msra.mxu0 %v599
    %1371 = vmatprep.subr.mxu0 %v604
    %1372 = vmatpush1.msra.mxu0 %v603
    %1373 = vmatprep.subr.mxu0 %v608
    %1374 = vmatpush1.msra.mxu0 %v607
    %1375 = vmatprep.subr.mxu0 %v612
    %1376 = vmatpush1.msra.mxu0 %v611
    %1377 = vmatprep.subr.mxu0 %v616
    %1378 = vmatpush1.msra.mxu0 %v615
    %1379 = vmatprep.mubr.f32.mxu0 %v1062
    %1380 = vmatmul.mubr.f32.gmra.mrb[0].mxu0 %v1060
    %v1381 = vpop.f32.mrb[0].mxu0
    %v1382 = vadd.f32 %v1311, %v1381
    %v1383 = vpop.f32.mrb[0].mxu0
    %v1384 = vadd.f32 %v1313, %v1383
    %1385 = vdwg.mxu0
    %1386 = vmatprep.subr.mxu0 %v620
    %1387 = vmatpush1.msra.mxu0 %v619
    %1388 = vmatprep.subr.mxu0 %v624
    %1389 = vmatpush1.msra.mxu0 %v623
    %1390 = vmatprep.subr.mxu0 %v628
    %1391 = vmatpush1.msra.mxu0 %v627
    %1392 = vmatprep.subr.mxu0 %v632
    %1393 = vmatpush1.msra.mxu0 %v631
    %1394 = vmatprep.subr.mxu0 %v636
    %1395 = vmatpush1.msra.mxu0 %v635
    %1396 = vmatprep.subr.mxu0 %v640
    %1397 = vmatpush1.msra.mxu0 %v639
    %1398 = vmatprep.subr.mxu0 %v644
    %1399 = vmatpush1.msra.mxu0 %v643
    %1400 = vmatprep.subr.mxu0 %v648
    %1401 = vmatpush1.msra.mxu0 %v647
    %1402 = vmatprep.subr.mxu0 %v652
    %1403 = vmatpush1.msra.mxu0 %v651
    %1404 = vmatprep.subr.mxu0 %v656
    %1405 = vmatpush1.msra.mxu0 %v655
    %1406 = vmatprep.subr.mxu0 %v660
    %1407 = vmatpush1.msra.mxu0 %v659
    %1408 = vmatprep.subr.mxu0 %v664
    %1409 = vmatpush1.msra.mxu0 %v663
    %1410 = vmatprep.subr.mxu0 %v668
    %1411 = vmatpush1.msra.mxu0 %v667
    %1412 = vmatprep.subr.mxu0 %v672
    %1413 = vmatpush1.msra.mxu0 %v671
    %1414 = vmatprep.subr.mxu0 %v676
    %1415 = vmatpush1.msra.mxu0 %v675
    %1416 = vmatprep.subr.mxu0 %v680
    %1417 = vmatpush1.msra.mxu0 %v679
    %1418 = vmatprep.subr.mxu0 %v684
    %1419 = vmatpush1.msra.mxu0 %v683
    %1420 = vmatprep.subr.mxu0 %v688
    %1421 = vmatpush1.msra.mxu0 %v687
    %1422 = vmatprep.subr.mxu0 %v692
    %1423 = vmatpush1.msra.mxu0 %v691
    %1424 = vmatprep.subr.mxu0 %v696
    %1425 = vmatpush1.msra.mxu0 %v695
    %1426 = vmatprep.subr.mxu0 %v700
    %1427 = vmatpush1.msra.mxu0 %v699
    %1428 = vmatprep.subr.mxu0 %v704
    %1429 = vmatpush1.msra.mxu0 %v703
    %1430 = vmatprep.subr.mxu0 %v708
    %1431 = vmatpush1.msra.mxu0 %v707
    %1432 = vmatprep.subr.mxu0 %v712
    %1433 = vmatpush1.msra.mxu0 %v711
    %1434 = vmatprep.subr.mxu0 %v716
    %1435 = vmatpush1.msra.mxu0 %v715
    %1436 = vmatprep.subr.mxu0 %v720
    %1437 = vmatpush1.msra.mxu0 %v719
    %1438 = vmatprep.subr.mxu0 %v724
    %1439 = vmatpush1.msra.mxu0 %v723
    %1440 = vmatprep.subr.mxu0 %v728
    %1441 = vmatpush1.msra.mxu0 %v727
    %1442 = vmatprep.subr.mxu0 %v732
    %1443 = vmatpush1.msra.mxu0 %v731
    %1444 = vmatprep.subr.mxu0 %v736
    %1445 = vmatpush1.msra.mxu0 %v735
    %1446 = vmatprep.subr.mxu0 %v740
    %1447 = vmatpush1.msra.mxu0 %v739
    %1448 = vmatprep.subr.mxu0 %v744
    %1449 = vmatpush1.msra.mxu0 %v743
    %1450 = vmatprep.mubr.f32.mxu0 %v1078
    %1451 = vmatmul.mubr.f32.gmra.mrb[0].mxu0 %v1070
    %v1452 = vpop.f32.mrb[0].mxu0
    %v1453 = vadd.f32 %v1382, %v1452
    %v1454 = vpop.f32.mrb[0].mxu0
    %v1455 = vadd.f32 %v1384, %v1454
    %1456 = vdwg.mxu0
    %1457 = vmatprep.subr.mxu0 %v748
    %1458 = vmatpush1.msra.mxu0 %v747
    %1459 = vmatprep.subr.mxu0 %v752
    %1460 = vmatpush1.msra.mxu0 %v751
    %1461 = vmatprep.subr.mxu0 %v756
    %1462 = vmatpush1.msra.mxu0 %v755
    %1463 = vmatprep.subr.mxu0 %v760
    %1464 = vmatpush1.msra.mxu0 %v759
    %1465 = vmatprep.subr.mxu0 %v764
    %1466 = vmatpush1.msra.mxu0 %v763
    %1467 = vmatprep.subr.mxu0 %v768
    %1468 = vmatpush1.msra.mxu0 %v767
    %1469 = vmatprep.subr.mxu0 %v772
    %1470 = vmatpush1.msra.mxu0 %v771
    %1471 = vmatprep.subr.mxu0 %v776
    %1472 = vmatpush1.msra.mxu0 %v775
    %1473 = vmatprep.subr.mxu0 %v780
    %1474 = vmatpush1.msra.mxu0 %v779
    %1475 = vmatprep.subr.mxu0 %v784
    %1476 = vmatpush1.msra.mxu0 %v783
    %1477 = vmatprep.subr.mxu0 %v788
    %1478 = vmatpush1.msra.mxu0 %v787
    %1479 = vmatprep.subr.mxu0 %v792
    %1480 = vmatpush1.msra.mxu0 %v791
    %1481 = vmatprep.subr.mxu0 %v796
    %1482 = vmatpush1.msra.mxu0 %v795
    %1483 = vmatprep.subr.mxu0 %v800
    %1484 = vmatpush1.msra.mxu0 %v799
    %1485 = vmatprep.subr.mxu0 %v804
    %1486 = vmatpush1.msra.mxu0 %v803
    %1487 = vmatprep.subr.mxu0 %v808
    %1488 = vmatpush1.msra.mxu0 %v807
    %1489 = vmatprep.subr.mxu0 %v812
    %1490 = vmatpush1.msra.mxu0 %v811
    %1491 = vmatprep.subr.mxu0 %v816
    %1492 = vmatpush1.msra.mxu0 %v815
    %1493 = vmatprep.subr.mxu0 %v820
    %1494 = vmatpush1.msra.mxu0 %v819
    %1495 = vmatprep.subr.mxu0 %v824
    %1496 = vmatpush1.msra.mxu0 %v823
    %1497 = vmatprep.subr.mxu0 %v828
    %1498 = vmatpush1.msra.mxu0 %v827
    %1499 = vmatprep.subr.mxu0 %v832
    %1500 = vmatpush1.msra.mxu0 %v831
    %1501 = vmatprep.subr.mxu0 %v836
    %1502 = vmatpush1.msra.mxu0 %v835
    %1503 = vmatprep.subr.mxu0 %v840
    %1504 = vmatpush1.msra.mxu0 %v839
    %1505 = vmatprep.subr.mxu0 %v844
    %1506 = vmatpush1.msra.mxu0 %v843
    %1507 = vmatprep.subr.mxu0 %v848
    %1508 = vmatpush1.msra.mxu0 %v847
    %1509 = vmatprep.subr.mxu0 %v852
    %1510 = vmatpush1.msra.mxu0 %v851
    %1511 = vmatprep.subr.mxu0 %v856
    %1512 = vmatpush1.msra.mxu0 %v855
    %1513 = vmatprep.subr.mxu0 %v860
    %1514 = vmatpush1.msra.mxu0 %v859
    %1515 = vmatprep.subr.mxu0 %v864
    %1516 = vmatpush1.msra.mxu0 %v863
    %1517 = vmatprep.subr.mxu0 %v868
    %1518 = vmatpush1.msra.mxu0 %v867
    %1519 = vmatprep.subr.mxu0 %v872
    %1520 = vmatpush1.msra.mxu0 %v871
    %1521 = vmatprep.mubr.f32.mxu0 %v1079
    %1522 = vmatmul.mubr.f32.gmra.mrb[0].mxu0 %v1077
    %v1523 = vpop.f32.mrb[0].mxu0
    %v1524 = vadd.f32 %v1453, %v1523
    %v1525 = vpop.f32.mrb[0].mxu0
    %v1526 = vadd.f32 %v1455, %v1525
    %1527 = vdwg.mxu0
    %1528 = vmatprep.subr.mxu0 %v876
    %1529 = vmatpush1.msra.mxu0 %v875
    %1530 = vmatprep.subr.mxu0 %v880
    %1531 = vmatpush1.msra.mxu0 %v879
    %1532 = vmatprep.subr.mxu0 %v884
    %1533 = vmatpush1.msra.mxu0 %v883
    %1534 = vmatprep.subr.mxu0 %v888
    %1535 = vmatpush1.msra.mxu0 %v887
    %1536 = vmatprep.subr.mxu0 %v892
    %1537 = vmatpush1.msra.mxu0 %v891
    %1538 = vmatprep.subr.mxu0 %v896
    %1539 = vmatpush1.msra.mxu0 %v895
    %1540 = vmatprep.subr.mxu0 %v900
    %1541 = vmatpush1.msra.mxu0 %v899
    %1542 = vmatprep.subr.mxu0 %v904
    %1543 = vmatpush1.msra.mxu0 %v903
    %1544 = vmatprep.subr.mxu0 %v908
    %1545 = vmatpush1.msra.mxu0 %v907
    %1546 = vmatprep.subr.mxu0 %v912
    %1547 = vmatpush1.msra.mxu0 %v911
    %1548 = vmatprep.subr.mxu0 %v916
    %1549 = vmatpush1.msra.mxu0 %v915
    %1550 = vmatprep.subr.mxu0 %v920
    %1551 = vmatpush1.msra.mxu0 %v919
    %1552 = vmatprep.subr.mxu0 %v924
    %1553 = vmatpush1.msra.mxu0 %v923
    %1554 = vmatprep.subr.mxu0 %v928
    %1555 = vmatpush1.msra.mxu0 %v927
    %1556 = vmatprep.subr.mxu0 %v932
    %1557 = vmatpush1.msra.mxu0 %v931
    %1558 = vmatprep.subr.mxu0 %v936
    %1559 = vmatpush1.msra.mxu0 %v935
    %1560 = vmatprep.subr.mxu0 %v940
    %1561 = vmatpush1.msra.mxu0 %v939
    %1562 = vmatprep.subr.mxu0 %v944
    %1563 = vmatpush1.msra.mxu0 %v943
    %1564 = vmatprep.subr.mxu0 %v948
    %1565 = vmatpush1.msra.mxu0 %v947
    %1566 = vmatprep.subr.mxu0 %v952
    %1567 = vmatpush1.msra.mxu0 %v951
    %1568 = vmatprep.subr.mxu0 %v956
    %1569 = vmatpush1.msra.mxu0 %v955
    %1570 = vmatprep.subr.mxu0 %v960
    %1571 = vmatpush1.msra.mxu0 %v959
    %1572 = vmatprep.subr.mxu0 %v964
    %1573 = vmatpush1.msra.mxu0 %v963
    %1574 = vmatprep.subr.mxu0 %v968
    %1575 = vmatpush1.msra.mxu0 %v967
    %1576 = vmatprep.subr.mxu0 %v972
    %1577 = vmatpush1.msra.mxu0 %v971
    %1578 = vmatprep.subr.mxu0 %v976
    %1579 = vmatpush1.msra.mxu0 %v975
    %1580 = vmatprep.subr.mxu0 %v980
    %1581 = vmatpush1.msra.mxu0 %v979
    %1582 = vmatprep.subr.mxu0 %v984
    %1583 = vmatpush1.msra.mxu0 %v983
    %1584 = vmatprep.subr.mxu0 %v988
    %1585 = vmatpush1.msra.mxu0 %v987
    %1586 = vmatprep.subr.mxu0 %v992
    %1587 = vmatpush1.msra.mxu0 %v991
    %1588 = vmatprep.subr.mxu0 %v996
    %1589 = vmatpush1.msra.mxu0 %v995
    %1590 = vmatprep.subr.mxu0 %v1000
    %1591 = vmatpush1.msra.mxu0 %v999
    %1592 = vmatprep.mubr.f32.mxu0 %v1087
    %1593 = vmatmul.mubr.f32.gmra.mrb[0].mxu0 %v1086
    %v1594 = vpop.f32.mrb[0].mxu0
    %v1595 = vadd.f32 %v1524, %v1594
    %v1596 = vpop.f32.mrb[0].mxu0
    %v1597 = vadd.f32 %v1526, %v1596
    %1598 = vdwg.mxu0
    %1599 = vmatprep.subr.mxu0 %v110
    %1600 = vmatpush1.msra.mxu0 %v109
    %1601 = vmatprep.subr.mxu0 %v114
    %1602 = vmatpush1.msra.mxu0 %v113
    %1603 = vmatprep.subr.mxu0 %v118
    %1604 = vmatpush1.msra.mxu0 %v117
    %1605 = vmatprep.subr.mxu0 %v122
    %1606 = vmatpush1.msra.mxu0 %v121
    %1607 = vmatprep.subr.mxu0 %v126
    %1608 = vmatpush1.msra.mxu0 %v125
    %1609 = vmatprep.subr.mxu0 %v130
    %1610 = vmatpush1.msra.mxu0 %v129
    %1611 = vmatprep.subr.mxu0 %v134
    %1612 = vmatpush1.msra.mxu0 %v133
    %1613 = vmatprep.subr.mxu0 %v138
    %1614 = vmatpush1.msra.mxu0 %v137
    %1615 = vmatprep.subr.mxu0 %v142
    %1616 = vmatpush1.msra.mxu0 %v141
    %1617 = vmatprep.subr.mxu0 %v146
    %1618 = vmatpush1.msra.mxu0 %v145
    %1619 = vmatprep.subr.mxu0 %v150
    %1620 = vmatpush1.msra.mxu0 %v149
    %1621 = vmatprep.subr.mxu0 %v154
    %1622 = vmatpush1.msra.mxu0 %v153
    %1623 = vmatprep.subr.mxu0 %v158
    %1624 = vmatpush1.msra.mxu0 %v157
    %1625 = vmatprep.subr.mxu0 %v162
    %1626 = vmatpush1.msra.mxu0 %v161
    %1627 = vmatprep.subr.mxu0 %v166
    %1628 = vmatpush1.msra.mxu0 %v165
    %1629 = vmatprep.subr.mxu0 %v170
    %1630 = vmatpush1.msra.mxu0 %v169
    %1631 = vmatprep.subr.mxu0 %v174
    %1632 = vmatpush1.msra.mxu0 %v173
    %1633 = vmatprep.subr.mxu0 %v178
    %1634 = vmatpush1.msra.mxu0 %v177
    %1635 = vmatprep.subr.mxu0 %v182
    %1636 = vmatpush1.msra.mxu0 %v181
    %1637 = vmatprep.subr.mxu0 %v186
    %1638 = vmatpush1.msra.mxu0 %v185
    %1639 = vmatprep.subr.mxu0 %v190
    %1640 = vmatpush1.msra.mxu0 %v189
    %1641 = vmatprep.subr.mxu0 %v194
    %1642 = vmatpush1.msra.mxu0 %v193
    %1643 = vmatprep.subr.mxu0 %v198
    %1644 = vmatpush1.msra.mxu0 %v197
    %1645 = vmatprep.subr.mxu0 %v202
    %1646 = vmatpush1.msra.mxu0 %v201
    %1647 = vmatprep.subr.mxu0 %v206
    %1648 = vmatpush1.msra.mxu0 %v205
    %1649 = vmatprep.subr.mxu0 %v210
    %1650 = vmatpush1.msra.mxu0 %v209
    %1651 = vmatprep.subr.mxu0 %v214
    %1652 = vmatpush1.msra.mxu0 %v213
    %1653 = vmatprep.subr.mxu0 %v218
    %1654 = vmatpush1.msra.mxu0 %v217
    %1655 = vmatprep.subr.mxu0 %v222
    %1656 = vmatpush1.msra.mxu0 %v221
    %1657 = vmatprep.subr.mxu0 %v226
    %1658 = vmatpush1.msra.mxu0 %v225
    %1659 = vmatprep.subr.mxu0 %v230
    %1660 = vmatpush1.msra.mxu0 %v229
    %1661 = vmatprep.subr.mxu0 %v234
    %1662 = vmatpush1.msra.mxu0 %v233
    %1663 = vmatprep.mubr.f32.mxu0 %v1044
    %1664 = vmatmul.mubr.f32.gmra.mrb[0].mxu0 %v1036
    %v1665 = vpop.f32.mrb[0].mxu0
    %v1666 = vadd.f32 %v1016, %v1665
    %v1667 = vpop.f32.mrb[0].mxu0
    %v1668 = vadd.f32 %v1020, %v1667
    %1669 = vdwg.mxu0
    %1670 = vmatprep.subr.mxu0 %v238
    %1671 = vmatpush1.msra.mxu0 %v237
    %1672 = vmatprep.subr.mxu0 %v242
    %1673 = vmatpush1.msra.mxu0 %v241
    %1674 = vmatprep.subr.mxu0 %v246
    %1675 = vmatpush1.msra.mxu0 %v245
    %1676 = vmatprep.subr.mxu0 %v250
    %1677 = vmatpush1.msra.mxu0 %v249
    %1678 = vmatprep.subr.mxu0 %v254
    %1679 = vmatpush1.msra.mxu0 %v253
    %1680 = vmatprep.subr.mxu0 %v258
    %1681 = vmatpush1.msra.mxu0 %v257
    %1682 = vmatprep.subr.mxu0 %v262
    %1683 = vmatpush1.msra.mxu0 %v261
    %1684 = vmatprep.subr.mxu0 %v266
    %1685 = vmatpush1.msra.mxu0 %v265
    %1686 = vmatprep.subr.mxu0 %v270
    %1687 = vmatpush1.msra.mxu0 %v269
    %1688 = vmatprep.subr.mxu0 %v274
    %1689 = vmatpush1.msra.mxu0 %v273
    %1690 = vmatprep.subr.mxu0 %v278
    %1691 = vmatpush1.msra.mxu0 %v277
    %1692 = vmatprep.subr.mxu0 %v282
    %1693 = vmatpush1.msra.mxu0 %v281
    %1694 = vmatprep.subr.mxu0 %v286
    %1695 = vmatpush1.msra.mxu0 %v285
    %1696 = vmatprep.subr.mxu0 %v290
    %1697 = vmatpush1.msra.mxu0 %v289
    %1698 = vmatprep.subr.mxu0 %v294
    %1699 = vmatpush1.msra.mxu0 %v293
    %1700 = vmatprep.subr.mxu0 %v298
    %1701 = vmatpush1.msra.mxu0 %v297
    %1702 = vmatprep.subr.mxu0 %v302
    %1703 = vmatpush1.msra.mxu0 %v301
    %1704 = vmatprep.subr.mxu0 %v306
    %1705 = vmatpush1.msra.mxu0 %v305
    %1706 = vmatprep.subr.mxu0 %v310
    %1707 = vmatpush1.msra.mxu0 %v309
    %1708 = vmatprep.subr.mxu0 %v314
    %1709 = vmatpush1.msra.mxu0 %v313
    %1710 = vmatprep.subr.mxu0 %v318
    %1711 = vmatpush1.msra.mxu0 %v317
    %1712 = vmatprep.subr.mxu0 %v322
    %1713 = vmatpush1.msra.mxu0 %v321
    %1714 = vmatprep.subr.mxu0 %v326
    %1715 = vmatpush1.msra.mxu0 %v325
    %1716 = vmatprep.subr.mxu0 %v330
    %1717 = vmatpush1.msra.mxu0 %v329
    %1718 = vmatprep.subr.mxu0 %v334
    %1719 = vmatpush1.msra.mxu0 %v333
    %1720 = vmatprep.subr.mxu0 %v338
    %1721 = vmatpush1.msra.mxu0 %v337
    %1722 = vmatprep.subr.mxu0 %v342
    %1723 = vmatpush1.msra.mxu0 %v341
    %1724 = vmatprep.subr.mxu0 %v346
    %1725 = vmatpush1.msra.mxu0 %v345
    %1726 = vmatprep.subr.mxu0 %v350
    %1727 = vmatpush1.msra.mxu0 %v349
    %1728 = vmatprep.subr.mxu0 %v354
    %1729 = vmatpush1.msra.mxu0 %v353
    %1730 = vmatprep.subr.mxu0 %v358
    %1731 = vmatpush1.msra.mxu0 %v357
    %1732 = vmatprep.subr.mxu0 %v362
    %1733 = vmatpush1.msra.mxu0 %v361
    %1734 = vmatprep.mubr.f32.mxu0 %v1045
    %1735 = vmatmul.mubr.f32.gmra.mrb[0].mxu0 %v1043
    %v1736 = vpop.f32.mrb[0].mxu0
    %v1737 = vadd.f32 %v1666, %v1736
    %v1738 = vpop.f32.mrb[0].mxu0
    %v1739 = vadd.f32 %v1668, %v1738
    %1740 = vdwg.mxu0
    %1741 = vmatprep.subr.mxu0 %v366
    %1742 = vmatpush1.msra.mxu0 %v365
    %1743 = vmatprep.subr.mxu0 %v370
    %1744 = vmatpush1.msra.mxu0 %v369
    %1745 = vmatprep.subr.mxu0 %v374
    %1746 = vmatpush1.msra.mxu0 %v373
    %1747 = vmatprep.subr.mxu0 %v378
    %1748 = vmatpush1.msra.mxu0 %v377
    %1749 = vmatprep.subr.mxu0 %v382
    %1750 = vmatpush1.msra.mxu0 %v381
    %1751 = vmatprep.subr.mxu0 %v386
    %1752 = vmatpush1.msra.mxu0 %v385
    %1753 = vmatprep.subr.mxu0 %v390
    %1754 = vmatpush1.msra.mxu0 %v389
    %1755 = vmatprep.subr.mxu0 %v394
    %1756 = vmatpush1.msra.mxu0 %v393
    %1757 = vmatprep.subr.mxu0 %v398
    %1758 = vmatpush1.msra.mxu0 %v397
    %1759 = vmatprep.subr.mxu0 %v402
    %1760 = vmatpush1.msra.mxu0 %v401
    %1761 = vmatprep.subr.mxu0 %v406
    %1762 = vmatpush1.msra.mxu0 %v405
    %1763 = vmatprep.subr.mxu0 %v410
    %1764 = vmatpush1.msra.mxu0 %v409
    %1765 = vmatprep.subr.mxu0 %v414
    %1766 = vmatpush1.msra.mxu0 %v413
    %1767 = vmatprep.subr.mxu0 %v418
    %1768 = vmatpush1.msra.mxu0 %v417
    %1769 = vmatprep.subr.mxu0 %v422
    %1770 = vmatpush1.msra.mxu0 %v421
    %1771 = vmatprep.subr.mxu0 %v426
    %1772 = vmatpush1.msra.mxu0 %v425
    %1773 = vmatprep.subr.mxu0 %v430
    %1774 = vmatpush1.msra.mxu0 %v429
    %1775 = vmatprep.subr.mxu0 %v434
    %1776 = vmatpush1.msra.mxu0 %v433
    %1777 = vmatprep.subr.mxu0 %v438
    %1778 = vmatpush1.msra.mxu0 %v437
    %1779 = vmatprep.subr.mxu0 %v442
    %1780 = vmatpush1.msra.mxu0 %v441
    %1781 = vmatprep.subr.mxu0 %v446
    %1782 = vmatpush1.msra.mxu0 %v445
    %1783 = vmatprep.subr.mxu0 %v450
    %1784 = vmatpush1.msra.mxu0 %v449
    %1785 = vmatprep.subr.mxu0 %v454
    %1786 = vmatpush1.msra.mxu0 %v453
    %1787 = vmatprep.subr.mxu0 %v458
    %1788 = vmatpush1.msra.mxu0 %v457
    %1789 = vmatprep.subr.mxu0 %v462
    %1790 = vmatpush1.msra.mxu0 %v461
    %1791 = vmatprep.subr.mxu0 %v466
    %1792 = vmatpush1.msra.mxu0 %v465
    %1793 = vmatprep.subr.mxu0 %v470
    %1794 = vmatpush1.msra.mxu0 %v469
    %1795 = vmatprep.subr.mxu0 %v474
    %1796 = vmatpush1.msra.mxu0 %v473
    %1797 = vmatprep.subr.mxu0 %v478
    %1798 = vmatpush1.msra.mxu0 %v477
    %1799 = vmatprep.subr.mxu0 %v482
    %1800 = vmatpush1.msra.mxu0 %v481
    %1801 = vmatprep.subr.mxu0 %v486
    %1802 = vmatpush1.msra.mxu0 %v485
    %1803 = vmatprep.subr.mxu0 %v490
    %1804 = vmatpush1.msra.mxu0 %v489
    %1805 = vmatprep.mubr.f32.mxu0 %v1061
    %1806 = vmatmul.mubr.f32.gmra.mrb[0].mxu0 %v1053
    %v1807 = vpop.f32.mrb[0].mxu0
    %v1808 = vadd.f32 %v1737, %v1807
    %v1809 = vpop.f32.mrb[0].mxu0
    %v1810 = vadd.f32 %v1739, %v1809
    %1811 = vdwg.mxu0
    %1812 = vmatprep.subr.mxu0 %v494
    %1813 = vmatpush1.msra.mxu0 %v493
    %1814 = vmatprep.subr.mxu0 %v498
    %1815 = vmatpush1.msra.mxu0 %v497
    %1816 = vmatprep.subr.mxu0 %v502
    %1817 = vmatpush1.msra.mxu0 %v501
    %1818 = vmatprep.subr.mxu0 %v506
    %1819 = vmatpush1.msra.mxu0 %v505
    %1820 = vmatprep.subr.mxu0 %v510
    %1821 = vmatpush1.msra.mxu0 %v509
    %1822 = vmatprep.subr.mxu0 %v514
    %1823 = vmatpush1.msra.mxu0 %v513
    %1824 = vmatprep.subr.mxu0 %v518
    %1825 = vmatpush1.msra.mxu0 %v517
    %1826 = vmatprep.subr.mxu0 %v522
    %1827 = vmatpush1.msra.mxu0 %v521
    %1828 = vmatprep.subr.mxu0 %v526
    %1829 = vmatpush1.msra.mxu0 %v525
    %1830 = vmatprep.subr.mxu0 %v530
    %1831 = vmatpush1.msra.mxu0 %v529
    %1832 = vmatprep.subr.mxu0 %v534
    %1833 = vmatpush1.msra.mxu0 %v533
    %1834 = vmatprep.subr.mxu0 %v538
    %1835 = vmatpush1.msra.mxu0 %v537
    %1836 = vmatprep.subr.mxu0 %v542
    %1837 = vmatpush1.msra.mxu0 %v541
    %1838 = vmatprep.subr.mxu0 %v546
    %1839 = vmatpush1.msra.mxu0 %v545
    %1840 = vmatprep.subr.mxu0 %v550
    %1841 = vmatpush1.msra.mxu0 %v549
    %1842 = vmatprep.subr.mxu0 %v554
    %1843 = vmatpush1.msra.mxu0 %v553
    %1844 = vmatprep.subr.mxu0 %v558
    %1845 = vmatpush1.msra.mxu0 %v557
    %1846 = vmatprep.subr.mxu0 %v562
    %1847 = vmatpush1.msra.mxu0 %v561
    %1848 = vmatprep.subr.mxu0 %v566
    %1849 = vmatpush1.msra.mxu0 %v565
    %1850 = vmatprep.subr.mxu0 %v570
    %1851 = vmatpush1.msra.mxu0 %v569
    %1852 = vmatprep.subr.mxu0 %v574
    %1853 = vmatpush1.msra.mxu0 %v573
    %1854 = vmatprep.subr.mxu0 %v578
    %1855 = vmatpush1.msra.mxu0 %v577
    %1856 = vmatprep.subr.mxu0 %v582
    %1857 = vmatpush1.msra.mxu0 %v581
    %1858 = vmatprep.subr.mxu0 %v586
    %1859 = vmatpush1.msra.mxu0 %v585
    %1860 = vmatprep.subr.mxu0 %v590
    %1861 = vmatpush1.msra.mxu0 %v589
    %1862 = vmatprep.subr.mxu0 %v594
    %1863 = vmatpush1.msra.mxu0 %v593
    %1864 = vmatprep.subr.mxu0 %v598
    %1865 = vmatpush1.msra.mxu0 %v597
    %1866 = vmatprep.subr.mxu0 %v602
    %1867 = vmatpush1.msra.mxu0 %v601
    %1868 = vmatprep.subr.mxu0 %v606
    %1869 = vmatpush1.msra.mxu0 %v605
    %1870 = vmatprep.subr.mxu0 %v610
    %1871 = vmatpush1.msra.mxu0 %v609
    %1872 = vmatprep.subr.mxu0 %v614
    %1873 = vmatpush1.msra.mxu0 %v613
    %1874 = vmatprep.subr.mxu0 %v618
    %1875 = vmatpush1.msra.mxu0 %v617
    %1876 = vmatprep.mubr.f32.mxu0 %v1062
    %1877 = vmatmul.mubr.f32.gmra.mrb[0].mxu0 %v1060
    %v1878 = vpop.f32.mrb[0].mxu0
    %v1879 = vadd.f32 %v1808, %v1878
    %v1880 = vpop.f32.mrb[0].mxu0
    %v1881 = vadd.f32 %v1810, %v1880
    %1882 = vdwg.mxu0
    %1883 = vmatprep.subr.mxu0 %v622
    %1884 = vmatpush1.msra.mxu0 %v621
    %1885 = vmatprep.subr.mxu0 %v626
    %1886 = vmatpush1.msra.mxu0 %v625
    %1887 = vmatprep.subr.mxu0 %v630
    %1888 = vmatpush1.msra.mxu0 %v629
    %1889 = vmatprep.subr.mxu0 %v634
    %1890 = vmatpush1.msra.mxu0 %v633
    %1891 = vmatprep.subr.mxu0 %v638
    %1892 = vmatpush1.msra.mxu0 %v637
    %1893 = vmatprep.subr.mxu0 %v642
    %1894 = vmatpush1.msra.mxu0 %v641
    %1895 = vmatprep.subr.mxu0 %v646
    %1896 = vmatpush1.msra.mxu0 %v645
    %1897 = vmatprep.subr.mxu0 %v650
    %1898 = vmatpush1.msra.mxu0 %v649
    %1899 = vmatprep.subr.mxu0 %v654
    %1900 = vmatpush1.msra.mxu0 %v653
    %1901 = vmatprep.subr.mxu0 %v658
    %1902 = vmatpush1.msra.mxu0 %v657
    %1903 = vmatprep.subr.mxu0 %v662
    %1904 = vmatpush1.msra.mxu0 %v661
    %1905 = vmatprep.subr.mxu0 %v666
    %1906 = vmatpush1.msra.mxu0 %v665
    %1907 = vmatprep.subr.mxu0 %v670
    %1908 = vmatpush1.msra.mxu0 %v669
    %1909 = vmatprep.subr.mxu0 %v674
    %1910 = vmatpush1.msra.mxu0 %v673
    %1911 = vmatprep.subr.mxu0 %v678
    %1912 = vmatpush1.msra.mxu0 %v677
    %1913 = vmatprep.subr.mxu0 %v682
    %1914 = vmatpush1.msra.mxu0 %v681
    %1915 = vmatprep.subr.mxu0 %v686
    %1916 = vmatpush1.msra.mxu0 %v685
    %1917 = vmatprep.subr.mxu0 %v690
    %1918 = vmatpush1.msra.mxu0 %v689
    %1919 = vmatprep.subr.mxu0 %v694
    %1920 = vmatpush1.msra.mxu0 %v693
    %1921 = vmatprep.subr.mxu0 %v698
    %1922 = vmatpush1.msra.mxu0 %v697
    %1923 = vmatprep.subr.mxu0 %v702
    %1924 = vmatpush1.msra.mxu0 %v701
    %1925 = vmatprep.subr.mxu0 %v706
    %1926 = vmatpush1.msra.mxu0 %v705
    %1927 = vmatprep.subr.mxu0 %v710
    %1928 = vmatpush1.msra.mxu0 %v709
    %1929 = vmatprep.subr.mxu0 %v714
    %1930 = vmatpush1.msra.mxu0 %v713
    %1931 = vmatprep.subr.mxu0 %v718
    %1932 = vmatpush1.msra.mxu0 %v717
    %1933 = vmatprep.subr.mxu0 %v722
    %1934 = vmatpush1.msra.mxu0 %v721
    %1935 = vmatprep.subr.mxu0 %v726
    %1936 = vmatpush1.msra.mxu0 %v725
    %1937 = vmatprep.subr.mxu0 %v730
    %1938 = vmatpush1.msra.mxu0 %v729
    %1939 = vmatprep.subr.mxu0 %v734
    %1940 = vmatpush1.msra.mxu0 %v733
    %1941 = vmatprep.subr.mxu0 %v738
    %1942 = vmatpush1.msra.mxu0 %v737
    %1943 = vmatprep.subr.mxu0 %v742
    %1944 = vmatpush1.msra.mxu0 %v741
    %1945 = vmatprep.subr.mxu0 %v746
    %1946 = vmatpush1.msra.mxu0 %v745
    %1947 = vmatprep.mubr.f32.mxu0 %v1078
    %1948 = vmatmul.mubr.f32.gmra.mrb[0].mxu0 %v1070
    %v1949 = vpop.f32.mrb[0].mxu0
    %v1950 = vadd.f32 %v1879, %v1949
    %v1951 = vpop.f32.mrb[0].mxu0
    %v1952 = vadd.f32 %v1881, %v1951
    %1953 = vdwg.mxu0
    %1954 = vmatprep.subr.mxu0 %v750
    %1955 = vmatpush1.msra.mxu0 %v749
    %1956 = vmatprep.subr.mxu0 %v754
    %1957 = vmatpush1.msra.mxu0 %v753
    %1958 = vmatprep.subr.mxu0 %v758
    %1959 = vmatpush1.msra.mxu0 %v757
    %1960 = vmatprep.subr.mxu0 %v762
    %1961 = vmatpush1.msra.mxu0 %v761
    %1962 = vmatprep.subr.mxu0 %v766
    %1963 = vmatpush1.msra.mxu0 %v765
    %1964 = vmatprep.subr.mxu0 %v770
    %1965 = vmatpush1.msra.mxu0 %v769
    %1966 = vmatprep.subr.mxu0 %v774
    %1967 = vmatpush1.msra.mxu0 %v773
    %1968 = vmatprep.subr.mxu0 %v778
    %1969 = vmatpush1.msra.mxu0 %v777
    %1970 = vmatprep.subr.mxu0 %v782
    %1971 = vmatpush1.msra.mxu0 %v781
    %1972 = vmatprep.subr.mxu0 %v786
    %1973 = vmatpush1.msra.mxu0 %v785
    %1974 = vmatprep.subr.mxu0 %v790
    %1975 = vmatpush1.msra.mxu0 %v789
    %1976 = vmatprep.subr.mxu0 %v794
    %1977 = vmatpush1.msra.mxu0 %v793
    %1978 = vmatprep.subr.mxu0 %v798
    %1979 = vmatpush1.msra.mxu0 %v797
    %1980 = vmatprep.subr.mxu0 %v802
    %1981 = vmatpush1.msra.mxu0 %v801
    %1982 = vmatprep.subr.mxu0 %v806
    %1983 = vmatpush1.msra.mxu0 %v805
    %1984 = vmatprep.subr.mxu0 %v810
    %1985 = vmatpush1.msra.mxu0 %v809
    %1986 = vmatprep.subr.mxu0 %v814
    %1987 = vmatpush1.msra.mxu0 %v813
    %1988 = vmatprep.subr.mxu0 %v818
    %1989 = vmatpush1.msra.mxu0 %v817
    %1990 = vmatprep.subr.mxu0 %v822
    %1991 = vmatpush1.msra.mxu0 %v821
    %1992 = vmatprep.subr.mxu0 %v826
    %1993 = vmatpush1.msra.mxu0 %v825
    %1994 = vmatprep.subr.mxu0 %v830
    %1995 = vmatpush1.msra.mxu0 %v829
    %1996 = vmatprep.subr.mxu0 %v834
    %1997 = vmatpush1.msra.mxu0 %v833
    %1998 = vmatprep.subr.mxu0 %v838
    %1999 = vmatpush1.msra.mxu0 %v837
    %2000 = vmatprep.subr.mxu0 %v842
    %2001 = vmatpush1.msra.mxu0 %v841
    %2002 = vmatprep.subr.mxu0 %v846
    %2003 = vmatpush1.msra.mxu0 %v845
    %2004 = vmatprep.subr.mxu0 %v850
    %2005 = vmatpush1.msra.mxu0 %v849
    %2006 = vmatprep.subr.mxu0 %v854
    %2007 = vmatpush1.msra.mxu0 %v853
    %2008 = vmatprep.subr.mxu0 %v858
    %2009 = vmatpush1.msra.mxu0 %v857
    %2010 = vmatprep.subr.mxu0 %v862
    %2011 = vmatpush1.msra.mxu0 %v861
    %2012 = vmatprep.subr.mxu0 %v866
    %2013 = vmatpush1.msra.mxu0 %v865
    %2014 = vmatprep.subr.mxu0 %v870
    %2015 = vmatpush1.msra.mxu0 %v869
    %2016 = vmatprep.subr.mxu0 %v874
    %2017 = vmatpush1.msra.mxu0 %v873
    %2018 = vmatprep.mubr.f32.mxu0 %v1079
    %2019 = vmatmul.mubr.f32.gmra.mrb[0].mxu0 %v1077
    %v2020 = vpop.f32.mrb[0].mxu0
    %v2021 = vadd.f32 %v1950, %v2020
    %v2022 = vpop.f32.mrb[0].mxu0
    %v2023 = vadd.f32 %v1952, %v2022
    %2024 = vdwg.mxu0
    %2025 = vmatprep.subr.mxu0 %v878
    %2026 = vmatpush1.msra.mxu0 %v877
    %2027 = vmatprep.subr.mxu0 %v882
    %2028 = vmatpush1.msra.mxu0 %v881
    %2029 = vmatprep.subr.mxu0 %v886
    %2030 = vmatpush1.msra.mxu0 %v885
    %2031 = vmatprep.subr.mxu0 %v890
    %2032 = vmatpush1.msra.mxu0 %v889
    %2033 = vmatprep.subr.mxu0 %v894
    %2034 = vmatpush1.msra.mxu0 %v893
    %2035 = vmatprep.subr.mxu0 %v898
    %2036 = vmatpush1.msra.mxu0 %v897
    %2037 = vmatprep.subr.mxu0 %v902
    %2038 = vmatpush1.msra.mxu0 %v901
    %2039 = vmatprep.subr.mxu0 %v906
    %2040 = vmatpush1.msra.mxu0 %v905
    %2041 = vmatprep.subr.mxu0 %v910
    %2042 = vmatpush1.msra.mxu0 %v909
    %2043 = vmatprep.subr.mxu0 %v914
    %2044 = vmatpush1.msra.mxu0 %v913
    %2045 = vmatprep.subr.mxu0 %v918
    %2046 = vmatpush1.msra.mxu0 %v917
    %2047 = vmatprep.subr.mxu0 %v922
    %2048 = vmatpush1.msra.mxu0 %v921
    %2049 = vmatprep.subr.mxu0 %v926
    %2050 = vmatpush1.msra.mxu0 %v925
    %2051 = vmatprep.subr.mxu0 %v930
    %2052 = vmatpush1.msra.mxu0 %v929
    %2053 = vmatprep.subr.mxu0 %v934
    %2054 = vmatpush1.msra.mxu0 %v933
    %2055 = vmatprep.subr.mxu0 %v938
    %2056 = vmatpush1.msra.mxu0 %v937
    %2057 = vmatprep.subr.mxu0 %v942
    %2058 = vmatpush1.msra.mxu0 %v941
    %2059 = vmatprep.subr.mxu0 %v946
    %2060 = vmatpush1.msra.mxu0 %v945
    %2061 = vmatprep.subr.mxu0 %v950
    %2062 = vmatpush1.msra.mxu0 %v949
    %2063 = vmatprep.subr.mxu0 %v954
    %2064 = vmatpush1.msra.mxu0 %v953
    %2065 = vmatprep.subr.mxu0 %v958
    %2066 = vmatpush1.msra.mxu0 %v957
    %2067 = vmatprep.subr.mxu0 %v962
    %2068 = vmatpush1.msra.mxu0 %v961
    %2069 = vmatprep.subr.mxu0 %v966
    %2070 = vmatpush1.msra.mxu0 %v965
    %2071 = vmatprep.subr.mxu0 %v970
    %2072 = vmatpush1.msra.mxu0 %v969
    %2073 = vmatprep.subr.mxu0 %v974
    %2074 = vmatpush1.msra.mxu0 %v973
    %2075 = vmatprep.subr.mxu0 %v978
    %2076 = vmatpush1.msra.mxu0 %v977
    %2077 = vmatprep.subr.mxu0 %v982
    %2078 = vmatpush1.msra.mxu0 %v981
    %2079 = vmatprep.subr.mxu0 %v986
    %2080 = vmatpush1.msra.mxu0 %v985
    %2081 = vmatprep.subr.mxu0 %v990
    %2082 = vmatpush1.msra.mxu0 %v989
    %2083 = vmatprep.subr.mxu0 %v994
    %2084 = vmatpush1.msra.mxu0 %v993
    %2085 = vmatprep.subr.mxu0 %v998
    %2086 = vmatpush1.msra.mxu0 %v997
    %2087 = vmatprep.subr.mxu0 %v1002
    %2088 = vmatpush1.msra.mxu0 %v1001
    %2089 = vmatprep.mubr.f32.mxu0 %v1087
    %2090 = vmatmul.mubr.f32.gmra.mrb[0].mxu0 %v1086
    %v2091 = vpop.f32.mrb[0].mxu0
    %v2092 = vadd.f32 %v2021, %v2091
    %v2093 = vpop.f32.mrb[0].mxu0
    %v2094 = vadd.f32 %v2023, %v2093
    %2095 = vdwg.mxu0
    %v2096 = vmax.f32 %v1595, 0.0
    %v2097 = vmax.f32 %v1597, 0.0
    %v2098 = vmax.f32 %v2092, 0.0
    %v2099 = vmax.f32 %v2094, 0.0
    %v2100 = vld [vmem:[#allocation7] sm:$0xff]
    %v2101 = vld [vmem:[#allocation7 + $0x8] sm:$0xff]
    %v2102 = vld [vmem:[#allocation7 + $0x10] sm:$0xff]
    %v2103 = vld [vmem:[#allocation7 + $0x18] sm:$0xff]
    %v2104 = vld [vmem:[#allocation7 + $0x20] sm:$0xff]
    %v2105 = vld [vmem:[#allocation7 + $0x28] sm:$0xff]
    %v2106 = vld [vmem:[#allocation7 + $0x30] sm:$0xff]
    %v2107 = vld [vmem:[#allocation7 + $0x38] sm:$0xff]
    %v2108 = vld [vmem:[#allocation7 + $0x40] sm:$0xff]
    %v2109 = vld [vmem:[#allocation7 + $0x48] sm:$0xff]
    %v2110 = vld [vmem:[#allocation7 + $0x50] sm:$0xff]
    %v2111 = vld [vmem:[#allocation7 + $0x58] sm:$0xff]
    %v2112 = vld [vmem:[#allocation7 + $0x60] sm:$0xff]
    %v2113 = vld [vmem:[#allocation7 + $0x68] sm:$0xff]
    %v2114 = vld [vmem:[#allocation7 + $0x70] sm:$0xff]
    %v2115 = vld [vmem:[#allocation7 + $0x78] sm:$0xff]
    %v2116 = vld [vmem:[#allocation7 + $0x80] sm:$0xff]
    %v2117 = vld [vmem:[#allocation7 + $0x88] sm:$0xff]
    %v2118 = vld [vmem:[#allocation7 + $0x90] sm:$0xff]
    %v2119 = vld [vmem:[#allocation7 + $0x98] sm:$0xff]
    %v2120 = vld [vmem:[#allocation7 + $0xa0] sm:$0xff]
    %v2121 = vld [vmem:[#allocation7 + $0xa8] sm:$0xff]
    %v2122 = vld [vmem:[#allocation7 + $0xb0] sm:$0xff]
    %v2123 = vld [vmem:[#allocation7 + $0xb8] sm:$0xff]
    %v2124 = vld [vmem:[#allocation7 + $0xc0] sm:$0xff]
    %v2125 = vld [vmem:[#allocation7 + $0xc8] sm:$0xff]
    %v2126 = vld [vmem:[#allocation7 + $0xd0] sm:$0xff]
    %v2127 = vld [vmem:[#allocation7 + $0xd8] sm:$0xff]
    %v2128 = vld [vmem:[#allocation7 + $0xe0] sm:$0xff]
    %v2129 = vld [vmem:[#allocation7 + $0xe8] sm:$0xff]
    %v2130 = vld [vmem:[#allocation7 + $0xf0] sm:$0xff]
    %v2131 = vld [vmem:[#allocation7 + $0xf8] sm:$0xff]
    %v2132 = vld [vmem:[#allocation7 + $0x100] sm:$0xff]
    %v2133 = vld [vmem:[#allocation7 + $0x108] sm:$0xff]
    %v2134 = vld [vmem:[#allocation7 + $0x110] sm:$0xff]
    %v2135 = vld [vmem:[#allocation7 + $0x118] sm:$0xff]
    %v2136 = vld [vmem:[#allocation7 + $0x120] sm:$0xff]
    %v2137 = vld [vmem:[#allocation7 + $0x128] sm:$0xff]
    %v2138 = vld [vmem:[#allocation7 + $0x130] sm:$0xff]
    %v2139 = vld [vmem:[#allocation7 + $0x138] sm:$0xff]
    %v2140 = vld [vmem:[#allocation7 + $0x140] sm:$0xff]
    %v2141 = vld [vmem:[#allocation7 + $0x148] sm:$0xff]
    %v2142 = vld [vmem:[#allocation7 + $0x150] sm:$0xff]
    %v2143 = vld [vmem:[#allocation7 + $0x158] sm:$0xff]
    %v2144 = vld [vmem:[#allocation7 + $0x160] sm:$0xff]
    %v2145 = vld [vmem:[#allocation7 + $0x168] sm:$0xff]
    %v2146 = vld [vmem:[#allocation7 + $0x170] sm:$0xff]
    %v2147 = vld [vmem:[#allocation7 + $0x178] sm:$0xff]
    %v2148 = vld [vmem:[#allocation7 + $0x180] sm:$0xff]
    %v2149 = vld [vmem:[#allocation7 + $0x188] sm:$0xff]
    %v2150 = vld [vmem:[#allocation7 + $0x190] sm:$0xff]
    %v2151 = vld [vmem:[#allocation7 + $0x198] sm:$0xff]
    %v2152 = vld [vmem:[#allocation7 + $0x1a0] sm:$0xff]
    %v2153 = vld [vmem:[#allocation7 + $0x1a8] sm:$0xff]
    %v2154 = vld [vmem:[#allocation7 + $0x1b0] sm:$0xff]
    %v2155 = vld [vmem:[#allocation7 + $0x1b8] sm:$0xff]
    %v2156 = vld [vmem:[#allocation7 + $0x1c0] sm:$0xff]
    %v2157 = vld [vmem:[#allocation7 + $0x1c8] sm:$0xff]
    %v2158 = vld [vmem:[#allocation7 + $0x1d0] sm:$0xff]
    %v2159 = vld [vmem:[#allocation7 + $0x1d8] sm:$0xff]
    %v2160 = vld [vmem:[#allocation7 + $0x1e0] sm:$0xff]
    %v2161 = vld [vmem:[#allocation7 + $0x1e8] sm:$0xff]
    %v2162 = vld [vmem:[#allocation7 + $0x1f0] sm:$0xff]
    %v2163 = vld [vmem:[#allocation7 + $0x1f8] sm:$0xff]
    %v2164 = vld [vmem:[#allocation7 + $0x200] sm:$0xff]
    %v2165 = vld [vmem:[#allocation7 + $0x208] sm:$0xff]
    %v2166 = vld [vmem:[#allocation7 + $0x210] sm:$0xff]
    %v2167 = vld [vmem:[#allocation7 + $0x218] sm:$0xff]
    %v2168 = vld [vmem:[#allocation7 + $0x220] sm:$0xff]
    %v2169 = vld [vmem:[#allocation7 + $0x228] sm:$0xff]
    %v2170 = vld [vmem:[#allocation7 + $0x230] sm:$0xff]
    %v2171 = vld [vmem:[#allocation7 + $0x238] sm:$0xff]
    %v2172 = vld [vmem:[#allocation7 + $0x240] sm:$0xff]
    %v2173 = vld [vmem:[#allocation7 + $0x248] sm:$0xff]
    %v2174 = vld [vmem:[#allocation7 + $0x250] sm:$0xff]
    %v2175 = vld [vmem:[#allocation7 + $0x258] sm:$0xff]
    %v2176 = vld [vmem:[#allocation7 + $0x260] sm:$0xff]
    %v2177 = vld [vmem:[#allocation7 + $0x268] sm:$0xff]
    %v2178 = vld [vmem:[#allocation7 + $0x270] sm:$0xff]
    %v2179 = vld [vmem:[#allocation7 + $0x278] sm:$0xff]
    %v2180 = vld [vmem:[#allocation7 + $0x280] sm:$0xff]
    %v2181 = vld [vmem:[#allocation7 + $0x288] sm:$0xff]
    %v2182 = vld [vmem:[#allocation7 + $0x290] sm:$0xff]
    %v2183 = vld [vmem:[#allocation7 + $0x298] sm:$0xff]
    %v2184 = vld [vmem:[#allocation7 + $0x2a0] sm:$0xff]
    %v2185 = vld [vmem:[#allocation7 + $0x2a8] sm:$0xff]
    %v2186 = vld [vmem:[#allocation7 + $0x2b0] sm:$0xff]
    %v2187 = vld [vmem:[#allocation7 + $0x2b8] sm:$0xff]
    %v2188 = vld [vmem:[#allocation7 + $0x2c0] sm:$0xff]
    %v2189 = vld [vmem:[#allocation7 + $0x2c8] sm:$0xff]
    %v2190 = vld [vmem:[#allocation7 + $0x2d0] sm:$0xff]
    %v2191 = vld [vmem:[#allocation7 + $0x2d8] sm:$0xff]
    %v2192 = vld [vmem:[#allocation7 + $0x2e0] sm:$0xff]
    %v2193 = vld [vmem:[#allocation7 + $0x2e8] sm:$0xff]
    %v2194 = vld [vmem:[#allocation7 + $0x2f0] sm:$0xff]
    %v2195 = vld [vmem:[#allocation7 + $0x2f8] sm:$0xff]
    %v2196 = vld [vmem:[#allocation7 + $0x300] sm:$0xff]
    %v2197 = vld [vmem:[#allocation7 + $0x308] sm:$0xff]
    %v2198 = vld [vmem:[#allocation7 + $0x310] sm:$0xff]
    %v2199 = vld [vmem:[#allocation7 + $0x318] sm:$0xff]
    %v2200 = vld [vmem:[#allocation7 + $0x320] sm:$0xff]
    %v2201 = vld [vmem:[#allocation7 + $0x328] sm:$0xff]
    %v2202 = vld [vmem:[#allocation7 + $0x330] sm:$0xff]
    %v2203 = vld [vmem:[#allocation7 + $0x338] sm:$0xff]
    %v2204 = vld [vmem:[#allocation7 + $0x340] sm:$0xff]
    %v2205 = vld [vmem:[#allocation7 + $0x348] sm:$0xff]
    %v2206 = vld [vmem:[#allocation7 + $0x350] sm:$0xff]
    %v2207 = vld [vmem:[#allocation7 + $0x358] sm:$0xff]
    %v2208 = vld [vmem:[#allocation7 + $0x360] sm:$0xff]
    %v2209 = vld [vmem:[#allocation7 + $0x368] sm:$0xff]
    %v2210 = vld [vmem:[#allocation7 + $0x370] sm:$0xff]
    %v2211 = vld [vmem:[#allocation7 + $0x378] sm:$0xff]
    %v2212 = vld [vmem:[#allocation7 + $0x380] sm:$0xff]
    %v2213 = vld [vmem:[#allocation7 + $0x388] sm:$0xff]
    %v2214 = vld [vmem:[#allocation7 + $0x390] sm:$0xff]
    %v2215 = vld [vmem:[#allocation7 + $0x398] sm:$0xff]
    %v2216 = vld [vmem:[#allocation7 + $0x3a0] sm:$0xff]
    %v2217 = vld [vmem:[#allocation7 + $0x3a8] sm:$0xff]
    %v2218 = vld [vmem:[#allocation7 + $0x3b0] sm:$0xff]
    %v2219 = vld [vmem:[#allocation7 + $0x3b8] sm:$0xff]
    %v2220 = vld [vmem:[#allocation7 + $0x3c0] sm:$0xff]
    %v2221 = vld [vmem:[#allocation7 + $0x3c8] sm:$0xff]
    %v2222 = vld [vmem:[#allocation7 + $0x3d0] sm:$0xff]
    %v2223 = vld [vmem:[#allocation7 + $0x3d8] sm:$0xff]
    %v2224 = vld [vmem:[#allocation7 + $0x3e0] sm:$0xff]
    %v2225 = vld [vmem:[#allocation7 + $0x3e8] sm:$0xff]
    %v2226 = vld [vmem:[#allocation7 + $0x3f0] sm:$0xff]
    %v2227 = vld [vmem:[#allocation7 + $0x3f8] sm:$0xff]
    %v2228 = vld [vmem:[#allocation8] sm:$0x3]
    %v2230 = vlaneseq
    %v2231 = vshrl.u32 %v2230, 7
    %v2232 = vsub.s32 0, %v2231
    %v2233 = vrot.slane %v2228, %v2232
    %v2234 = vlaneseq
    %v2235 = vshrl.u32 %v2234, 7
    %v2236 = vsub.s32 1, %v2235
    %v2237 = vrot.slane %v2228, %v2236
    %2240 = vmatprep.subr.mxu0 %v2101
    %2241 = vmatpush1.msra.mxu0 %v2100
    %2242 = vmatprep.subr.mxu0 %v2103
    %2243 = vmatpush1.msra.mxu0 %v2102
    %2244 = vmatprep.subr.mxu0 %v2105
    %2245 = vmatpush1.msra.mxu0 %v2104
    %2246 = vmatprep.subr.mxu0 %v2107
    %2247 = vmatpush1.msra.mxu0 %v2106
    %2248 = vmatprep.subr.mxu0 %v2109
    %2249 = vmatpush1.msra.mxu0 %v2108
    %2250 = vmatprep.subr.mxu0 %v2111
    %2251 = vmatpush1.msra.mxu0 %v2110
    %2252 = vmatprep.subr.mxu0 %v2113
    %2253 = vmatpush1.msra.mxu0 %v2112
    %2254 = vmatprep.subr.mxu0 %v2115
    %2255 = vmatpush1.msra.mxu0 %v2114
    %2256 = vmatprep.subr.mxu0 %v2117
    %2257 = vmatpush1.msra.mxu0 %v2116
    %2258 = vmatprep.subr.mxu0 %v2119
    %2259 = vmatpush1.msra.mxu0 %v2118
    %2260 = vmatprep.subr.mxu0 %v2121
    %2261 = vmatpush1.msra.mxu0 %v2120
    %2262 = vmatprep.subr.mxu0 %v2123
    %2263 = vmatpush1.msra.mxu0 %v2122
    %2264 = vmatprep.subr.mxu0 %v2125
    %2265 = vmatpush1.msra.mxu0 %v2124
    %2266 = vmatprep.subr.mxu0 %v2127
    %2267 = vmatpush1.msra.mxu0 %v2126
    %2268 = vmatprep.subr.mxu0 %v2129
    %2269 = vmatpush1.msra.mxu0 %v2128
    %2270 = vmatprep.subr.mxu0 %v2131
    %2271 = vmatpush1.msra.mxu0 %v2130
    %2272 = vmatprep.subr.mxu0 %v2133
    %2273 = vmatpush1.msra.mxu0 %v2132
    %2274 = vmatprep.subr.mxu0 %v2135
    %2275 = vmatpush1.msra.mxu0 %v2134
    %2276 = vmatprep.subr.mxu0 %v2137
    %2277 = vmatpush1.msra.mxu0 %v2136
    %2278 = vmatprep.subr.mxu0 %v2139
    %2279 = vmatpush1.msra.mxu0 %v2138
    %2280 = vmatprep.subr.mxu0 %v2141
    %2281 = vmatpush1.msra.mxu0 %v2140
    %2282 = vmatprep.subr.mxu0 %v2143
    %2283 = vmatpush1.msra.mxu0 %v2142
    %2284 = vmatprep.subr.mxu0 %v2145
    %2285 = vmatpush1.msra.mxu0 %v2144
    %2286 = vmatprep.subr.mxu0 %v2147
    %2287 = vmatpush1.msra.mxu0 %v2146
    %2288 = vmatprep.subr.mxu0 %v2149
    %2289 = vmatpush1.msra.mxu0 %v2148
    %2290 = vmatprep.subr.mxu0 %v2151
    %2291 = vmatpush1.msra.mxu0 %v2150
    %2292 = vmatprep.subr.mxu0 %v2153
    %2293 = vmatpush1.msra.mxu0 %v2152
    %2294 = vmatprep.subr.mxu0 %v2155
    %2295 = vmatpush1.msra.mxu0 %v2154
    %2296 = vmatprep.subr.mxu0 %v2157
    %2297 = vmatpush1.msra.mxu0 %v2156
    %2298 = vmatprep.subr.mxu0 %v2159
    %2299 = vmatpush1.msra.mxu0 %v2158
    %2300 = vmatprep.subr.mxu0 %v2161
    %2301 = vmatpush1.msra.mxu0 %v2160
    %2302 = vmatprep.subr.mxu0 %v2163
    %2303 = vmatpush1.msra.mxu0 %v2162
    %2304 = vmatprep.mubr.f32.mxu0 %v2097
    %2305 = vmatmul.mubr.f32.gmra.mrb[0].mxu0 %v2096
    %v2306 = vpop.f32.mrb[0].mxu0
    %v2307 = vadd.f32 %v2233, %v2306
    %v2308 = vpop.f32.mrb[0].mxu0
    %v2309 = vadd.f32 %v2237, %v2308
    %2310 = vdwg.mxu0
    %2311 = vmatprep.subr.mxu0 %v2165
    %2312 = vmatpush1.msra.mxu0 %v2164
    %2313 = vmatprep.subr.mxu0 %v2167
    %2314 = vmatpush1.msra.mxu0 %v2166
    %2315 = vmatprep.subr.mxu0 %v2169
    %2316 = vmatpush1.msra.mxu0 %v2168
    %2317 = vmatprep.subr.mxu0 %v2171
    %2318 = vmatpush1.msra.mxu0 %v2170
    %2319 = vmatprep.subr.mxu0 %v2173
    %2320 = vmatpush1.msra.mxu0 %v2172
    %2321 = vmatprep.subr.mxu0 %v2175
    %2322 = vmatpush1.msra.mxu0 %v2174
    %2323 = vmatprep.subr.mxu0 %v2177
    %2324 = vmatpush1.msra.mxu0 %v2176
    %2325 = vmatprep.subr.mxu0 %v2179
    %2326 = vmatpush1.msra.mxu0 %v2178
    %2327 = vmatprep.subr.mxu0 %v2181
    %2328 = vmatpush1.msra.mxu0 %v2180
    %2329 = vmatprep.subr.mxu0 %v2183
    %2330 = vmatpush1.msra.mxu0 %v2182
    %2331 = vmatprep.subr.mxu0 %v2185
    %2332 = vmatpush1.msra.mxu0 %v2184
    %2333 = vmatprep.subr.mxu0 %v2187
    %2334 = vmatpush1.msra.mxu0 %v2186
    %2335 = vmatprep.subr.mxu0 %v2189
    %2336 = vmatpush1.msra.mxu0 %v2188
    %2337 = vmatprep.subr.mxu0 %v2191
    %2338 = vmatpush1.msra.mxu0 %v2190
    %2339 = vmatprep.subr.mxu0 %v2193
    %2340 = vmatpush1.msra.mxu0 %v2192
    %2341 = vmatprep.subr.mxu0 %v2195
    %2342 = vmatpush1.msra.mxu0 %v2194
    %2343 = vmatprep.subr.mxu0 %v2197
    %2344 = vmatpush1.msra.mxu0 %v2196
    %2345 = vmatprep.subr.mxu0 %v2199
    %2346 = vmatpush1.msra.mxu0 %v2198
    %2347 = vmatprep.subr.mxu0 %v2201
    %2348 = vmatpush1.msra.mxu0 %v2200
    %2349 = vmatprep.subr.mxu0 %v2203
    %2350 = vmatpush1.msra.mxu0 %v2202
    %2351 = vmatprep.subr.mxu0 %v2205
    %2352 = vmatpush1.msra.mxu0 %v2204
    %2353 = vmatprep.subr.mxu0 %v2207
    %2354 = vmatpush1.msra.mxu0 %v2206
    %2355 = vmatprep.subr.mxu0 %v2209
    %2356 = vmatpush1.msra.mxu0 %v2208
    %2357 = vmatprep.subr.mxu0 %v2211
    %2358 = vmatpush1.msra.mxu0 %v2210
    %2359 = vmatprep.subr.mxu0 %v2213
    %2360 = vmatpush1.msra.mxu0 %v2212
    %2361 = vmatprep.subr.mxu0 %v2215
    %2362 = vmatpush1.msra.mxu0 %v2214
    %2363 = vmatprep.subr.mxu0 %v2217
    %2364 = vmatpush1.msra.mxu0 %v2216
    %2365 = vmatprep.subr.mxu0 %v2219
    %2366 = vmatpush1.msra.mxu0 %v2218
    %2367 = vmatprep.subr.mxu0 %v2221
    %2368 = vmatpush1.msra.mxu0 %v2220
    %2369 = vmatprep.subr.mxu0 %v2223
    %2370 = vmatpush1.msra.mxu0 %v2222
    %2371 = vmatprep.subr.mxu0 %v2225
    %2372 = vmatpush1.msra.mxu0 %v2224
    %2373 = vmatprep.subr.mxu0 %v2227
    %2374 = vmatpush1.msra.mxu0 %v2226
    %2375 = vmatprep.mubr.f32.mxu0 %v2099
    %2376 = vmatmul.mubr.f32.gmra.mrb[0].mxu0 %v2098
    %v2377 = vpop.f32.mrb[0].mxu0
    %v2378 = vadd.f32 %v2307, %v2377
    %v2379 = vpop.f32.mrb[0].mxu0
    %v2380 = vadd.f32 %v2309, %v2379
    %2381 = vdwg.mxu0
    %v2382 = vmax.f32 %v2378, 0.0
    %v2383 = vmax.f32 %v2380, 0.0
    %v2384 = vld [vmem:[#allocation10] sm:$0xff]
    %v2385 = vld [vmem:[#allocation10 + $0x8] sm:$0xff]
    %v2386 = vld [vmem:[#allocation10 + $0x10] sm:$0xff]
    %v2387 = vld [vmem:[#allocation10 + $0x18] sm:$0xff]
    %v2388 = vld [vmem:[#allocation10 + $0x20] sm:$0xff]
    %v2389 = vld [vmem:[#allocation10 + $0x28] sm:$0xff]
    %v2390 = vld [vmem:[#allocation10 + $0x30] sm:$0xff]
    %v2391 = vld [vmem:[#allocation10 + $0x38] sm:$0xff]
    %v2392 = vld [vmem:[#allocation10 + $0x40] sm:$0xff]
    %v2393 = vld [vmem:[#allocation10 + $0x48] sm:$0xff]
    %v2394 = vld [vmem:[#allocation10 + $0x50] sm:$0xff]
    %v2395 = vld [vmem:[#allocation10 + $0x58] sm:$0xff]
    %v2396 = vld [vmem:[#allocation10 + $0x60] sm:$0xff]
    %v2397 = vld [vmem:[#allocation10 + $0x68] sm:$0xff]
    %v2398 = vld [vmem:[#allocation10 + $0x70] sm:$0xff]
    %v2399 = vld [vmem:[#allocation10 + $0x78] sm:$0xff]
    %v2400 = vld [vmem:[#allocation10 + $0x80] sm:$0xff]
    %v2401 = vld [vmem:[#allocation10 + $0x88] sm:$0xff]
    %v2402 = vld [vmem:[#allocation10 + $0x90] sm:$0xff]
    %v2403 = vld [vmem:[#allocation10 + $0x98] sm:$0xff]
    %v2404 = vld [vmem:[#allocation10 + $0xa0] sm:$0xff]
    %v2405 = vld [vmem:[#allocation10 + $0xa8] sm:$0xff]
    %v2406 = vld [vmem:[#allocation10 + $0xb0] sm:$0xff]
    %v2407 = vld [vmem:[#allocation10 + $0xb8] sm:$0xff]
    %v2408 = vld [vmem:[#allocation10 + $0xc0] sm:$0xff]
    %v2409 = vld [vmem:[#allocation10 + $0xc8] sm:$0xff]
    %v2410 = vld [vmem:[#allocation10 + $0xd0] sm:$0xff]
    %v2411 = vld [vmem:[#allocation10 + $0xd8] sm:$0xff]
    %v2412 = vld [vmem:[#allocation10 + $0xe0] sm:$0xff]
    %v2413 = vld [vmem:[#allocation10 + $0xe8] sm:$0xff]
    %v2414 = vld [vmem:[#allocation10 + $0xf0] sm:$0xff]
    %v2415 = vld [vmem:[#allocation10 + $0xf8] sm:$0xff]
    %v2416 = vld [vmem:[#allocation11] sm:$0x1]
    %v2418 = vlaneseq
    %v2419 = vshrl.u32 %v2418, 7
    %v2420 = vsub.s32 0, %v2419
    %v2421 = vrot.slane %v2416, %v2420
    %2423 = vmatprep.subr.mxu0 0.0
    %2424 = vmatpush1.msra.mxu0 %v2384
    %2425 = vmatprep.subr.mxu0 0.0
    %2426 = vmatpush1.msra.mxu0 %v2385
    %2427 = vmatprep.subr.mxu0 0.0
    %2428 = vmatpush1.msra.mxu0 %v2386
    %2429 = vmatprep.subr.mxu0 0.0
    %2430 = vmatpush1.msra.mxu0 %v2387
    %2431 = vmatprep.subr.mxu0 0.0
    %2432 = vmatpush1.msra.mxu0 %v2388
    %2433 = vmatprep.subr.mxu0 0.0
    %2434 = vmatpush1.msra.mxu0 %v2389
    %2435 = vmatprep.subr.mxu0 0.0
    %2436 = vmatpush1.msra.mxu0 %v2390
    %2437 = vmatprep.subr.mxu0 0.0
    %2438 = vmatpush1.msra.mxu0 %v2391
    %2439 = vmatprep.subr.mxu0 0.0
    %2440 = vmatpush1.msra.mxu0 %v2392
    %2441 = vmatprep.subr.mxu0 0.0
    %2442 = vmatpush1.msra.mxu0 %v2393
    %2443 = vmatprep.subr.mxu0 0.0
    %2444 = vmatpush1.msra.mxu0 %v2394
    %2445 = vmatprep.subr.mxu0 0.0
    %2446 = vmatpush1.msra.mxu0 %v2395
    %2447 = vmatprep.subr.mxu0 0.0
    %2448 = vmatpush1.msra.mxu0 %v2396
    %2449 = vmatprep.subr.mxu0 0.0
    %2450 = vmatpush1.msra.mxu0 %v2397
    %2451 = vmatprep.subr.mxu0 0.0
    %2452 = vmatpush1.msra.mxu0 %v2398
    %2453 = vmatprep.subr.mxu0 0.0
    %2454 = vmatpush1.msra.mxu0 %v2399
    %2455 = vmatprep.subr.mxu0 0.0
    %2456 = vmatpush1.msra.mxu0 %v2400
    %2457 = vmatprep.subr.mxu0 0.0
    %2458 = vmatpush1.msra.mxu0 %v2401
    %2459 = vmatprep.subr.mxu0 0.0
    %2460 = vmatpush1.msra.mxu0 %v2402
    %2461 = vmatprep.subr.mxu0 0.0
    %2462 = vmatpush1.msra.mxu0 %v2403
    %2463 = vmatprep.subr.mxu0 0.0
    %2464 = vmatpush1.msra.mxu0 %v2404
    %2465 = vmatprep.subr.mxu0 0.0
    %2466 = vmatpush1.msra.mxu0 %v2405
    %2467 = vmatprep.subr.mxu0 0.0
    %2468 = vmatpush1.msra.mxu0 %v2406
    %2469 = vmatprep.subr.mxu0 0.0
    %2470 = vmatpush1.msra.mxu0 %v2407
    %2471 = vmatprep.subr.mxu0 0.0
    %2472 = vmatpush1.msra.mxu0 %v2408
    %2473 = vmatprep.subr.mxu0 0.0
    %2474 = vmatpush1.msra.mxu0 %v2409
    %2475 = vmatprep.subr.mxu0 0.0
    %2476 = vmatpush1.msra.mxu0 %v2410
    %2477 = vmatprep.subr.mxu0 0.0
    %2478 = vmatpush1.msra.mxu0 %v2411
    %2479 = vmatprep.subr.mxu0 0.0
    %2480 = vmatpush1.msra.mxu0 %v2412
    %2481 = vmatprep.subr.mxu0 0.0
    %2482 = vmatpush1.msra.mxu0 %v2413
    %2483 = vmatprep.subr.mxu0 0.0
    %2484 = vmatpush1.msra.mxu0 %v2414
    %2485 = vmatprep.subr.mxu0 0.0
    %2486 = vmatpush1.msra.mxu0 %v2415
    %2487 = vmatprep.mubr.f32.mxu0 %v2383
    %2488 = vmatmul.mubr.f32.gmra.mrb[0].mxu0 %v2382
    %v2489 = vpop.f32.mrb[0].mxu0
    %v2490 = vadd.f32 %v2421, %v2489
    %v2491 = vpop.f32.mrb[0].mxu0
    %2492 = vdwg.mxu0
    %2493 = vst [vmem:[#allocation13] sm:$0x3] %v2490
    // Predicated region
    $region54: #{efficientnet_feature_extractor_forward.3} parent=1 // pred_check
      _
    $region55: #{efficientnet_feature_extractor_forward.3} parent=1 // pred_check_branch
      %2495 = sbr.rel (0) target = $region57
    $region56: #{efficientnet_feature_extractor_forward.3} parent=1 // pred_region
      %s2497 = ssub.s32 32, 32
      %2498 = vsyncadd [#allocation4], %s2497
      %s2500 = sshll.u32 [#allocation13], 4
      %s2501 = int_to_ptr.vmem [resolvable:$true] %s2500
      %2503 = dma.vmem_to_hbm [thread:$0]  %s2501, 32, %s7, [#allocation4]
    $region57: #{efficientnet_feature_extractor_forward.3} parent=1 // pred_fallthru
      _
    // Predicated region
    $region58: #{efficientnet_feature_extractor_forward.3} parent=1 // pred_check
      _
    $region59: #{efficientnet_feature_extractor_forward.3} parent=1 // pred_check_branch
      %2505 = sbr.rel (0) target = $region61
    $region60: #{efficientnet_feature_extractor_forward.3} parent=1 // pred_region
      %2506 = dma.done [#allocation4], 32
    $region61: #{efficientnet_feature_extractor_forward.3} parent=1 // pred_fallthru
      _
    %2507 = vsyncpa [#allocation3], 1
    %2508 = vsyncpa [#allocation6], 1
    %2509 = vsyncpa [#allocation9], 1
    %2510 = vsyncpa [#allocation12], 1
    %2511 = vsyncpa [#allocation4], 1

</llo_original>
